<compile_context>
chip_gen: v7x
topology: tpu7x:2x2x1
jax: 0.10.0
libtpu: 0.0.40
codegen_flags: <defaults>
</compile_context>

<pallas_src>
import functools
import math

import jax
import jax.numpy as jnp
from jax import lax
from jax.experimental import pallas as pl
from jax.experimental.pallas import tpu as pltpu


def _round_up(x, m):
    return (x + m - 1) // m * m


# --------------------------------------------------------------------------- #
# Kernel
# --------------------------------------------------------------------------- #
def mlp_kernel(xt_ref, xm_ref, xb_ref, w1_ref, b1_ref, wdw_ref, bdw_ref,
               w2_ref, b2_ref, o_ref, *, approx_gelu):
    # xt_ref : (1, 1,  W, Cin_p)  row just above the tile (clamped at border)
    # xm_ref : (1, TH, W, Cin_p)  main row tile (NHWC, channels on lanes)
    # xb_ref : (1, 1,  W, Cin_p)  row just below the tile (clamped at border)
    i = pl.program_id(1)
    n_rows = pl.num_programs(1)

    TH = xm_ref.shape[1]
    W = xm_ref.shape[2]
    ch = w1_ref.shape[1]
    f32 = jnp.float32
    rows = TH + 2
    total = rows * W

    # ---- fc1: ONE MXU matmul over halo + main rows (M = (TH+2)*W) ----------
    # (reshapes / concat stay layout-free when W % 8 == 0; W % 16 for bf16)
    xt = xt_ref[...].reshape(W, -1)
    xm = xm_ref[...].reshape(TH * W, -1)
    xb = xb_ref[...].reshape(W, -1)
    x_all = jnp.concatenate([xt, xm, xb], axis=0)              # (total, cin)
    y = jnp.dot(x_all, w1_ref[...], preferred_element_type=f32)
    y = y + b1_ref[...].astype(f32)                            # (total, ch)

    # Zero the halo rows when they fall outside the image -- equivalent to
    # zero-padding the hidden map before the 3x3 depthwise conv.
    ridx = lax.broadcasted_iota(jnp.int32, (total, 1), 0)
    keep_top = jnp.logical_or(ridx >= W, i > 0)
    keep_bot = jnp.logical_or(ridx < (TH + 1) * W, i < n_rows - 1)
    y = jnp.where(jnp.logical_and(keep_top, keep_bot), y, 0.0)

    # ---- depthwise 3x3: column shifts via XLU roll + edge-column masks, ----
    # ---- row shifts via (free) slices along the leading dim. ---------------
    y_left = pltpu.roll(y, shift=1, axis=0)            # value at column c-1
    y_right = pltpu.roll(y, shift=total - 1, axis=0)   # value at column c+1

    y3 = y.reshape(rows, W, ch)
    yl3 = y_left.reshape(rows, W, ch)
    yr3 = y_right.reshape(rows, W, ch)
    col = lax.broadcasted_iota(jnp.int32, (1, W, 1), 1)
    yl3 = jnp.where(col > 0, yl3, 0.0)        # zero col 0 (also kills row wrap)
    yr3 = jnp.where(col < W - 1, yr3, 0.0)    # zero col W-1

    wdw = wdw_ref[...].astype(f32)                             # (3, 3, ch)
    bdw = bdw_ref[...].astype(f32)                             # (1, ch)
    parts = []
    for di in range(3):                        # 3 partial accumulators -> ILP
        a = yl3[di:di + TH] * wdw[di, 0]
        a = a + y3[di:di + TH] * wdw[di, 1]
        a = a + yr3[di:di + TH] * wdw[di, 2]
        parts.append(a)
    acc = (parts[0] + parts[1]) + (parts[2] + bdw)             # (TH, W, ch)

    # ---- GELU ---------------------------------------------------------------
    if approx_gelu:
        # tanh approximation -> EUP slot (nearly free when VALU-bound);
        # differs from the exact-erf GELU at the ~1e-3 level.
        c0 = f32(0.7978845608028654)           # sqrt(2/pi)
        z = 0.5 * acc * (1.0 + jnp.tanh(c0 * (acc + f32(0.044715) * acc * acc * acc)))
    else:
        # exact erf form -- matches nn.GELU default numerics.
        z = 0.5 * acc * (1.0 + lax.erf(acc * f32(0.7071067811865476)))

    # ---- fc2 (1x1 conv == channel matmul) -----------------------------------
    zm = z.reshape(TH * W, ch).astype(w2_ref.dtype)
    out = jnp.dot(zm, w2_ref[...], preferred_element_type=f32)
    out = out + b2_ref[...].astype(f32)
    o_ref[...] = out.reshape(o_ref.shape).astype(o_ref.dtype)

    # TODO(synk): nn.Dropout(drop=0.0) is identity at inference; omitted.


# --------------------------------------------------------------------------- #
# Tiling / VMEM heuristics
# --------------------------------------------------------------------------- #
def _vmem_budget_and_limit():
    cap = None
    try:
        info = pltpu.get_tpu_info()
        for name in ("vmem_capacity_bytes", "vmem_size_bytes", "vmem_bytes"):
            cap = getattr(info, name, None)
            if cap:
                break
    except Exception:
        cap = None
    if not cap:
        cap = 64 * 1024 * 1024      # conservative: v7x has 64 MiB VMEM per TC
    cap = int(cap)
    budget = int(cap * 0.45)        # headroom for compiler scratch / spills
    limit = int(cap * 0.75)
    return budget, limit


def _choose_row_tile(B, H, W, cin_p, ch_p, co_p, in_bytes, w_bytes, budget):
    """Largest divisor of H fitting the VMEM budget, preferring a large matmul
    M (TH*W >= 512/256) and a grid that is >= 2 deep and even (megacore)."""
    def footprint(th):
        rows = th + 2
        tile_in = 2 * rows * W * cin_p * in_bytes      # double-buffered inputs
        tile_out = 2 * th * W * co_p * 4               # double-buffered f32 out
        weights = (cin_p + co_p) * ch_p * w_bytes + (11 * ch_p + co_p) * 4
        live = (rows * W * cin_p * in_bytes            # x_all staging
                + 5 * rows * W * ch_p * 4              # y, rolls, acc, z
                + th * W * ch_p * w_bytes              # fc2 lhs staging
                + th * W * co_p * 4)                   # fc2 accumulator
        return tile_in + tile_out + weights + live

    divisors = [d for d in range(1, H + 1) if H % d == 0]
    fitting = [d for d in divisors if footprint(d) <= budget] or [1]
    big = ([d for d in fitting if d * W >= 512]
           or [d for d in fitting if d * W >= 256]
           or fitting)

    def balanced(d):
        depth = B * (H // d)
        return depth >= 2 and depth % 2 == 0

    cands = [d for d in big if balanced(d)] or big
    return max(cands)


# --------------------------------------------------------------------------- #
# pallas_call construction + wrappers
# --------------------------------------------------------------------------- #
def _make_call(B, H, W, TH, cin_p, ch_p, co_p, approx_gelu, vmem_limit_bytes,
               resident_weights):
    n_row = H // TH

    if resident_weights:
        # Weights/biases live once in VMEM: no per-step DMA, no double buffer.
        w_specs = [pl.BlockSpec(memory_space=pltpu.MemorySpace.VMEM)
                   for _ in range(6)]
    else:
        # Fallback: blocked full-array specs with constant index maps.
        w_specs = [
            pl.BlockSpec((cin_p, ch_p), lambda b, i: (0, 0)),
            pl.BlockSpec((1, ch_p), lambda b, i: (0, 0)),
            pl.BlockSpec((3, 3, ch_p), lambda b, i: (0, 0, 0)),
            pl.BlockSpec((1, ch_p), lambda b, i: (0, 0)),
            pl.BlockSpec((ch_p, co_p), lambda b, i: (0, 0)),
            pl.BlockSpec((1, co_p), lambda b, i: (0, 0)),
        ]

    in_specs = [
        # 1-row halo above (index clamped at the border; zeroed in-kernel there)
        pl.BlockSpec((1, 1, W, cin_p),
                     lambda b, i: (b, jnp.maximum(i * TH - 1, 0), 0, 0)),
        # main row tile
        pl.BlockSpec((1, TH, W, cin_p), lambda b, i: (b, i, 0, 0)),
        # 1-row halo below
        pl.BlockSpec((1, 1, W, cin_p),
                     lambda b, i: (b, jnp.minimum(i * TH + TH, H - 1), 0, 0)),
    ] + w_specs

    return pl.pallas_call(
        functools.partial(mlp_kernel, approx_gelu=approx_gelu),
        out_shape=jax.ShapeDtypeStruct((B, H, W, co_p), jnp.float32),
        grid_spec=pltpu.PrefetchScalarGridSpec(
            num_scalar_prefetch=0,
            grid=(B, n_row),
            in_specs=in_specs,
            out_specs=pl.BlockSpec((1, TH, W, co_p), lambda b, i: (b, i, 0, 0)),
        ),
        compiler_params=pltpu.CompilerParams(
            dimension_semantics=("parallel", "parallel"),
            vmem_limit_bytes=vmem_limit_bytes,
        ),
    )


def mlp_pallas_nhwc(x_nhwc, params, *, compute_dtype=jnp.bfloat16,
                    approx_gelu=False, row_tile=None, pad_out_channels=True,
                    vmem_budget_bytes=None, vmem_limit_bytes=None):
    """x_nhwc: (B, H, W, Cin); returns (B, H, W, Cout) float32."""
    w1, b1, wdw, bdw, w2, b2 = (params[k] for k in
                                ("w1", "b1", "wdw", "bdw", "w2", "b2"))
    B, H, W, Cin = x_nhwc.shape
    hidden = w1.shape[1]
    Cout = w2.shape[1]

    # ---- lane-dense channel padding (multiples of 128) ----------------------
    cin_p = _round_up(Cin, 128)
    ch_p = _round_up(hidden, 128)
    # TODO(synk): for very small Cout, writing Cout directly (masked stores)
    # may beat padding to 128 (4x less HBM writeback); benchmark per shape.
    co_p = _round_up(Cout, 128) if pad_out_channels else Cout

    x = x_nhwc
    if cin_p != Cin:
        x = jnp.pad(x, ((0, 0), (0, 0), (0, 0), (0, cin_p - Cin)))
    w1p = jnp.pad(w1, ((0, cin_p - Cin), (0, ch_p - hidden)))
    b1p = jnp.pad(b1, ((0, 0), (0, ch_p - hidden)))
    wdwp = jnp.pad(wdw, ((0, 0), (0, 0), (0, ch_p - hidden)))
    bdwp = jnp.pad(bdw, ((0, 0), (0, ch_p - hidden)))
    w2p = jnp.pad(w2, ((0, ch_p - hidden), (0, co_p - Cout)))
    b2p = jnp.pad(b2, ((0, 0), (0, co_p - Cout)))

    if compute_dtype == jnp.bfloat16:
        # bf16 MXU inputs only; dwconv / GELU / accumulation stay f32.
        # (W % 16 == 0 keeps the (TH,W,c)->(TH*W,c) reshapes packing-aligned.)
        x = x.astype(jnp.bfloat16)
        w1p = w1p.astype(jnp.bfloat16)
        w2p = w2p.astype(jnp.bfloat16)

    in_bytes = jnp.dtype(x.dtype).itemsize
    w_bytes = jnp.dtype(w1p.dtype).itemsize

    def_budget, def_limit = _vmem_budget_and_limit()
    budget = vmem_budget_bytes if vmem_budget_bytes is not None else def_budget
    limit = vmem_limit_bytes if vmem_limit_bytes is not None else def_limit

    TH = row_tile if row_tile is not None else _choose_row_tile(
        B, H, W, cin_p, ch_p, co_p, in_bytes, w_bytes, budget)
    assert H % TH == 0, "row_tile must divide H"

    args = (x, x, x, w1p, b1p, wdwp, bdwp, w2p, b2p)
    try:
        out_nhwc = _make_call(B, H, W, TH, cin_p, ch_p, co_p, approx_gelu,
                              limit, resident_weights=True)(*args)
    except Exception:
        # Some runtimes may reject whole-array VMEM weight inputs; retry with
        # blocked constant-index-map specs (double-buffered, known-good).
        out_nhwc = _make_call(B, H, W, TH, cin_p, ch_p, co_p, approx_gelu,
                              limit, resident_weights=False)(*args)

    if co_p != Cout:
        out_nhwc = out_nhwc[..., :Cout]
    return out_nhwc


def mlp_pallas(x_nchw, params, **kwargs):
    """NCHW wrapper matching the PyTorch module interface.

    TODO(synk): the NCHW<->NHWC transposes and the channel pad/slice here are
    full HBM round trips; in a real model keep activations NHWC and fold the
    padding into the producing layer.
    """
    x = jnp.transpose(x_nchw, (0, 2, 3, 1))
    out = mlp_pallas_nhwc(x, params, **kwargs)
    return jnp.transpose(out, (0, 3, 1, 2))


# --------------------------------------------------------------------------- #
# Parameter init (matches the PyTorch _init_weights for Conv2d) and reference
# --------------------------------------------------------------------------- #
def init_params(key, in_features, hidden_features, out_features):
    """Conv2d init: weight ~ N(0, sqrt(2/fan_out)), bias = 0."""
    k1, k2, k3 = jax.random.split(key, 3)
    std1 = math.sqrt(2.0 / hidden_features)                       # fan_out = 1*1*hidden
    w1 = std1 * jax.random.normal(k1, (in_features, hidden_features), jnp.float32)
    b1 = jnp.zeros((1, hidden_features), jnp.float32)
    stdd = math.sqrt(2.0 / 9.0)                                    # depthwise: fan_out = 9
    wdw = stdd * jax.random.normal(k2, (3, 3, hidden_features), jnp.float32)
    bdw = jnp.zeros((1, hidden_features), jnp.float32)
    std2 = math.sqrt(2.0 / out_features)                           # fan_out = 1*1*out
    w2 = std2 * jax.random.normal(k3, (hidden_features, out_features), jnp.float32)
    b2 = jnp.zeros((1, out_features), jnp.float32)
    return dict(w1=w1, b1=b1, wdw=wdw, bdw=bdw, w2=w2, b2=b2)


def mlp_reference(x_nchw, params):
    """Pure-JAX reference (NCHW conv semantics) for validation."""
    w1, b1, wdw, bdw, w2, b2 = (params[k] for k in
                                ("w1", "b1", "wdw", "bdw", "w2", "b2"))
    Cin, hidden = w1.shape
    Cout = w2.shape[1]
    w1c = jnp.transpose(w1, (1, 0))[:, :, None, None]             # (hidden, Cin, 1, 1)
    y = lax.conv_general_dilated(x_nchw, w1c, (1, 1), "SAME",
                                 dimension_numbers=("NCHW", "OIHW", "NCHW"))
    y = y + b1.reshape(1, hidden, 1, 1)
    wdwc = jnp.transpose(wdw, (2, 0, 1))[:, None, :, :]           # (hidden, 1, 3, 3)
    y = lax.conv_general_dilated(y, wdwc, (1, 1), "SAME",
                                 dimension_numbers=("NCHW", "OIHW", "NCHW"),
                                 feature_group_count=hidden)
    y = y + bdw.reshape(1, hidden, 1, 1)
    y = 0.5 * y * (1.0 + lax.erf(y / jnp.sqrt(2.0)))
    w2c = jnp.transpose(w2, (1, 0))[:, :, None, None]
    out = lax.conv_general_dilated(y, w2c, (1, 1), "SAME",
                                   dimension_numbers=("NCHW", "OIHW", "NCHW"))
    return out + b2.reshape(1, Cout, 1, 1)


# --------------------------------------------------------------------------- #
# Self-test
# --------------------------------------------------------------------------- #
if __name__ == "__main__":
    B, Cin, H, W = 2, 4, 16, 16
    hidden = 32
    Cout = Cin                                    # out_features defaults to in_features

    key = jax.random.PRNGKey(0)
    kx, kp = jax.random.split(key)
    x = jax.random.normal(kx, (B, Cin, H, W), jnp.float32)
    params = init_params(kp, Cin, hidden, Cout)

    ref = jax.block_until_ready(mlp_reference(x, params))

    # 1) exact-numerics path (f32 MXU + exact erf GELU): tight tolerance.
    out_f32 = jax.block_until_ready(mlp_pallas(x, params, compute_dtype=jnp.float32))
    assert out_f32.shape == (B, Cout, H, W)
    assert jnp.allclose(out_f32, ref, atol=1e-4, rtol=1e-4), "f32 path mismatch"

    # 2) default fast path (bf16 MXU inputs, f32 accumulation): loose tolerance.
    out_bf16 = jax.block_until_ready(mlp_pallas(x, params))
    assert jnp.allclose(out_bf16, ref, atol=5e-2, rtol=5e-2), "bf16 path mismatch"

    # 3) bf16 + approximate (tanh / EUP) GELU: loose tolerance.
    out_fast = jax.block_until_ready(mlp_pallas(x, params, approx_gelu=True))
    assert jnp.allclose(out_fast, ref, atol=5e-2, rtol=5e-2), "approx-GELU path mismatch"

    print("KERNEL_OK")
</pallas_src>

<mosaic_0001>
module attributes {stable_mosaic.version = 11 : i64} {
  func.func @mlp_kernel(%arg0: i32, %arg1: i32, %arg2: memref<1x1x16x128xf32, #tpu.memory_space<vmem>>, %arg3: memref<1x16x16x128xf32, #tpu.memory_space<vmem>>, %arg4: memref<1x1x16x128xf32, #tpu.memory_space<vmem>>, %arg5: memref<128x128xf32, #tpu.memory_space<vmem>>, %arg6: memref<1x128xf32, #tpu.memory_space<vmem>>, %arg7: memref<3x3x128xf32, #tpu.memory_space<vmem>>, %arg8: memref<1x128xf32, #tpu.memory_space<vmem>>, %arg9: memref<128x128xf32, #tpu.memory_space<vmem>>, %arg10: memref<1x128xf32, #tpu.memory_space<vmem>>, %arg11: memref<1x16x16x128xf32, #tpu.memory_space<vmem>>) attributes {dimension_semantics = [#tpu.dimension_semantics<parallel>, #tpu.dimension_semantics<parallel>], iteration_bounds = array<i64: 2, 1>, scalar_prefetch = 0 : i64, scratch_operands = 0 : i64, tpu.core_type = #tpu.core_type<tc>, window_params = [{transform_indices = @transform_0, window_bounds = array<i64: 1, 1, 16, 128>}, {transform_indices = @transform_1, window_bounds = array<i64: 1, 16, 16, 128>}, {transform_indices = @transform_2, window_bounds = array<i64: 1, 1, 16, 128>}, {pipeline_mode = #tpu.pipeline_mode<synchronous>, transform_indices = @transform_3, window_bounds = array<i64: 128, 128>}, {pipeline_mode = #tpu.pipeline_mode<synchronous>, transform_indices = @transform_4, window_bounds = array<i64: 1, 128>}, {pipeline_mode = #tpu.pipeline_mode<synchronous>, transform_indices = @transform_5, window_bounds = array<i64: 3, 3, 128>}, {pipeline_mode = #tpu.pipeline_mode<synchronous>, transform_indices = @transform_6, window_bounds = array<i64: 1, 128>}, {pipeline_mode = #tpu.pipeline_mode<synchronous>, transform_indices = @transform_7, window_bounds = array<i64: 128, 128>}, {pipeline_mode = #tpu.pipeline_mode<synchronous>, transform_indices = @transform_8, window_bounds = array<i64: 1, 128>}, {transform_indices = @transform_9, window_bounds = array<i64: 1, 16, 16, 128>}]} {
    %c0 = arith.constant 0 : index
    %c0_0 = arith.constant 0 : index
    %c0_1 = arith.constant 0 : index
    %c0_2 = arith.constant 0 : index
    %0 = vector.load %arg2[%c0, %c0_0, %c0_1, %c0_2] : memref<1x1x16x128xf32, #tpu.memory_space<vmem>>, vector<1x1x16x128xf32>
    %1 = vector.shape_cast %0 : vector<1x1x16x128xf32> to vector<16x128xf32>
    %c0_3 = arith.constant 0 : index
    %c0_4 = arith.constant 0 : index
    %c0_5 = arith.constant 0 : index
    %c0_6 = arith.constant 0 : index
    %2 = vector.load %arg3[%c0_3, %c0_4, %c0_5, %c0_6] : memref<1x16x16x128xf32, #tpu.memory_space<vmem>>, vector<1x16x16x128xf32>
    %3 = vector.shape_cast %2 : vector<1x16x16x128xf32> to vector<256x128xf32>
    %c0_7 = arith.constant 0 : index
    %c0_8 = arith.constant 0 : index
    %c0_9 = arith.constant 0 : index
    %c0_10 = arith.constant 0 : index
    %4 = vector.load %arg4[%c0_7, %c0_8, %c0_9, %c0_10] : memref<1x1x16x128xf32, #tpu.memory_space<vmem>>, vector<1x1x16x128xf32>
    %5 = vector.shape_cast %4 : vector<1x1x16x128xf32> to vector<16x128xf32>
    %6 = tpu.concatenate %1, %3, %5 in 0 : vector<16x128xf32>, vector<256x128xf32>, vector<16x128xf32> -> vector<288x128xf32>
    %c0_11 = arith.constant 0 : index
    %c0_12 = arith.constant 0 : index
    %7 = vector.load %arg5[%c0_11, %c0_12] : memref<128x128xf32, #tpu.memory_space<vmem>>, vector<128x128xf32>
    %cst = arith.constant dense<0.000000e+00> : vector<288x128xf32>
    %8 = tpu.matmul %6, %7, %cst {dimension_numbers = #tpu.dot_dimension_numbers<[1], [0], [0], [1], [0, 0, 1, 1], [], []>} : vector<288x128xf32>, vector<128x128xf32>, vector<288x128xf32> -> vector<288x128xf32>
    %c0_13 = arith.constant 0 : index
    %c0_14 = arith.constant 0 : index
    %9 = vector.load %arg6[%c0_13, %c0_14] : memref<1x128xf32, #tpu.memory_space<vmem>>, vector<1x128xf32>
    %10 = vector.broadcast %9 : vector<1x128xf32> to vector<288x128xf32>
    %11 = arith.addf %8, %10 : vector<288x128xf32>
    %12 = tpu.iota {dimensions = array<i32: 0>} : vector<288x1xi32>
    %c16_i32 = arith.constant 16 : i32
    %13 = vector.broadcast %c16_i32 : i32 to vector<288x1xi32>
    %14 = arith.cmpi sge, %12, %13 : vector<288x1xi32>
    %c0_i32 = arith.constant 0 : i32
    %15 = arith.cmpi sgt, %arg1, %c0_i32 : i32
    %16 = vector.broadcast %15 : i1 to vector<288x1xi1>
    %17 = arith.ori %14, %16 : vector<288x1xi1>
    %c272_i32 = arith.constant 272 : i32
    %18 = vector.broadcast %c272_i32 : i32 to vector<288x1xi32>
    %19 = arith.cmpi slt, %12, %18 : vector<288x1xi32>
    %c0_i32_15 = arith.constant 0 : i32
    %20 = arith.cmpi slt, %arg1, %c0_i32_15 : i32
    %21 = vector.broadcast %20 : i1 to vector<288x1xi1>
    %22 = arith.ori %19, %21 : vector<288x1xi1>
    %23 = arith.andi %17, %22 : vector<288x1xi1>
    %cst_16 = arith.constant 0.000000e+00 : f32
    %24 = vector.shape_cast %23 : vector<288x1xi1> to vector<288x1xi1>
    %25 = vector.broadcast %24 : vector<288x1xi1> to vector<288x128xi1>
    %26 = vector.broadcast %cst_16 : f32 to vector<288x128xf32>
    %27 = arith.select %25, %11, %26 : vector<288x128xi1>, vector<288x128xf32>
    %c1_i32 = arith.constant 1 : i32
    %28 = tpu.dynamic_rotate %27 by %c1_i32 dim 0 : vector<288x128xf32>, i32 -> vector<288x128xf32>
    %c287_i32 = arith.constant 287 : i32
    %29 = tpu.dynamic_rotate %27 by %c287_i32 dim 0 : vector<288x128xf32>, i32 -> vector<288x128xf32>
    %30 = vector.shape_cast %27 : vector<288x128xf32> to vector<18x16x128xf32>
    %31 = vector.shape_cast %28 : vector<288x128xf32> to vector<18x16x128xf32>
    %32 = vector.shape_cast %29 : vector<288x128xf32> to vector<18x16x128xf32>
    %33 = tpu.iota {dimensions = array<i32: 1>} : vector<1x16x1xi32>
    %c0_i32_17 = arith.constant 0 : i32
    %34 = vector.broadcast %c0_i32_17 : i32 to vector<1x16x1xi32>
    %35 = arith.cmpi sgt, %33, %34 : vector<1x16x1xi32>
    %cst_18 = arith.constant 0.000000e+00 : f32
    %36 = vector.shape_cast %35 : vector<1x16x1xi1> to vector<1x16x1xi1>
    %37 = vector.broadcast %36 : vector<1x16x1xi1> to vector<18x16x128xi1>
    %38 = vector.broadcast %cst_18 : f32 to vector<18x16x128xf32>
    %39 = arith.select %37, %31, %38 : vector<18x16x128xi1>, vector<18x16x128xf32>
    %c15_i32 = arith.constant 15 : i32
    %40 = vector.broadcast %c15_i32 : i32 to vector<1x16x1xi32>
    %41 = arith.cmpi slt, %33, %40 : vector<1x16x1xi32>
    %cst_19 = arith.constant 0.000000e+00 : f32
    %42 = vector.shape_cast %41 : vector<1x16x1xi1> to vector<1x16x1xi1>
    %43 = vector.broadcast %42 : vector<1x16x1xi1> to vector<18x16x128xi1>
    %44 = vector.broadcast %cst_19 : f32 to vector<18x16x128xf32>
    %45 = arith.select %43, %32, %44 : vector<18x16x128xi1>, vector<18x16x128xf32>
    %c0_20 = arith.constant 0 : index
    %c0_21 = arith.constant 0 : index
    %c0_22 = arith.constant 0 : index
    %46 = vector.load %arg7[%c0_20, %c0_21, %c0_22] : memref<3x3x128xf32, #tpu.memory_space<vmem>>, vector<3x3x128xf32>
    %c0_23 = arith.constant 0 : index
    %c0_24 = arith.constant 0 : index
    %47 = vector.load %arg8[%c0_23, %c0_24] : memref<1x128xf32, #tpu.memory_space<vmem>>, vector<1x128xf32>
    %48 = vector.extract_strided_slice %39 {offsets = [0, 0, 0], sizes = [16, 16, 128], strides = [1, 1, 1]} : vector<18x16x128xf32> to vector<16x16x128xf32>
    %49 = vector.extract_strided_slice %46 {offsets = [0, 0, 0], sizes = [1, 1, 128], strides = [1, 1, 1]} : vector<3x3x128xf32> to vector<1x1x128xf32>
    %50 = vector.shape_cast %49 : vector<1x1x128xf32> to vector<128xf32>
    %51 = vector.shape_cast %50 : vector<128xf32> to vector<1x1x128xf32>
    %52 = vector.broadcast %51 : vector<1x1x128xf32> to vector<16x16x128xf32>
    %53 = arith.mulf %48, %52 : vector<16x16x128xf32>
    %54 = vector.extract_strided_slice %30 {offsets = [0, 0, 0], sizes = [16, 16, 128], strides = [1, 1, 1]} : vector<18x16x128xf32> to vector<16x16x128xf32>
    %55 = vector.extract_strided_slice %46 {offsets = [0, 1, 0], sizes = [1, 1, 128], strides = [1, 1, 1]} : vector<3x3x128xf32> to vector<1x1x128xf32>
    %56 = vector.shape_cast %55 : vector<1x1x128xf32> to vector<128xf32>
    %57 = vector.shape_cast %56 : vector<128xf32> to vector<1x1x128xf32>
    %58 = vector.broadcast %57 : vector<1x1x128xf32> to vector<16x16x128xf32>
    %59 = arith.mulf %54, %58 : vector<16x16x128xf32>
    %60 = arith.addf %53, %59 : vector<16x16x128xf32>
    %61 = vector.extract_strided_slice %45 {offsets = [0, 0, 0], sizes = [16, 16, 128], strides = [1, 1, 1]} : vector<18x16x128xf32> to vector<16x16x128xf32>
    %62 = vector.extract_strided_slice %46 {offsets = [0, 2, 0], sizes = [1, 1, 128], strides = [1, 1, 1]} : vector<3x3x128xf32> to vector<1x1x128xf32>
    %63 = vector.shape_cast %62 : vector<1x1x128xf32> to vector<128xf32>
    %64 = vector.shape_cast %63 : vector<128xf32> to vector<1x1x128xf32>
    %65 = vector.broadcast %64 : vector<1x1x128xf32> to vector<16x16x128xf32>
    %66 = arith.mulf %61, %65 : vector<16x16x128xf32>
    %67 = arith.addf %60, %66 : vector<16x16x128xf32>
    %68 = vector.extract_strided_slice %39 {offsets = [1, 0, 0], sizes = [16, 16, 128], strides = [1, 1, 1]} : vector<18x16x128xf32> to vector<16x16x128xf32>
    %69 = vector.extract_strided_slice %46 {offsets = [1, 0, 0], sizes = [1, 1, 128], strides = [1, 1, 1]} : vector<3x3x128xf32> to vector<1x1x128xf32>
    %70 = vector.shape_cast %69 : vector<1x1x128xf32> to vector<128xf32>
    %71 = vector.shape_cast %70 : vector<128xf32> to vector<1x1x128xf32>
    %72 = vector.broadcast %71 : vector<1x1x128xf32> to vector<16x16x128xf32>
    %73 = arith.mulf %68, %72 : vector<16x16x128xf32>
    %74 = vector.extract_strided_slice %30 {offsets = [1, 0, 0], sizes = [16, 16, 128], strides = [1, 1, 1]} : vector<18x16x128xf32> to vector<16x16x128xf32>
    %75 = vector.extract_strided_slice %46 {offsets = [1, 1, 0], sizes = [1, 1, 128], strides = [1, 1, 1]} : vector<3x3x128xf32> to vector<1x1x128xf32>
    %76 = vector.shape_cast %75 : vector<1x1x128xf32> to vector<128xf32>
    %77 = vector.shape_cast %76 : vector<128xf32> to vector<1x1x128xf32>
    %78 = vector.broadcast %77 : vector<1x1x128xf32> to vector<16x16x128xf32>
    %79 = arith.mulf %74, %78 : vector<16x16x128xf32>
    %80 = arith.addf %73, %79 : vector<16x16x128xf32>
    %81 = vector.extract_strided_slice %45 {offsets = [1, 0, 0], sizes = [16, 16, 128], strides = [1, 1, 1]} : vector<18x16x128xf32> to vector<16x16x128xf32>
    %82 = vector.extract_strided_slice %46 {offsets = [1, 2, 0], sizes = [1, 1, 128], strides = [1, 1, 1]} : vector<3x3x128xf32> to vector<1x1x128xf32>
    %83 = vector.shape_cast %82 : vector<1x1x128xf32> to vector<128xf32>
    %84 = vector.shape_cast %83 : vector<128xf32> to vector<1x1x128xf32>
    %85 = vector.broadcast %84 : vector<1x1x128xf32> to vector<16x16x128xf32>
    %86 = arith.mulf %81, %85 : vector<16x16x128xf32>
    %87 = arith.addf %80, %86 : vector<16x16x128xf32>
    %88 = vector.extract_strided_slice %39 {offsets = [2, 0, 0], sizes = [16, 16, 128], strides = [1, 1, 1]} : vector<18x16x128xf32> to vector<16x16x128xf32>
    %89 = vector.extract_strided_slice %46 {offsets = [2, 0, 0], sizes = [1, 1, 128], strides = [1, 1, 1]} : vector<3x3x128xf32> to vector<1x1x128xf32>
    %90 = vector.shape_cast %89 : vector<1x1x128xf32> to vector<128xf32>
    %91 = vector.shape_cast %90 : vector<128xf32> to vector<1x1x128xf32>
    %92 = vector.broadcast %91 : vector<1x1x128xf32> to vector<16x16x128xf32>
    %93 = arith.mulf %88, %92 : vector<16x16x128xf32>
    %94 = vector.extract_strided_slice %30 {offsets = [2, 0, 0], sizes = [16, 16, 128], strides = [1, 1, 1]} : vector<18x16x128xf32> to vector<16x16x128xf32>
    %95 = vector.extract_strided_slice %46 {offsets = [2, 1, 0], sizes = [1, 1, 128], strides = [1, 1, 1]} : vector<3x3x128xf32> to vector<1x1x128xf32>
    %96 = vector.shape_cast %95 : vector<1x1x128xf32> to vector<128xf32>
    %97 = vector.shape_cast %96 : vector<128xf32> to vector<1x1x128xf32>
    %98 = vector.broadcast %97 : vector<1x1x128xf32> to vector<16x16x128xf32>
    %99 = arith.mulf %94, %98 : vector<16x16x128xf32>
    %100 = arith.addf %93, %99 : vector<16x16x128xf32>
    %101 = vector.extract_strided_slice %45 {offsets = [2, 0, 0], sizes = [16, 16, 128], strides = [1, 1, 1]} : vector<18x16x128xf32> to vector<16x16x128xf32>
    %102 = vector.extract_strided_slice %46 {offsets = [2, 2, 0], sizes = [1, 1, 128], strides = [1, 1, 1]} : vector<3x3x128xf32> to vector<1x1x128xf32>
    %103 = vector.shape_cast %102 : vector<1x1x128xf32> to vector<128xf32>
    %104 = vector.shape_cast %103 : vector<128xf32> to vector<1x1x128xf32>
    %105 = vector.broadcast %104 : vector<1x1x128xf32> to vector<16x16x128xf32>
    %106 = arith.mulf %101, %105 : vector<16x16x128xf32>
    %107 = arith.addf %100, %106 : vector<16x16x128xf32>
    %108 = arith.addf %67, %87 : vector<16x16x128xf32>
    %109 = vector.shape_cast %47 : vector<1x128xf32> to vector<1x1x128xf32>
    %110 = vector.broadcast %109 : vector<1x1x128xf32> to vector<16x16x128xf32>
    %111 = arith.addf %107, %110 : vector<16x16x128xf32>
    %112 = arith.addf %108, %111 : vector<16x16x128xf32>
    %cst_25 = arith.constant 5.000000e-01 : f32
    %113 = vector.broadcast %cst_25 : f32 to vector<16x16x128xf32>
    %114 = arith.mulf %113, %112 : vector<16x16x128xf32>
    %cst_26 = arith.constant 0.707106769 : f32
    %115 = vector.broadcast %cst_26 : f32 to vector<16x16x128xf32>
    %116 = arith.mulf %112, %115 : vector<16x16x128xf32>
    %117 = math.erf %116 : vector<16x16x128xf32>
    %cst_27 = arith.constant 1.000000e+00 : f32
    %118 = vector.broadcast %cst_27 : f32 to vector<16x16x128xf32>
    %119 = arith.addf %118, %117 : vector<16x16x128xf32>
    %120 = arith.mulf %114, %119 : vector<16x16x128xf32>
    %121 = vector.shape_cast %120 : vector<16x16x128xf32> to vector<256x128xf32>
    %c0_28 = arith.constant 0 : index
    %c0_29 = arith.constant 0 : index
    %122 = vector.load %arg9[%c0_28, %c0_29] : memref<128x128xf32, #tpu.memory_space<vmem>>, vector<128x128xf32>
    %cst_30 = arith.constant dense<0.000000e+00> : vector<256x128xf32>
    %123 = tpu.matmul %121, %122, %cst_30 {dimension_numbers = #tpu.dot_dimension_numbers<[1], [0], [0], [1], [0, 0, 1, 1], [], []>} : vector<256x128xf32>, vector<128x128xf32>, vector<256x128xf32> -> vector<256x128xf32>
    %c0_31 = arith.constant 0 : index
    %c0_32 = arith.constant 0 : index
    %124 = vector.load %arg10[%c0_31, %c0_32] : memref<1x128xf32, #tpu.memory_space<vmem>>, vector<1x128xf32>
    %125 = vector.broadcast %124 : vector<1x128xf32> to vector<256x128xf32>
    %126 = arith.addf %123, %125 : vector<256x128xf32>
    %127 = vector.shape_cast %126 : vector<256x128xf32> to vector<1x16x16x128xf32>
    %c0_33 = arith.constant 0 : index
    %c0_34 = arith.constant 0 : index
    %c0_35 = arith.constant 0 : index
    %c0_36 = arith.constant 0 : index
    %128 = vector.load %arg11[%c0_33, %c0_34, %c0_35, %c0_36] : memref<1x16x16x128xf32, #tpu.memory_space<vmem>>, vector<1x16x16x128xf32>
    tpu.vector_store %arg11[%c0_33, %c0_34, %c0_35, %c0_36], %127 {strides = array<i32>} : memref<1x16x16x128xf32, #tpu.memory_space<vmem>>, vector<1x16x16x128xf32>,
    return
  }
  func.func @transform_0(%arg0: i32, %arg1: i32) -> (i32, i32, i32, i32) {
    %c16_i32 = arith.constant 16 : i32
    %0 = arith.muli %arg1, %c16_i32 : i32
    %c1_i32 = arith.constant 1 : i32
    %1 = arith.subi %0, %c1_i32 : i32
    %c0_i32 = arith.constant 0 : i32
    %2 = arith.maxsi %1, %c0_i32 : i32
    %c0_i32_0 = arith.constant 0 : i32
    %c0_i32_1 = arith.constant 0 : i32
    %c0_i32_2 = arith.constant 0 : i32
    return %arg0, %2, %c0_i32_0, %c0_i32_1 : i32, i32, i32, i32
  }
  func.func @transform_1(%arg0: i32, %arg1: i32) -> (i32, i32, i32, i32) {
    %c0_i32 = arith.constant 0 : i32
    %c0_i32_0 = arith.constant 0 : i32
    %c0_i32_1 = arith.constant 0 : i32
    return %arg0, %arg1, %c0_i32, %c0_i32_0 : i32, i32, i32, i32
  }
  func.func @transform_2(%arg0: i32, %arg1: i32) -> (i32, i32, i32, i32) {
    %c16_i32 = arith.constant 16 : i32
    %0 = arith.muli %arg1, %c16_i32 : i32
    %c16_i32_0 = arith.constant 16 : i32
    %1 = arith.addi %0, %c16_i32_0 : i32
    %c15_i32 = arith.constant 15 : i32
    %2 = arith.minsi %1, %c15_i32 : i32
    %c0_i32 = arith.constant 0 : i32
    %c0_i32_1 = arith.constant 0 : i32
    %c0_i32_2 = arith.constant 0 : i32
    return %arg0, %2, %c0_i32, %c0_i32_1 : i32, i32, i32, i32
  }
  func.func @transform_3(%arg0: i32, %arg1: i32) -> (i32, i32) {
    %c0_i32 = arith.constant 0 : i32
    %c0_i32_0 = arith.constant 0 : i32
    %c0_i32_1 = arith.constant 0 : i32
    return %c0_i32, %c0_i32_0 : i32, i32
  }
  func.func @transform_4(%arg0: i32, %arg1: i32) -> (i32, i32) {
    %c0_i32 = arith.constant 0 : i32
    %c0_i32_0 = arith.constant 0 : i32
    %c0_i32_1 = arith.constant 0 : i32
    return %c0_i32, %c0_i32_0 : i32, i32
  }
  func.func @transform_5(%arg0: i32, %arg1: i32) -> (i32, i32, i32) {
    %c0_i32 = arith.constant 0 : i32
    %c0_i32_0 = arith.constant 0 : i32
    %c0_i32_1 = arith.constant 0 : i32
    %c0_i32_2 = arith.constant 0 : i32
    return %c0_i32, %c0_i32_0, %c0_i32_1 : i32, i32, i32
  }
  func.func @transform_6(%arg0: i32, %arg1: i32) -> (i32, i32) {
    %c0_i32 = arith.constant 0 : i32
    %c0_i32_0 = arith.constant 0 : i32
    %c0_i32_1 = arith.constant 0 : i32
    return %c0_i32, %c0_i32_0 : i32, i32
  }
  func.func @transform_7(%arg0: i32, %arg1: i32) -> (i32, i32) {
    %c0_i32 = arith.constant 0 : i32
    %c0_i32_0 = arith.constant 0 : i32
    %c0_i32_1 = arith.constant 0 : i32
    return %c0_i32, %c0_i32_0 : i32, i32
  }
  func.func @transform_8(%arg0: i32, %arg1: i32) -> (i32, i32) {
    %c0_i32 = arith.constant 0 : i32
    %c0_i32_0 = arith.constant 0 : i32
    %c0_i32_1 = arith.constant 0 : i32
    return %c0_i32, %c0_i32_0 : i32, i32
  }
  func.func @transform_9(%arg0: i32, %arg1: i32) -> (i32, i32, i32, i32) {
    %c0_i32 = arith.constant 0 : i32
    %c0_i32_0 = arith.constant 0 : i32
    %c0_i32_1 = arith.constant 0 : i32
    return %arg0, %arg1, %c0_i32, %c0_i32_0 : i32, i32, i32, i32
  }
}

module attributes {stable_mosaic.version = 11 : i64} {
  func.func @mlp_kernel(%arg0: i32, %arg1: i32, %arg2: memref<1x1x16x128xf32, #tpu.memory_space<vmem>>, %arg3: memref<1x16x16x128xf32, #tpu.memory_space<vmem>>, %arg4: memref<1x1x16x128xf32, #tpu.memory_space<vmem>>, %arg5: memref<128x128xf32, #tpu.memory_space<vmem>>, %arg6: memref<1x128xf32, #tpu.memory_space<vmem>>, %arg7: memref<3x3x128xf32, #tpu.memory_space<vmem>>, %arg8: memref<1x128xf32, #tpu.memory_space<vmem>>, %arg9: memref<128x128xf32, #tpu.memory_space<vmem>>, %arg10: memref<1x128xf32, #tpu.memory_space<vmem>>, %arg11: memref<1x16x16x128xf32, #tpu.memory_space<vmem>>) attributes {dimension_semantics = [#tpu.dimension_semantics<parallel>, #tpu.dimension_semantics<parallel>], iteration_bounds = array<i64: 2, 1>, scalar_prefetch = 0 : i64, scratch_operands = 0 : i64, tpu.core_type = #tpu.core_type<tc>, window_params = [{transform_indices = @transform_0, window_bounds = array<i64: 1, 1, 16, 128>}, {transform_indices = @transform_1, window_bounds = array<i64: 1, 16, 16, 128>}, {transform_indices = @transform_2, window_bounds = array<i64: 1, 1, 16, 128>}, {pipeline_mode = #tpu.pipeline_mode<synchronous>, transform_indices = @transform_3, window_bounds = array<i64: 128, 128>}, {pipeline_mode = #tpu.pipeline_mode<synchronous>, transform_indices = @transform_4, window_bounds = array<i64: 1, 128>}, {pipeline_mode = #tpu.pipeline_mode<synchronous>, transform_indices = @transform_5, window_bounds = array<i64: 3, 3, 128>}, {pipeline_mode = #tpu.pipeline_mode<synchronous>, transform_indices = @transform_6, window_bounds = array<i64: 1, 128>}, {pipeline_mode = #tpu.pipeline_mode<synchronous>, transform_indices = @transform_7, window_bounds = array<i64: 128, 128>}, {pipeline_mode = #tpu.pipeline_mode<synchronous>, transform_indices = @transform_8, window_bounds = array<i64: 1, 128>}, {transform_indices = @transform_9, window_bounds = array<i64: 1, 16, 16, 128>}]} {
    %c0 = arith.constant 0 : index
    %c0_0 = arith.constant 0 : index
    %c0_1 = arith.constant 0 : index
    %c0_2 = arith.constant 0 : index
    %0 = vector.load %arg2[%c0, %c0_0, %c0_1, %c0_2] : memref<1x1x16x128xf32, #tpu.memory_space<vmem>>, vector<1x1x16x128xf32>
    %1 = vector.shape_cast %0 : vector<1x1x16x128xf32> to vector<16x128xf32>
    %c0_3 = arith.constant 0 : index
    %c0_4 = arith.constant 0 : index
    %c0_5 = arith.constant 0 : index
    %c0_6 = arith.constant 0 : index
    %2 = vector.load %arg3[%c0_3, %c0_4, %c0_5, %c0_6] : memref<1x16x16x128xf32, #tpu.memory_space<vmem>>, vector<1x16x16x128xf32>
    %3 = vector.shape_cast %2 : vector<1x16x16x128xf32> to vector<256x128xf32>
    %c0_7 = arith.constant 0 : index
    %c0_8 = arith.constant 0 : index
    %c0_9 = arith.constant 0 : index
    %c0_10 = arith.constant 0 : index
    %4 = vector.load %arg4[%c0_7, %c0_8, %c0_9, %c0_10] : memref<1x1x16x128xf32, #tpu.memory_space<vmem>>, vector<1x1x16x128xf32>
    %5 = vector.shape_cast %4 : vector<1x1x16x128xf32> to vector<16x128xf32>
    %6 = tpu.concatenate %1, %3, %5 in 0 : vector<16x128xf32>, vector<256x128xf32>, vector<16x128xf32> -> vector<288x128xf32>
    %c0_11 = arith.constant 0 : index
    %c0_12 = arith.constant 0 : index
    %7 = vector.load %arg5[%c0_11, %c0_12] : memref<128x128xf32, #tpu.memory_space<vmem>>, vector<128x128xf32>
    %cst = arith.constant dense<0.000000e+00> : vector<288x128xf32>
    %8 = tpu.matmul %6, %7, %cst {dimension_numbers = #tpu.dot_dimension_numbers<[1], [0], [0], [1], [0, 0, 1, 1], [], []>} : vector<288x128xf32>, vector<128x128xf32>, vector<288x128xf32> -> vector<288x128xf32>
    %c0_13 = arith.constant 0 : index
    %c0_14 = arith.constant 0 : index
    %9 = vector.load %arg6[%c0_13, %c0_14] : memref<1x128xf32, #tpu.memory_space<vmem>>, vector<1x128xf32>
    %10 = vector.broadcast %9 : vector<1x128xf32> to vector<288x128xf32>
    %11 = arith.addf %8, %10 : vector<288x128xf32>
    %12 = tpu.iota {dimensions = array<i32: 0>} : vector<288x1xi32>
    %c16_i32 = arith.constant 16 : i32
    %13 = vector.broadcast %c16_i32 : i32 to vector<288x1xi32>
    %14 = arith.cmpi sge, %12, %13 : vector<288x1xi32>
    %c0_i32 = arith.constant 0 : i32
    %15 = arith.cmpi sgt, %arg1, %c0_i32 : i32
    %16 = vector.broadcast %15 : i1 to vector<288x1xi1>
    %17 = arith.ori %14, %16 : vector<288x1xi1>
    %c272_i32 = arith.constant 272 : i32
    %18 = vector.broadcast %c272_i32 : i32 to vector<288x1xi32>
    %19 = arith.cmpi slt, %12, %18 : vector<288x1xi32>
    %c0_i32_15 = arith.constant 0 : i32
    %20 = arith.cmpi slt, %arg1, %c0_i32_15 : i32
    %21 = vector.broadcast %20 : i1 to vector<288x1xi1>
    %22 = arith.ori %19, %21 : vector<288x1xi1>
    %23 = arith.andi %17, %22 : vector<288x1xi1>
    %cst_16 = arith.constant 0.000000e+00 : f32
    %24 = vector.shape_cast %23 : vector<288x1xi1> to vector<288x1xi1>
    %25 = vector.broadcast %24 : vector<288x1xi1> to vector<288x128xi1>
    %26 = vector.broadcast %cst_16 : f32 to vector<288x128xf32>
    %27 = arith.select %25, %11, %26 : vector<288x128xi1>, vector<288x128xf32>
    %c1_i32 = arith.constant 1 : i32
    %28 = tpu.dynamic_rotate %27 by %c1_i32 dim 0 : vector<288x128xf32>, i32 -> vector<288x128xf32>
    %c287_i32 = arith.constant 287 : i32
    %29 = tpu.dynamic_rotate %27 by %c287_i32 dim 0 : vector<288x128xf32>, i32 -> vector<288x128xf32>
    %30 = vector.shape_cast %27 : vector<288x128xf32> to vector<18x16x128xf32>
    %31 = vector.shape_cast %28 : vector<288x128xf32> to vector<18x16x128xf32>
    %32 = vector.shape_cast %29 : vector<288x128xf32> to vector<18x16x128xf32>
    %33 = tpu.iota {dimensions = array<i32: 1>} : vector<1x16x1xi32>
    %c0_i32_17 = arith.constant 0 : i32
    %34 = vector.broadcast %c0_i32_17 : i32 to vector<1x16x1xi32>
    %35 = arith.cmpi sgt, %33, %34 : vector<1x16x1xi32>
    %cst_18 = arith.constant 0.000000e+00 : f32
    %36 = vector.shape_cast %35 : vector<1x16x1xi1> to vector<1x16x1xi1>
    %37 = vector.broadcast %36 : vector<1x16x1xi1> to vector<18x16x128xi1>
    %38 = vector.broadcast %cst_18 : f32 to vector<18x16x128xf32>
    %39 = arith.select %37, %31, %38 : vector<18x16x128xi1>, vector<18x16x128xf32>
    %c15_i32 = arith.constant 15 : i32
    %40 = vector.broadcast %c15_i32 : i32 to vector<1x16x1xi32>
    %41 = arith.cmpi slt, %33, %40 : vector<1x16x1xi32>
    %cst_19 = arith.constant 0.000000e+00 : f32
    %42 = vector.shape_cast %41 : vector<1x16x1xi1> to vector<1x16x1xi1>
    %43 = vector.broadcast %42 : vector<1x16x1xi1> to vector<18x16x128xi1>
    %44 = vector.broadcast %cst_19 : f32 to vector<18x16x128xf32>
    %45 = arith.select %43, %32, %44 : vector<18x16x128xi1>, vector<18x16x128xf32>
    %c0_20 = arith.constant 0 : index
    %c0_21 = arith.constant 0 : index
    %c0_22 = arith.constant 0 : index
    %46 = vector.load %arg7[%c0_20, %c0_21, %c0_22] : memref<3x3x128xf32, #tpu.memory_space<vmem>>, vector<3x3x128xf32>
    %c0_23 = arith.constant 0 : index
    %c0_24 = arith.constant 0 : index
    %47 = vector.load %arg8[%c0_23, %c0_24] : memref<1x128xf32, #tpu.memory_space<vmem>>, vector<1x128xf32>
    %48 = vector.extract_strided_slice %39 {offsets = [0, 0, 0], sizes = [16, 16, 128], strides = [1, 1, 1]} : vector<18x16x128xf32> to vector<16x16x128xf32>
    %49 = vector.extract_strided_slice %46 {offsets = [0, 0, 0], sizes = [1, 1, 128], strides = [1, 1, 1]} : vector<3x3x128xf32> to vector<1x1x128xf32>
    %50 = vector.shape_cast %49 : vector<1x1x128xf32> to vector<128xf32>
    %51 = vector.shape_cast %50 : vector<128xf32> to vector<1x1x128xf32>
    %52 = vector.broadcast %51 : vector<1x1x128xf32> to vector<16x16x128xf32>
    %53 = arith.mulf %48, %52 : vector<16x16x128xf32>
    %54 = vector.extract_strided_slice %30 {offsets = [0, 0, 0], sizes = [16, 16, 128], strides = [1, 1, 1]} : vector<18x16x128xf32> to vector<16x16x128xf32>
    %55 = vector.extract_strided_slice %46 {offsets = [0, 1, 0], sizes = [1, 1, 128], strides = [1, 1, 1]} : vector<3x3x128xf32> to vector<1x1x128xf32>
    %56 = vector.shape_cast %55 : vector<1x1x128xf32> to vector<128xf32>
    %57 = vector.shape_cast %56 : vector<128xf32> to vector<1x1x128xf32>
    %58 = vector.broadcast %57 : vector<1x1x128xf32> to vector<16x16x128xf32>
    %59 = arith.mulf %54, %58 : vector<16x16x128xf32>
    %60 = arith.addf %53, %59 : vector<16x16x128xf32>
    %61 = vector.extract_strided_slice %45 {offsets = [0, 0, 0], sizes = [16, 16, 128], strides = [1, 1, 1]} : vector<18x16x128xf32> to vector<16x16x128xf32>
    %62 = vector.extract_strided_slice %46 {offsets = [0, 2, 0], sizes = [1, 1, 128], strides = [1, 1, 1]} : vector<3x3x128xf32> to vector<1x1x128xf32>
    %63 = vector.shape_cast %62 : vector<1x1x128xf32> to vector<128xf32>
    %64 = vector.shape_cast %63 : vector<128xf32> to vector<1x1x128xf32>
    %65 = vector.broadcast %64 : vector<1x1x128xf32> to vector<16x16x128xf32>
    %66 = arith.mulf %61, %65 : vector<16x16x128xf32>
    %67 = arith.addf %60, %66 : vector<16x16x128xf32>
    %68 = vector.extract_strided_slice %39 {offsets = [1, 0, 0], sizes = [16, 16, 128], strides = [1, 1, 1]} : vector<18x16x128xf32> to vector<16x16x128xf32>
    %69 = vector.extract_strided_slice %46 {offsets = [1, 0, 0], sizes = [1, 1, 128], strides = [1, 1, 1]} : vector<3x3x128xf32> to vector<1x1x128xf32>
    %70 = vector.shape_cast %69 : vector<1x1x128xf32> to vector<128xf32>
    %71 = vector.shape_cast %70 : vector<128xf32> to vector<1x1x128xf32>
    %72 = vector.broadcast %71 : vector<1x1x128xf32> to vector<16x16x128xf32>
    %73 = arith.mulf %68, %72 : vector<16x16x128xf32>
    %74 = vector.extract_strided_slice %30 {offsets = [1, 0, 0], sizes = [16, 16, 128], strides = [1, 1, 1]} : vector<18x16x128xf32> to vector<16x16x128xf32>
    %75 = vector.extract_strided_slice %46 {offsets = [1, 1, 0], sizes = [1, 1, 128], strides = [1, 1, 1]} : vector<3x3x128xf32> to vector<1x1x128xf32>
    %76 = vector.shape_cast %75 : vector<1x1x128xf32> to vector<128xf32>
    %77 = vector.shape_cast %76 : vector<128xf32> to vector<1x1x128xf32>
    %78 = vector.broadcast %77 : vector<1x1x128xf32> to vector<16x16x128xf32>
    %79 = arith.mulf %74, %78 : vector<16x16x128xf32>
    %80 = arith.addf %73, %79 : vector<16x16x128xf32>
    %81 = vector.extract_strided_slice %45 {offsets = [1, 0, 0], sizes = [16, 16, 128], strides = [1, 1, 1]} : vector<18x16x128xf32> to vector<16x16x128xf32>
    %82 = vector.extract_strided_slice %46 {offsets = [1, 2, 0], sizes = [1, 1, 128], strides = [1, 1, 1]} : vector<3x3x128xf32> to vector<1x1x128xf32>
    %83 = vector.shape_cast %82 : vector<1x1x128xf32> to vector<128xf32>
    %84 = vector.shape_cast %83 : vector<128xf32> to vector<1x1x128xf32>
    %85 = vector.broadcast %84 : vector<1x1x128xf32> to vector<16x16x128xf32>
    %86 = arith.mulf %81, %85 : vector<16x16x128xf32>
    %87 = arith.addf %80, %86 : vector<16x16x128xf32>
    %88 = vector.extract_strided_slice %39 {offsets = [2, 0, 0], sizes = [16, 16, 128], strides = [1, 1, 1]} : vector<18x16x128xf32> to vector<16x16x128xf32>
    %89 = vector.extract_strided_slice %46 {offsets = [2, 0, 0], sizes = [1, 1, 128], strides = [1, 1, 1]} : vector<3x3x128xf32> to vector<1x1x128xf32>
    %90 = vector.shape_cast %89 : vector<1x1x128xf32> to vector<128xf32>
    %91 = vector.shape_cast %90 : vector<128xf32> to vector<1x1x128xf32>
    %92 = vector.broadcast %91 : vector<1x1x128xf32> to vector<16x16x128xf32>
    %93 = arith.mulf %88, %92 : vector<16x16x128xf32>
    %94 = vector.extract_strided_slice %30 {offsets = [2, 0, 0], sizes = [16, 16, 128], strides = [1, 1, 1]} : vector<18x16x128xf32> to vector<16x16x128xf32>
    %95 = vector.extract_strided_slice %46 {offsets = [2, 1, 0], sizes = [1, 1, 128], strides = [1, 1, 1]} : vector<3x3x128xf32> to vector<1x1x128xf32>
    %96 = vector.shape_cast %95 : vector<1x1x128xf32> to vector<128xf32>
    %97 = vector.shape_cast %96 : vector<128xf32> to vector<1x1x128xf32>
    %98 = vector.broadcast %97 : vector<1x1x128xf32> to vector<16x16x128xf32>
    %99 = arith.mulf %94, %98 : vector<16x16x128xf32>
    %100 = arith.addf %93, %99 : vector<16x16x128xf32>
    %101 = vector.extract_strided_slice %45 {offsets = [2, 0, 0], sizes = [16, 16, 128], strides = [1, 1, 1]} : vector<18x16x128xf32> to vector<16x16x128xf32>
    %102 = vector.extract_strided_slice %46 {offsets = [2, 2, 0], sizes = [1, 1, 128], strides = [1, 1, 1]} : vector<3x3x128xf32> to vector<1x1x128xf32>
    %103 = vector.shape_cast %102 : vector<1x1x128xf32> to vector<128xf32>
    %104 = vector.shape_cast %103 : vector<128xf32> to vector<1x1x128xf32>
    %105 = vector.broadcast %104 : vector<1x1x128xf32> to vector<16x16x128xf32>
    %106 = arith.mulf %101, %105 : vector<16x16x128xf32>
    %107 = arith.addf %100, %106 : vector<16x16x128xf32>
    %108 = arith.addf %67, %87 : vector<16x16x128xf32>
    %109 = vector.shape_cast %47 : vector<1x128xf32> to vector<1x1x128xf32>
    %110 = vector.broadcast %109 : vector<1x1x128xf32> to vector<16x16x128xf32>
    %111 = arith.addf %107, %110 : vector<16x16x128xf32>
    %112 = arith.addf %108, %111 : vector<16x16x128xf32>
    %cst_25 = arith.constant 5.000000e-01 : f32
    %113 = vector.broadcast %cst_25 : f32 to vector<16x16x128xf32>
    %114 = arith.mulf %113, %112 : vector<16x16x128xf32>
    %cst_26 = arith.constant 0.707106769 : f32
    %115 = vector.broadcast %cst_26 : f32 to vector<16x16x128xf32>
    %116 = arith.mulf %112, %115 : vector<16x16x128xf32>
    %117 = math.erf %116 : vector<16x16x128xf32>
    %cst_27 = arith.constant 1.000000e+00 : f32
    %118 = vector.broadcast %cst_27 : f32 to vector<16x16x128xf32>
    %119 = arith.addf %118, %117 : vector<16x16x128xf32>
    %120 = arith.mulf %114, %119 : vector<16x16x128xf32>
    %121 = vector.shape_cast %120 : vector<16x16x128xf32> to vector<256x128xf32>
    %c0_28 = arith.constant 0 : index
    %c0_29 = arith.constant 0 : index
    %122 = vector.load %arg9[%c0_28, %c0_29] : memref<128x128xf32, #tpu.memory_space<vmem>>, vector<128x128xf32>
    %cst_30 = arith.constant dense<0.000000e+00> : vector<256x128xf32>
    %123 = tpu.matmul %121, %122, %cst_30 {dimension_numbers = #tpu.dot_dimension_numbers<[1], [0], [0], [1], [0, 0, 1, 1], [], []>} : vector<256x128xf32>, vector<128x128xf32>, vector<256x128xf32> -> vector<256x128xf32>
    %c0_31 = arith.constant 0 : index
    %c0_32 = arith.constant 0 : index
    %124 = vector.load %arg10[%c0_31, %c0_32] : memref<1x128xf32, #tpu.memory_space<vmem>>, vector<1x128xf32>
    %125 = vector.broadcast %124 : vector<1x128xf32> to vector<256x128xf32>
    %126 = arith.addf %123, %125 : vector<256x128xf32>
    %127 = vector.shape_cast %126 : vector<256x128xf32> to vector<1x16x16x128xf32>
    %c0_33 = arith.constant 0 : index
    %c0_34 = arith.constant 0 : index
    %c0_35 = arith.constant 0 : index
    %c0_36 = arith.constant 0 : index
    %128 = vector.load %arg11[%c0_33, %c0_34, %c0_35, %c0_36] : memref<1x16x16x128xf32, #tpu.memory_space<vmem>>, vector<1x16x16x128xf32>
    tpu.vector_store %arg11[%c0_33, %c0_34, %c0_35, %c0_36], %127 {strides = array<i32>} : memref<1x16x16x128xf32, #tpu.memory_space<vmem>>, vector<1x16x16x128xf32>,
    return
  }
  func.func @transform_0(%arg0: i32, %arg1: i32) -> (i32, i32, i32, i32) {
    %c16_i32 = arith.constant 16 : i32
    %0 = arith.muli %arg1, %c16_i32 : i32
    %c1_i32 = arith.constant 1 : i32
    %1 = arith.subi %0, %c1_i32 : i32
    %c0_i32 = arith.constant 0 : i32
    %2 = arith.maxsi %1, %c0_i32 : i32
    %c0_i32_0 = arith.constant 0 : i32
    %c0_i32_1 = arith.constant 0 : i32
    %c0_i32_2 = arith.constant 0 : i32
    return %arg0, %2, %c0_i32_0, %c0_i32_1 : i32, i32, i32, i32
  }
  func.func @transform_1(%arg0: i32, %arg1: i32) -> (i32, i32, i32, i32) {
    %c0_i32 = arith.constant 0 : i32
    %c0_i32_0 = arith.constant 0 : i32
    %c0_i32_1 = arith.constant 0 : i32
    return %arg0, %arg1, %c0_i32, %c0_i32_0 : i32, i32, i32, i32
  }
  func.func @transform_2(%arg0: i32, %arg1: i32) -> (i32, i32, i32, i32) {
    %c16_i32 = arith.constant 16 : i32
    %0 = arith.muli %arg1, %c16_i32 : i32
    %c16_i32_0 = arith.constant 16 : i32
    %1 = arith.addi %0, %c16_i32_0 : i32
    %c15_i32 = arith.constant 15 : i32
    %2 = arith.minsi %1, %c15_i32 : i32
    %c0_i32 = arith.constant 0 : i32
    %c0_i32_1 = arith.constant 0 : i32
    %c0_i32_2 = arith.constant 0 : i32
    return %arg0, %2, %c0_i32, %c0_i32_1 : i32, i32, i32, i32
  }
  func.func @transform_3(%arg0: i32, %arg1: i32) -> (i32, i32) {
    %c0_i32 = arith.constant 0 : i32
    %c0_i32_0 = arith.constant 0 : i32
    %c0_i32_1 = arith.constant 0 : i32
    return %c0_i32, %c0_i32_0 : i32, i32
  }
  func.func @transform_4(%arg0: i32, %arg1: i32) -> (i32, i32) {
    %c0_i32 = arith.constant 0 : i32
    %c0_i32_0 = arith.constant 0 : i32
    %c0_i32_1 = arith.constant 0 : i32
    return %c0_i32, %c0_i32_0 : i32, i32
  }
  func.func @transform_5(%arg0: i32, %arg1: i32) -> (i32, i32, i32) {
    %c0_i32 = arith.constant 0 : i32
    %c0_i32_0 = arith.constant 0 : i32
    %c0_i32_1 = arith.constant 0 : i32
    %c0_i32_2 = arith.constant 0 : i32
    return %c0_i32, %c0_i32_0, %c0_i32_1 : i32, i32, i32
  }
  func.func @transform_6(%arg0: i32, %arg1: i32) -> (i32, i32) {
    %c0_i32 = arith.constant 0 : i32
    %c0_i32_0 = arith.constant 0 : i32
    %c0_i32_1 = arith.constant 0 : i32
    return %c0_i32, %c0_i32_0 : i32, i32
  }
  func.func @transform_7(%arg0: i32, %arg1: i32) -> (i32, i32) {
    %c0_i32 = arith.constant 0 : i32
    %c0_i32_0 = arith.constant 0 : i32
    %c0_i32_1 = arith.constant 0 : i32
    return %c0_i32, %c0_i32_0 : i32, i32
  }
  func.func @transform_8(%arg0: i32, %arg1: i32) -> (i32, i32) {
    %c0_i32 = arith.constant 0 : i32
    %c0_i32_0 = arith.constant 0 : i32
    %c0_i32_1 = arith.constant 0 : i32
    return %c0_i32, %c0_i32_0 : i32, i32
  }
  func.func @transform_9(%arg0: i32, %arg1: i32) -> (i32, i32, i32, i32) {
    %c0_i32 = arith.constant 0 : i32
    %c0_i32_0 = arith.constant 0 : i32
    %c0_i32_1 = arith.constant 0 : i32
    return %arg0, %arg1, %c0_i32, %c0_i32_0 : i32, i32, i32, i32
  }
}

</mosaic_0001>

<llo_original>
// kernel: tpu_custom_call.1
$region0: #{tpu_custom_call.1}
  #allocation0 [shape = 'u32[]', space=smem, size = 0x4, offset = 0x4, fixed_abs, tag = 'smem constant byte address 0x4 - core index']
  #allocation1 [shape = 'u32[144,128]{1,0:T(1,128)}', space=vmem, size = 0x12000, scoped, tag = 'internal scratch']
  %s0 = inlined_call_operand.hbm [shape: f32[2,16,16,128], index: 0, kind: input, shape index: {}]
  %s1 = inlined_call_operand.hbm [shape: f32[2,16,16,128], index: 1, kind: input, shape index: {}]
  %s2 = inlined_call_operand.hbm [shape: f32[2,16,16,128], index: 2, kind: input, shape index: {}]
  %s3 = inlined_call_operand.hbm [shape: f32[128,128], index: 3, kind: input, shape index: {}]
  %s4 = inlined_call_operand.vmem [shape: f32[1,128], index: 4, kind: input, shape index: {}]
  %s5 = inlined_call_operand.vmem [shape: f32[3,3,128], index: 5, kind: input, shape index: {}]
  %s6 = inlined_call_operand.vmem [shape: f32[1,128], index: 6, kind: input, shape index: {}]
  %s7 = inlined_call_operand.hbm [shape: f32[128,128], index: 7, kind: input, shape index: {}]
  %s8 = inlined_call_operand.vmem [shape: f32[1,128], index: 8, kind: input, shape index: {}]
  %s9 = inlined_call_operand.hbm [shape: f32[2,16,16,128], index: 9, kind: output, shape index: {}]
  %s10 = sld [smem:[#allocation0]]
  $region89: #{tpu_custom_call.1} parent=0
    _
  %s12 = ssub.s32 1, %s10
  %s13 = scalar_select 0, %s12, %s10
  $region1: #{tpu_custom_call.1} parent=0
    #allocation2 [shape = 'u8[16384]{0}', space=vmem, size = 0x4000, scoped, tag = 'input window, operand 0']
    #allocation3 [shape = 's32[2]{0}', space=sflag, size = 0x8, scoped, tag = 'scoped memory for tpu_custom_call.1']
    #allocation4 [shape = 's32[2]{0}', space=sflag, size = 0x8, scoped, tag = 'scoped memory for tpu_custom_call.1']
    #allocation5 [shape = 'u8[262144]{0}', space=vmem, size = 0x40000, scoped, tag = 'input window, operand 1']
    #allocation6 [shape = 's32[2]{0}', space=sflag, size = 0x8, scoped, tag = 'scoped memory for tpu_custom_call.1']
    #allocation7 [shape = 'u8[16384]{0}', space=vmem, size = 0x4000, scoped, tag = 'input window, operand 2']
    #allocation8 [shape = 'u8[65536]{0}', space=vmem, size = 0x10000, scoped, tag = 'input window, operand 3, single buffered']
    #allocation9 [shape = 's32[1]{0}', space=sflag, size = 0x4, scoped, tag = 'scoped memory for tpu_custom_call.1']
    #allocation10 [shape = 'u8[65536]{0}', space=vmem, size = 0x10000, scoped, tag = 'input window, operand 7, single buffered']
    #allocation11 [shape = 'u8[262144]{0}', space=vmem, size = 0x40000, scoped, tag = 'output window, operand 0']
    %14 = vsyncpa [#allocation3], 0
    %s15 = scalar_lea.sflag [#allocation3], 1
    %16 = vsyncpa %s15, 0
    %17 = vsyncpa [#allocation6], 0
    %s18 = scalar_lea.sflag [#allocation6], 1
    %19 = vsyncpa %s18, 0
    %20 = vsyncpa [#allocation9], 0
    %21 = vsyncpa [#allocation4], 0
    %s22 = scalar_lea.sflag [#allocation4], 1
    %23 = vsyncpa %s22, 0
    loop: start=0, step=1, limit=4
    $region2: #{tpu_custom_call.1} parent=1 // loop_pre_header
      _
    $region3: #{tpu_custom_call.1} parent=1 // loop_header
      %s25 = sphi 0, %s29
      %p26 = scmp.ge.s32.totalorder %s25, 4
      %s32 = sphi 0, %s44
      %s33 = sphi 0, %s40
      %s34 = sphi 0, %s32
      %s35 = sphi 0, %s33
      %s36 = sphi 0, %s34
      %s37 = sphi 0, %s35
      %s57 = sphi 0, %s59
      %s60 = sphi 0, %s57
      %s61 = sphi 0, %s60
      %s77 = sphi 0, %s61
      %s85 = sphi 0, %s87
      %s88 = sphi 0, %s85
      %s89 = sphi 0, %s88
      %s105 = sphi 0, %s89
      %s121 = sphi 0, %s123
      %s124 = sphi 0, %s121
      %s125 = sphi 0, %s124
      %s141 = sphi 0, %s125
      %s145 = sphi 0, %s145
      %s147 = sphi 0, %s145
      %s148 = sphi 0, %s147
      %s162 = sphi 0, %s148
      %s166 = sphi 0, %s166
      %s168 = sphi 0, %s166
      %s169 = sphi 0, %s168
      %s183 = sphi 0, %s169
      %s187 = sphi 0, %s187
      %s189 = sphi 0, %s187
      %s190 = sphi 0, %s189
      %s204 = sphi 0, %s190
      %s208 = sphi 0, %s208
      %s210 = sphi 0, %s208
      %s211 = sphi 0, %s210
      %s225 = sphi 0, %s211
      %s229 = sphi 0, %s229
      %s231 = sphi 0, %s229
      %s232 = sphi 0, %s231
      %s246 = sphi 0, %s232
      %s250 = sphi 0, %s250
      %s252 = sphi 0, %s250
      %s253 = sphi 0, %s252
      %s267 = sphi 0, %s253
      %s275 = sphi 0, %s277
      %s278 = sphi 0, %s275
      %s279 = sphi 0, %s278
      %s295 = sphi 0, %s279
    $region4: #{tpu_custom_call.1} parent=1 // loop_header_branch
      %28 = sbr.rel (%p26) target = $region8
    $region5: #{tpu_custom_call.1} parent=1 // loop_body
      %s30 = ssub.s32 %s25, 1
      %s31 = ssub.s32 %s25, 2
      %s38 = sadd.s32 1, %s33
      %p39 = scmp.ge.s32.totalorder %s38, 1
      %s40 = scalar_select %p39, 0, %s38
      %s41 = sadd.s32 1, %s32
      %s42 = scalar_select %p39, %s41, %s32
      %p43 = scmp.ge.s32.totalorder %s42, 2
      %s44 = scalar_select %p43, 0, %s42
      %s45 = smul.u32 %s33, 16
      %s46 = ssub.s32 %s45, 1
      %p47 = scmp.gt.s32.totalorder %s46, 0
      %s48 = scalar_select %p47, %s46, 0
      %s49 = smul.u32 %s40, 16
      %s50 = ssub.s32 %s49, 1
      %p51 = scmp.gt.s32.totalorder %s50, 0
      %s52 = scalar_select %p51, %s50, 0
      %s53 = ssub.s32 %s32, %s44
      %s54 = ssub.s32 %s48, %s52
      %s55 = sor.u32 %s53, %s54
      %p56 = scmp.eq.s32.totalorder %s55, 0
      %s58 = sadd.s32 %s57, 1
      %s59 = scalar_select %p56, %s57, %s58
      %p62 = pneg %p56
      %p63 = scmp.eq.s32.totalorder %s25, 1
      %p64 = por %p62, %p63
      %p65 = scmp.ne.s32.totalorder %s57, %s60
      %p66 = scmp.eq.s32.totalorder %s25, 0
      %p67 = por %p65, %p66
      %p68 = scmp.ne.s32.totalorder %s57, %s60
      %p69 = scmp.eq.s32.totalorder %s30, 1
      %p70 = por %p68, %p69
      %p71 = scmp.ne.s32.totalorder %s60, %s61
      %p72 = scmp.eq.s32.totalorder %s30, 0
      %p73 = por %p71, %p72
      %p74 = scmp.ne.s32.totalorder %s60, %s61
      %p75 = scmp.eq.s32.totalorder %s31, 1
      %p76 = por %p74, %p75
      %p78 = scmp.ne.s32.totalorder %s61, %s77
      %p79 = scmp.eq.s32.totalorder %s31, 0
      %p80 = por %p78, %p79
      %s81 = ssub.s32 %s32, %s44
      %s82 = ssub.s32 %s33, %s40
      %s83 = sor.u32 %s81, %s82
      %p84 = scmp.eq.s32.totalorder %s83, 0
      %s86 = sadd.s32 %s85, 1
      %s87 = scalar_select %p84, %s85, %s86
      %p90 = pneg %p84
      %p91 = scmp.eq.s32.totalorder %s25, 1
      %p92 = por %p90, %p91
      %p93 = scmp.ne.s32.totalorder %s85, %s88
      %p94 = scmp.eq.s32.totalorder %s25, 0
      %p95 = por %p93, %p94
      %p96 = scmp.ne.s32.totalorder %s85, %s88
      %p97 = scmp.eq.s32.totalorder %s30, 1
      %p98 = por %p96, %p97
      %p99 = scmp.ne.s32.totalorder %s88, %s89
      %p100 = scmp.eq.s32.totalorder %s30, 0
      %p101 = por %p99, %p100
      %p102 = scmp.ne.s32.totalorder %s88, %s89
      %p103 = scmp.eq.s32.totalorder %s31, 1
      %p104 = por %p102, %p103
      %p106 = scmp.ne.s32.totalorder %s89, %s105
      %p107 = scmp.eq.s32.totalorder %s31, 0
      %p108 = por %p106, %p107
      %s109 = smul.u32 %s33, 16
      %s110 = sadd.s32 %s109, 16
      %p111 = scmp.lt.s32.totalorder %s110, 15
      %s112 = scalar_select %p111, %s110, 15
      %s113 = smul.u32 %s40, 16
      %s114 = sadd.s32 %s113, 16
      %p115 = scmp.lt.s32.totalorder %s114, 15
      %s116 = scalar_select %p115, %s114, 15
      %s117 = ssub.s32 %s32, %s44
      %s118 = ssub.s32 %s112, %s116
      %s119 = sor.u32 %s117, %s118
      %p120 = scmp.eq.s32.totalorder %s119, 0
      %s122 = sadd.s32 %s121, 1
      %s123 = scalar_select %p120, %s121, %s122
      %p126 = pneg %p120
      %p127 = scmp.eq.s32.totalorder %s25, 1
      %p128 = por %p126, %p127
      %p129 = scmp.ne.s32.totalorder %s121, %s124
      %p130 = scmp.eq.s32.totalorder %s25, 0
      %p131 = por %p129, %p130
      %p132 = scmp.ne.s32.totalorder %s121, %s124
      %p133 = scmp.eq.s32.totalorder %s30, 1
      %p134 = por %p132, %p133
      %p135 = scmp.ne.s32.totalorder %s124, %s125
      %p136 = scmp.eq.s32.totalorder %s30, 0
      %p137 = por %p135, %p136
      %p138 = scmp.ne.s32.totalorder %s124, %s125
      %p139 = scmp.eq.s32.totalorder %s31, 1
      %p140 = por %p138, %p139
      %p142 = scmp.ne.s32.totalorder %s125, %s141
      %p143 = scmp.eq.s32.totalorder %s31, 0
      %p144 = por %p142, %p143
      %s146 = sadd.s32 %s145, 1
      %p149 = scmp.eq.s32.totalorder %s25, 1
      %p150 = scmp.ne.s32.totalorder %s145, %s147
      %p151 = scmp.eq.s32.totalorder %s25, 0
      %p152 = por %p150, %p151
      %p153 = scmp.ne.s32.totalorder %s145, %s147
      %p154 = scmp.eq.s32.totalorder %s30, 1
      %p155 = por %p153, %p154
      %p156 = scmp.ne.s32.totalorder %s147, %s148
      %p157 = scmp.eq.s32.totalorder %s30, 0
      %p158 = por %p156, %p157
      %p159 = scmp.ne.s32.totalorder %s147, %s148
      %p160 = scmp.eq.s32.totalorder %s31, 1
      %p161 = por %p159, %p160
      %p163 = scmp.ne.s32.totalorder %s148, %s162
      %p164 = scmp.eq.s32.totalorder %s31, 0
      %p165 = por %p163, %p164
      %s167 = sadd.s32 %s166, 1
      %p170 = scmp.eq.s32.totalorder %s25, 1
      %p171 = scmp.ne.s32.totalorder %s166, %s168
      %p172 = scmp.eq.s32.totalorder %s25, 0
      %p173 = por %p171, %p172
      %p174 = scmp.ne.s32.totalorder %s166, %s168
      %p175 = scmp.eq.s32.totalorder %s30, 1
      %p176 = por %p174, %p175
      %p177 = scmp.ne.s32.totalorder %s168, %s169
      %p178 = scmp.eq.s32.totalorder %s30, 0
      %p179 = por %p177, %p178
      %p180 = scmp.ne.s32.totalorder %s168, %s169
      %p181 = scmp.eq.s32.totalorder %s31, 1
      %p182 = por %p180, %p181
      %p184 = scmp.ne.s32.totalorder %s169, %s183
      %p185 = scmp.eq.s32.totalorder %s31, 0
      %p186 = por %p184, %p185
      %s188 = sadd.s32 %s187, 1
      %p191 = scmp.eq.s32.totalorder %s25, 1
      %p192 = scmp.ne.s32.totalorder %s187, %s189
      %p193 = scmp.eq.s32.totalorder %s25, 0
      %p194 = por %p192, %p193
      %p195 = scmp.ne.s32.totalorder %s187, %s189
      %p196 = scmp.eq.s32.totalorder %s30, 1
      %p197 = por %p195, %p196
      %p198 = scmp.ne.s32.totalorder %s189, %s190
      %p199 = scmp.eq.s32.totalorder %s30, 0
      %p200 = por %p198, %p199
      %p201 = scmp.ne.s32.totalorder %s189, %s190
      %p202 = scmp.eq.s32.totalorder %s31, 1
      %p203 = por %p201, %p202
      %p205 = scmp.ne.s32.totalorder %s190, %s204
      %p206 = scmp.eq.s32.totalorder %s31, 0
      %p207 = por %p205, %p206
      %s209 = sadd.s32 %s208, 1
      %p212 = scmp.eq.s32.totalorder %s25, 1
      %p213 = scmp.ne.s32.totalorder %s208, %s210
      %p214 = scmp.eq.s32.totalorder %s25, 0
      %p215 = por %p213, %p214
      %p216 = scmp.ne.s32.totalorder %s208, %s210
      %p217 = scmp.eq.s32.totalorder %s30, 1
      %p218 = por %p216, %p217
      %p219 = scmp.ne.s32.totalorder %s210, %s211
      %p220 = scmp.eq.s32.totalorder %s30, 0
      %p221 = por %p219, %p220
      %p222 = scmp.ne.s32.totalorder %s210, %s211
      %p223 = scmp.eq.s32.totalorder %s31, 1
      %p224 = por %p222, %p223
      %p226 = scmp.ne.s32.totalorder %s211, %s225
      %p227 = scmp.eq.s32.totalorder %s31, 0
      %p228 = por %p226, %p227
      %s230 = sadd.s32 %s229, 1
      %p233 = scmp.eq.s32.totalorder %s25, 1
      %p234 = scmp.ne.s32.totalorder %s229, %s231
      %p235 = scmp.eq.s32.totalorder %s25, 0
      %p236 = por %p234, %p235
      %p237 = scmp.ne.s32.totalorder %s229, %s231
      %p238 = scmp.eq.s32.totalorder %s30, 1
      %p239 = por %p237, %p238
      %p240 = scmp.ne.s32.totalorder %s231, %s232
      %p241 = scmp.eq.s32.totalorder %s30, 0
      %p242 = por %p240, %p241
      %p243 = scmp.ne.s32.totalorder %s231, %s232
      %p244 = scmp.eq.s32.totalorder %s31, 1
      %p245 = por %p243, %p244
      %p247 = scmp.ne.s32.totalorder %s232, %s246
      %p248 = scmp.eq.s32.totalorder %s31, 0
      %p249 = por %p247, %p248
      %s251 = sadd.s32 %s250, 1
      %p254 = scmp.eq.s32.totalorder %s25, 1
      %p255 = scmp.ne.s32.totalorder %s250, %s252
      %p256 = scmp.eq.s32.totalorder %s25, 0
      %p257 = por %p255, %p256
      %p258 = scmp.ne.s32.totalorder %s250, %s252
      %p259 = scmp.eq.s32.totalorder %s30, 1
      %p260 = por %p258, %p259
      %p261 = scmp.ne.s32.totalorder %s252, %s253
      %p262 = scmp.eq.s32.totalorder %s30, 0
      %p263 = por %p261, %p262
      %p264 = scmp.ne.s32.totalorder %s252, %s253
      %p265 = scmp.eq.s32.totalorder %s31, 1
      %p266 = por %p264, %p265
      %p268 = scmp.ne.s32.totalorder %s253, %s267
      %p269 = scmp.eq.s32.totalorder %s31, 0
      %p270 = por %p268, %p269
      %s271 = ssub.s32 %s32, %s44
      %s272 = ssub.s32 %s33, %s40
      %s273 = sor.u32 %s271, %s272
      %p274 = scmp.eq.s32.totalorder %s273, 0
      %s276 = sadd.s32 %s275, 1
      %s277 = scalar_select %p274, %s275, %s276
      %p280 = pneg %p274
      %p281 = scmp.eq.s32.totalorder %s25, 1
      %p282 = por %p280, %p281
      %p283 = scmp.ne.s32.totalorder %s275, %s278
      %p284 = scmp.eq.s32.totalorder %s25, 0
      %p285 = por %p283, %p284
      %p286 = scmp.ne.s32.totalorder %s275, %s278
      %p287 = scmp.eq.s32.totalorder %s30, 1
      %p288 = por %p286, %p287
      %p289 = scmp.ne.s32.totalorder %s278, %s279
      %p290 = scmp.eq.s32.totalorder %s30, 0
      %p291 = por %p289, %p290
      %p292 = scmp.ne.s32.totalorder %s278, %s279
      %p293 = scmp.eq.s32.totalorder %s31, 1
      %p294 = por %p292, %p293
      %p296 = scmp.ne.s32.totalorder %s279, %s295
      %p297 = scmp.eq.s32.totalorder %s31, 0
      %p298 = por %p296, %p297
      %p299 = scmp.le.s32.totalorder 1, %s25
      %p300 = scmp.lt.s32.totalorder %s25, 3
      %p301 = pnand %p299, %p300
      %p302 = pneg %p301
      // Predicated region
      $region9: #{tpu_custom_call.1} parent=5 // pred_check
        _
      $region10: #{tpu_custom_call.1} parent=5 // pred_check_branch
        %304 = sbr.rel (%p301) target = $region12
      $region11: #{tpu_custom_call.1} parent=5 // pred_region
        %s305 = ssub.s32 %s25, 1
        // Predicated region
        $region13: #{tpu_custom_call.1} parent=11 // pred_check
          %p306 = pneg %p158
        $region14: #{tpu_custom_call.1} parent=11 // pred_check_branch
          %308 = sbr.rel (%p306) target = $region16
        $region15: #{tpu_custom_call.1} parent=11 // pred_region
          %s310 = ssub.s32 2048, 2048
          %311 = vsyncadd [#allocation9], %s310
          %s312 = sshll.u32 [#allocation8], 4
          %s313 = int_to_ptr.vmem [resolvable:$true] %s312
          %318 = dma.hbm_to_vmem [thread:$0]  %s3, 2048, %s313, [#allocation9], 128, 128, 8
        $region16: #{tpu_custom_call.1} parent=11 // pred_fallthru
          _
        // Predicated region
        $region17: #{tpu_custom_call.1} parent=11 // pred_check
          %p319 = pneg %p179
        $region18: #{tpu_custom_call.1} parent=11 // pred_check_branch
          %321 = sbr.rel (%p319) target = $region20
        $region19: #{tpu_custom_call.1} parent=11 // pred_region
          _
        $region20: #{tpu_custom_call.1} parent=11 // pred_fallthru
          _
        // Predicated region
        $region21: #{tpu_custom_call.1} parent=11 // pred_check
          %p322 = pneg %p200
        $region22: #{tpu_custom_call.1} parent=11 // pred_check_branch
          %324 = sbr.rel (%p322) target = $region24
        $region23: #{tpu_custom_call.1} parent=11 // pred_region
          _
        $region24: #{tpu_custom_call.1} parent=11 // pred_fallthru
          _
        // Predicated region
        $region25: #{tpu_custom_call.1} parent=11 // pred_check
          %p325 = pneg %p221
        $region26: #{tpu_custom_call.1} parent=11 // pred_check_branch
          %327 = sbr.rel (%p325) target = $region28
        $region27: #{tpu_custom_call.1} parent=11 // pred_region
          _
        $region28: #{tpu_custom_call.1} parent=11 // pred_fallthru
          _
        // Predicated region
        $region29: #{tpu_custom_call.1} parent=11 // pred_check
          %p328 = pneg %p242
        $region30: #{tpu_custom_call.1} parent=11 // pred_check_branch
          %330 = sbr.rel (%p328) target = $region32
        $region31: #{tpu_custom_call.1} parent=11 // pred_region
          %s332 = ssub.s32 2048, 2048
          %333 = vsyncadd [#allocation9], %s332
          %s334 = sshll.u32 [#allocation10], 4
          %s335 = int_to_ptr.vmem [resolvable:$true] %s334
          %340 = dma.hbm_to_vmem [thread:$0]  %s7, 2048, %s335, [#allocation9], 128, 128, 8
        $region32: #{tpu_custom_call.1} parent=11 // pred_fallthru
          _
        // Predicated region
        $region33: #{tpu_custom_call.1} parent=11 // pred_check
          %p341 = pneg %p263
        $region34: #{tpu_custom_call.1} parent=11 // pred_check_branch
          %343 = sbr.rel (%p341) target = $region36
        $region35: #{tpu_custom_call.1} parent=11 // pred_region
          _
        $region36: #{tpu_custom_call.1} parent=11 // pred_fallthru
          _
      $region12: #{tpu_custom_call.1} parent=5 // pred_fallthru
        _
      %p344 = scmp.lt.s32.totalorder %s25, 2
      // Predicated region
      $region37: #{tpu_custom_call.1} parent=5 // pred_check
        %p345 = pneg %p344
      $region38: #{tpu_custom_call.1} parent=5 // pred_check_branch
        %347 = sbr.rel (%p345) target = $region40
      $region39: #{tpu_custom_call.1} parent=5 // pred_region
        // Predicated region
        $region41: #{tpu_custom_call.1} parent=39 // pred_check
          %p348 = pneg %p67
        $region42: #{tpu_custom_call.1} parent=39 // pred_check_branch
          %350 = sbr.rel (%p348) target = $region44
        $region43: #{tpu_custom_call.1} parent=39 // pred_region
          %s351 = sand.u32 %s57, 1
          %s352 = scalar_lea.sflag [#allocation3], %s351
          %s353 = sand.u32 %s57, 1
          %s354 = smul.addr %s353, 16
          %s355 = scalar_lea.vmem [#allocation2], %s354
          %s356 = smul.u32 %s33, 16
          %s357 = ssub.s32 %s356, 1
          %p358 = scmp.gt.s32.totalorder %s357, 0
          %s359 = scalar_select %p358, %s357, 0
          %s361 = ssub.s32 256, 256
          %362 = vsyncadd %s352, %s361
          %s363 = smul.addr %s359, 2
          %s364 = smul.addr %s32, 32
          %s365 = sadd.s32 %s363, %s364
          %s366 = smul.addr %s365, 128
          %s367 = scalar_lea.hbm %s0, %s366
          %s368 = sshll.u32 %s355, 4
          %s369 = int_to_ptr.vmem [resolvable:$true] %s368
          %374 = dma.hbm_to_vmem [thread:$0]  %s367, 256, %s369, %s352, 128, 128, 8
        $region44: #{tpu_custom_call.1} parent=39 // pred_fallthru
          _
        // Predicated region
        $region45: #{tpu_custom_call.1} parent=39 // pred_check
          %p375 = pneg %p95
        $region46: #{tpu_custom_call.1} parent=39 // pred_check_branch
          %377 = sbr.rel (%p375) target = $region48
        $region47: #{tpu_custom_call.1} parent=39 // pred_region
          %s378 = sand.u32 %s25, 1
          %s379 = scalar_lea.sflag [#allocation6], %s378
          %s380 = sand.u32 %s85, 1
          %s381 = smul.addr %s380, 256
          %s382 = scalar_lea.vmem [#allocation5], %s381
          %s383 = smul.u32 16, %s33
          %s385 = ssub.s32 4096, 4096
          %386 = vsyncadd %s379, %s385
          %s387 = smul.addr %s383, 2
          %s388 = smul.addr %s32, 32
          %s389 = sadd.s32 %s387, %s388
          %s390 = smul.addr %s389, 128
          %s391 = scalar_lea.hbm %s1, %s390
          %s392 = sshll.u32 %s382, 4
          %s393 = int_to_ptr.vmem [resolvable:$true] %s392
          %398 = dma.hbm_to_vmem [thread:$0]  %s391, 4096, %s393, %s379, 128, 128, 8
        $region48: #{tpu_custom_call.1} parent=39 // pred_fallthru
          _
        // Predicated region
        $region49: #{tpu_custom_call.1} parent=39 // pred_check
          %p399 = pneg %p131
        $region50: #{tpu_custom_call.1} parent=39 // pred_check_branch
          %401 = sbr.rel (%p399) target = $region52
        $region51: #{tpu_custom_call.1} parent=39 // pred_region
          %s402 = sand.u32 %s25, 1
          %s403 = scalar_lea.sflag [#allocation6], %s402
          %s404 = sand.u32 %s121, 1
          %s405 = smul.addr %s404, 16
          %s406 = scalar_lea.vmem [#allocation7], %s405
          %s407 = smul.u32 %s33, 16
          %s408 = sadd.s32 %s407, 16
          %p409 = scmp.lt.s32.totalorder %s408, 15
          %s410 = scalar_select %p409, %s408, 15
          %s412 = ssub.s32 256, 256
          %413 = vsyncadd %s403, %s412
          %s414 = smul.addr %s410, 2
          %s415 = smul.addr %s32, 32
          %s416 = sadd.s32 %s414, %s415
          %s417 = smul.addr %s416, 128
          %s418 = scalar_lea.hbm %s2, %s417
          %s419 = sshll.u32 %s406, 4
          %s420 = int_to_ptr.vmem [resolvable:$true] %s419
          %425 = dma.hbm_to_vmem [thread:$0]  %s418, 256, %s420, %s403, 128, 128, 8
        $region52: #{tpu_custom_call.1} parent=39 // pred_fallthru
          _
      $region40: #{tpu_custom_call.1} parent=5 // pred_fallthru
        _
      %p426 = scmp.le.s32.totalorder 1, %s25
      %p427 = scmp.lt.s32.totalorder %s25, 3
      %p428 = pnand %p426, %p427
      %p429 = pneg %p428
      // Predicated region
      $region53: #{tpu_custom_call.1} parent=5 // pred_check
        _
      $region54: #{tpu_custom_call.1} parent=5 // pred_check_branch
        %431 = sbr.rel (%p428) target = $region56
      $region55: #{tpu_custom_call.1} parent=5 // pred_region
        %s432 = ssub.s32 %s25, 1
        %s433 = sand.u32 %s60, 1
        %s434 = scalar_lea.sflag [#allocation3], %s433
        %s435 = sand.u32 %s60, 1
        %s436 = smul.addr %s435, 16
        %s437 = scalar_lea.vmem [#allocation2], %s436
        // Predicated region
        $region57: #{tpu_custom_call.1} parent=55 // pred_check
          %p438 = pneg %p73
        $region58: #{tpu_custom_call.1} parent=55 // pred_check_branch
          %440 = sbr.rel (%p438) target = $region60
        $region59: #{tpu_custom_call.1} parent=55 // pred_region
          %441 = dma.done %s434, 256
        $region60: #{tpu_custom_call.1} parent=55 // pred_fallthru
          _
        %s442 = sand.u32 %s30, 1
        %s443 = scalar_lea.sflag [#allocation6], %s442
        %s444 = sand.u32 %s88, 1
        %s445 = smul.addr %s444, 256
        %s446 = scalar_lea.vmem [#allocation5], %s445
        // Predicated region
        $region61: #{tpu_custom_call.1} parent=55 // pred_check
          %p447 = pneg %p101
        $region62: #{tpu_custom_call.1} parent=55 // pred_check_branch
          %449 = sbr.rel (%p447) target = $region64
        $region63: #{tpu_custom_call.1} parent=55 // pred_region
          %450 = dma.done %s443, 4096
        $region64: #{tpu_custom_call.1} parent=55 // pred_fallthru
          _
        %s451 = sand.u32 %s30, 1
        %s452 = scalar_lea.sflag [#allocation6], %s451
        %s453 = sand.u32 %s124, 1
        %s454 = smul.addr %s453, 16
        %s455 = scalar_lea.vmem [#allocation7], %s454
        // Predicated region
        $region65: #{tpu_custom_call.1} parent=55 // pred_check
          %p456 = pneg %p137
        $region66: #{tpu_custom_call.1} parent=55 // pred_check_branch
          %458 = sbr.rel (%p456) target = $region68
        $region67: #{tpu_custom_call.1} parent=55 // pred_region
          %459 = dma.done %s452, 256
        $region68: #{tpu_custom_call.1} parent=55 // pred_fallthru
          _
        // Predicated region
        $region69: #{tpu_custom_call.1} parent=55 // pred_check
          %p460 = pneg %p158
        $region70: #{tpu_custom_call.1} parent=55 // pred_check_branch
          %462 = sbr.rel (%p460) target = $region72
        $region71: #{tpu_custom_call.1} parent=55 // pred_region
          %463 = dma.done [#allocation9], 2048
        $region72: #{tpu_custom_call.1} parent=55 // pred_fallthru
          _
        // Predicated region
        $region73: #{tpu_custom_call.1} parent=55 // pred_check
          %p464 = pneg %p242
        $region74: #{tpu_custom_call.1} parent=55 // pred_check_branch
          %466 = sbr.rel (%p464) target = $region76
        $region75: #{tpu_custom_call.1} parent=55 // pred_region
          %467 = dma.done [#allocation9], 2048
        $region76: #{tpu_custom_call.1} parent=55 // pred_fallthru
          _
        %s468 = sand.u32 %s60, 1
        %s469 = scalar_lea.sflag [#allocation3], %s468
        %s470 = sand.u32 %s60, 1
        %s471 = smul.addr %s470, 16
        %s472 = scalar_lea.vmem [#allocation2], %s471
        %p473 = pneg %p73
        %p474 = pneg %p70
        %s475 = sand.u32 %s30, 1
        %s476 = scalar_lea.sflag [#allocation6], %s475
        %s477 = sand.u32 %s88, 1
        %s478 = smul.addr %s477, 256
        %s479 = scalar_lea.vmem [#allocation5], %s478
        %p480 = pneg %p101
        %p481 = pneg %p98
        %s482 = sand.u32 %s30, 1
        %s483 = scalar_lea.sflag [#allocation6], %s482
        %s484 = sand.u32 %s124, 1
        %s485 = smul.addr %s484, 16
        %s486 = scalar_lea.vmem [#allocation7], %s485
        %p487 = pneg %p137
        %p488 = pneg %p134
        %p489 = pneg %p158
        %p490 = pneg %p155
        %p491 = pneg %p179
        %p492 = pneg %p176
        %p493 = pneg %p200
        %p494 = pneg %p197
        %p495 = pneg %p221
        %p496 = pneg %p218
        %p497 = pneg %p242
        %p498 = pneg %p239
        %p499 = pneg %p263
        %p500 = pneg %p260
        %p501 = pneg %p291
        %p502 = pneg %p288
        %s503 = sand.u32 %s278, 1
        %s504 = scalar_lea.sflag [#allocation4], %s503
        %s505 = sand.u32 %s278, 1
        %s506 = smul.addr %s505, 256
        %s507 = scalar_lea.vmem [#allocation11], %s506
        %s508 = smul.u32 %s35, 16
        %s509 = ssub.s32 %s508, 1
        %p510 = scmp.gt.s32.totalorder %s509, 0
        %s511 = scalar_select %p510, %s509, 0
        %s512 = smul.u32 16, %s35
        %s513 = smul.u32 %s35, 16
        %s514 = sadd.s32 %s513, 16
        %p515 = scmp.lt.s32.totalorder %s514, 15
        %s516 = scalar_select %p515, %s514, 15
        %s517 = smul.u32 16, %s35
        %v518 = vld [vmem:[%s437] sm:$0xff]
        %v519 = vld [vmem:[%s437 + $0x8] sm:$0xff]
        %v520 = vld [vmem:[%s446] sm:$0xff]
        %v521 = vld [vmem:[%s446 + $0x8] sm:$0xff]
        %v522 = vld [vmem:[%s446 + $0x10] sm:$0xff]
        %v523 = vld [vmem:[%s446 + $0x18] sm:$0xff]
        %v524 = vld [vmem:[%s446 + $0x20] sm:$0xff]
        %v525 = vld [vmem:[%s446 + $0x28] sm:$0xff]
        %v526 = vld [vmem:[%s446 + $0x30] sm:$0xff]
        %v527 = vld [vmem:[%s446 + $0x38] sm:$0xff]
        %v528 = vld [vmem:[%s446 + $0x40] sm:$0xff]
        %v529 = vld [vmem:[%s446 + $0x48] sm:$0xff]
        %v530 = vld [vmem:[%s446 + $0x50] sm:$0xff]
        %v531 = vld [vmem:[%s446 + $0x58] sm:$0xff]
        %v532 = vld [vmem:[%s446 + $0x60] sm:$0xff]
        %v533 = vld [vmem:[%s446 + $0x68] sm:$0xff]
        %v534 = vld [vmem:[%s446 + $0x70] sm:$0xff]
        %v535 = vld [vmem:[%s446 + $0x78] sm:$0xff]
        %v536 = vld [vmem:[%s446 + $0x80] sm:$0xff]
        %v537 = vld [vmem:[%s446 + $0x88] sm:$0xff]
        %v538 = vld [vmem:[%s446 + $0x90] sm:$0xff]
        %v539 = vld [vmem:[%s446 + $0x98] sm:$0xff]
        %v540 = vld [vmem:[%s446 + $0xa0] sm:$0xff]
        %v541 = vld [vmem:[%s446 + $0xa8] sm:$0xff]
        %v542 = vld [vmem:[%s446 + $0xb0] sm:$0xff]
        %v543 = vld [vmem:[%s446 + $0xb8] sm:$0xff]
        %v544 = vld [vmem:[%s446 + $0xc0] sm:$0xff]
        %v545 = vld [vmem:[%s446 + $0xc8] sm:$0xff]
        %v546 = vld [vmem:[%s446 + $0xd0] sm:$0xff]
        %v547 = vld [vmem:[%s446 + $0xd8] sm:$0xff]
        %v548 = vld [vmem:[%s446 + $0xe0] sm:$0xff]
        %v549 = vld [vmem:[%s446 + $0xe8] sm:$0xff]
        %v550 = vld [vmem:[%s446 + $0xf0] sm:$0xff]
        %v551 = vld [vmem:[%s446 + $0xf8] sm:$0xff]
        %v552 = vld [vmem:[%s455] sm:$0xff]
        %v553 = vld [vmem:[%s455 + $0x8] sm:$0xff]
        %v554 = vld [vmem:[#allocation8] sm:$0xff]
        %v555 = vld [vmem:[#allocation8 + $0x8] sm:$0xff]
        %v556 = vld [vmem:[#allocation8 + $0x10] sm:$0xff]
        %v557 = vld [vmem:[#allocation8 + $0x18] sm:$0xff]
        %v558 = vld [vmem:[#allocation8 + $0x20] sm:$0xff]
        %v559 = vld [vmem:[#allocation8 + $0x28] sm:$0xff]
        %v560 = vld [vmem:[#allocation8 + $0x30] sm:$0xff]
        %v561 = vld [vmem:[#allocation8 + $0x38] sm:$0xff]
        %v562 = vld [vmem:[#allocation8 + $0x40] sm:$0xff]
        %v563 = vld [vmem:[#allocation8 + $0x48] sm:$0xff]
        %v564 = vld [vmem:[#allocation8 + $0x50] sm:$0xff]
        %v565 = vld [vmem:[#allocation8 + $0x58] sm:$0xff]
        %v566 = vld [vmem:[#allocation8 + $0x60] sm:$0xff]
        %v567 = vld [vmem:[#allocation8 + $0x68] sm:$0xff]
        %v568 = vld [vmem:[#allocation8 + $0x70] sm:$0xff]
        %v569 = vld [vmem:[#allocation8 + $0x78] sm:$0xff]
        %v570 = vld [vmem:[%s4] sm:$0x1]
        %v572 = vlaneseq
        %v573 = vshrl.u32 %v572, 7
        %v574 = vsub.s32 0, %v573
        %v575 = vrot.slane %v570, %v574
        %577 = vmatprep.subr.mxu0 0.0
        %578 = vmatpush1.msra.mxu0 %v554
        %579 = vmatprep.subr.mxu0 0.0
        %580 = vmatpush1.msra.mxu0 %v555
        %581 = vmatprep.subr.mxu0 0.0
        %582 = vmatpush1.msra.mxu0 %v556
        %583 = vmatprep.subr.mxu0 0.0
        %584 = vmatpush1.msra.mxu0 %v557
        %585 = vmatprep.subr.mxu0 0.0
        %586 = vmatpush1.msra.mxu0 %v558
        %587 = vmatprep.subr.mxu0 0.0
        %588 = vmatpush1.msra.mxu0 %v559
        %589 = vmatprep.subr.mxu0 0.0
        %590 = vmatpush1.msra.mxu0 %v560
        %591 = vmatprep.subr.mxu0 0.0
        %592 = vmatpush1.msra.mxu0 %v561
        %593 = vmatprep.subr.mxu0 0.0
        %594 = vmatpush1.msra.mxu0 %v562
        %595 = vmatprep.subr.mxu0 0.0
        %596 = vmatpush1.msra.mxu0 %v563
        %597 = vmatprep.subr.mxu0 0.0
        %598 = vmatpush1.msra.mxu0 %v564
        %599 = vmatprep.subr.mxu0 0.0
        %600 = vmatpush1.msra.mxu0 %v565
        %601 = vmatprep.subr.mxu0 0.0
        %602 = vmatpush1.msra.mxu0 %v566
        %603 = vmatprep.subr.mxu0 0.0
        %604 = vmatpush1.msra.mxu0 %v567
        %605 = vmatprep.subr.mxu0 0.0
        %606 = vmatpush1.msra.mxu0 %v568
        %607 = vmatprep.subr.mxu0 0.0
        %608 = vmatpush1.msra.mxu0 %v569
        %609 = vmatprep.subr.mxu0 0.0
        %610 = vmatpush1.msra.mxu0 0.0
        %611 = vmatprep.subr.mxu0 0.0
        %612 = vmatpush1.msra.mxu0 0.0
        %613 = vmatprep.subr.mxu0 0.0
        %614 = vmatpush1.msra.mxu0 0.0
        %615 = vmatprep.subr.mxu0 0.0
        %616 = vmatpush1.msra.mxu0 0.0
        %617 = vmatprep.subr.mxu0 0.0
        %618 = vmatpush1.msra.mxu0 0.0
        %619 = vmatprep.subr.mxu0 0.0
        %620 = vmatpush1.msra.mxu0 0.0
        %621 = vmatprep.subr.mxu0 0.0
        %622 = vmatpush1.msra.mxu0 0.0
        %623 = vmatprep.subr.mxu0 0.0
        %624 = vmatpush1.msra.mxu0 0.0
        %625 = vmatprep.subr.mxu0 0.0
        %626 = vmatpush1.msra.mxu0 0.0
        %627 = vmatprep.subr.mxu0 0.0
        %628 = vmatpush1.msra.mxu0 0.0
        %629 = vmatprep.subr.mxu0 0.0
        %630 = vmatpush1.msra.mxu0 0.0
        %631 = vmatprep.subr.mxu0 0.0
        %632 = vmatpush1.msra.mxu0 0.0
        %633 = vmatprep.subr.mxu0 0.0
        %634 = vmatpush1.msra.mxu0 0.0
        %635 = vmatprep.subr.mxu0 0.0
        %636 = vmatpush1.msra.mxu0 0.0
        %637 = vmatprep.subr.mxu0 0.0
        %638 = vmatpush1.msra.mxu0 0.0
        %639 = vmatprep.subr.mxu0 0.0
        %640 = vmatpush1.msra.mxu0 0.0
        %641 = vmatprep.mubr.f32.mxu0 0.0
        %642 = vmatmul.mubr.f32.gmra.mrb[0].mxu0 %v518
        %v643 = vpop.f32.mrb[0].mxu0
        %v644 = vadd.f32 %v575, %v643
        %v645 = vpop.f32.mrb[0].mxu0
        %646 = vmatprep.mubr.f32.mxu0 0.0
        %647 = vmatmul.mubr.f32.gmra.mrb[0].mxu0 %v519
        %v648 = vpop.f32.mrb[0].mxu0
        %v649 = vadd.f32 %v575, %v648
        %v650 = vpop.f32.mrb[0].mxu0
        %651 = vmatprep.mubr.f32.mxu0 0.0
        %652 = vmatmul.mubr.f32.gmra.mrb[0].mxu0 %v520
        %v653 = vpop.f32.mrb[0].mxu0
        %v654 = vadd.f32 %v575, %v653
        %v655 = vpop.f32.mrb[0].mxu0
        %656 = vmatprep.mubr.f32.mxu0 0.0
        %657 = vmatmul.mubr.f32.gmra.mrb[0].mxu0 %v521
        %v658 = vpop.f32.mrb[0].mxu0
        %v659 = vadd.f32 %v575, %v658
        %v660 = vpop.f32.mrb[0].mxu0
        %661 = vmatprep.mubr.f32.mxu0 0.0
        %662 = vmatmul.mubr.f32.gmra.mrb[0].mxu0 %v522
        %v663 = vpop.f32.mrb[0].mxu0
        %v664 = vadd.f32 %v575, %v663
        %v665 = vpop.f32.mrb[0].mxu0
        %666 = vmatprep.mubr.f32.mxu0 0.0
        %667 = vmatmul.mubr.f32.gmra.mrb[0].mxu0 %v523
        %v668 = vpop.f32.mrb[0].mxu0
        %v669 = vadd.f32 %v575, %v668
        %v670 = vpop.f32.mrb[0].mxu0
        %671 = vmatprep.mubr.f32.mxu0 0.0
        %672 = vmatmul.mubr.f32.gmra.mrb[0].mxu0 %v524
        %v673 = vpop.f32.mrb[0].mxu0
        %v674 = vadd.f32 %v575, %v673
        %v675 = vpop.f32.mrb[0].mxu0
        %676 = vmatprep.mubr.f32.mxu0 0.0
        %677 = vmatmul.mubr.f32.gmra.mrb[0].mxu0 %v525
        %v678 = vpop.f32.mrb[0].mxu0
        %v679 = vadd.f32 %v575, %v678
        %v680 = vpop.f32.mrb[0].mxu0
        %681 = vmatprep.mubr.f32.mxu0 0.0
        %682 = vmatmul.mubr.f32.gmra.mrb[0].mxu0 %v526
        %v683 = vpop.f32.mrb[0].mxu0
        %v684 = vadd.f32 %v575, %v683
        %v685 = vpop.f32.mrb[0].mxu0
        %686 = vmatprep.mubr.f32.mxu0 0.0
        %687 = vmatmul.mubr.f32.gmra.mrb[0].mxu0 %v527
        %v688 = vpop.f32.mrb[0].mxu0
        %v689 = vadd.f32 %v575, %v688
        %v690 = vpop.f32.mrb[0].mxu0
        %691 = vmatprep.mubr.f32.mxu0 0.0
        %692 = vmatmul.mubr.f32.gmra.mrb[0].mxu0 %v528
        %v693 = vpop.f32.mrb[0].mxu0
        %v694 = vadd.f32 %v575, %v693
        %v695 = vpop.f32.mrb[0].mxu0
        %696 = vmatprep.mubr.f32.mxu0 0.0
        %697 = vmatmul.mubr.f32.gmra.mrb[0].mxu0 %v529
        %v698 = vpop.f32.mrb[0].mxu0
        %v699 = vadd.f32 %v575, %v698
        %v700 = vpop.f32.mrb[0].mxu0
        %701 = vmatprep.mubr.f32.mxu0 0.0
        %702 = vmatmul.mubr.f32.gmra.mrb[0].mxu0 %v530
        %v703 = vpop.f32.mrb[0].mxu0
        %v704 = vadd.f32 %v575, %v703
        %v705 = vpop.f32.mrb[0].mxu0
        %706 = vmatprep.mubr.f32.mxu0 0.0
        %707 = vmatmul.mubr.f32.gmra.mrb[0].mxu0 %v531
        %v708 = vpop.f32.mrb[0].mxu0
        %v709 = vadd.f32 %v575, %v708
        %v710 = vpop.f32.mrb[0].mxu0
        %711 = vmatprep.mubr.f32.mxu0 0.0
        %712 = vmatmul.mubr.f32.gmra.mrb[0].mxu0 %v532
        %v713 = vpop.f32.mrb[0].mxu0
        %v714 = vadd.f32 %v575, %v713
        %v715 = vpop.f32.mrb[0].mxu0
        %716 = vmatprep.mubr.f32.mxu0 0.0
        %717 = vmatmul.mubr.f32.gmra.mrb[0].mxu0 %v533
        %v718 = vpop.f32.mrb[0].mxu0
        %v719 = vadd.f32 %v575, %v718
        %v720 = vpop.f32.mrb[0].mxu0
        %721 = vmatprep.mubr.f32.mxu0 0.0
        %722 = vmatmul.mubr.f32.gmra.mrb[0].mxu0 %v534
        %v723 = vpop.f32.mrb[0].mxu0
        %v724 = vadd.f32 %v575, %v723
        %v725 = vpop.f32.mrb[0].mxu0
        %726 = vmatprep.mubr.f32.mxu0 0.0
        %727 = vmatmul.mubr.f32.gmra.mrb[0].mxu0 %v535
        %v728 = vpop.f32.mrb[0].mxu0
        %v729 = vadd.f32 %v575, %v728
        %v730 = vpop.f32.mrb[0].mxu0
        %731 = vmatprep.mubr.f32.mxu0 0.0
        %732 = vmatmul.mubr.f32.gmra.mrb[0].mxu0 %v536
        %v733 = vpop.f32.mrb[0].mxu0
        %v734 = vadd.f32 %v575, %v733
        %v735 = vpop.f32.mrb[0].mxu0
        %736 = vmatprep.mubr.f32.mxu0 0.0
        %737 = vmatmul.mubr.f32.gmra.mrb[0].mxu0 %v537
        %v738 = vpop.f32.mrb[0].mxu0
        %v739 = vadd.f32 %v575, %v738
        %v740 = vpop.f32.mrb[0].mxu0
        %741 = vmatprep.mubr.f32.mxu0 0.0
        %742 = vmatmul.mubr.f32.gmra.mrb[0].mxu0 %v538
        %v743 = vpop.f32.mrb[0].mxu0
        %v744 = vadd.f32 %v575, %v743
        %v745 = vpop.f32.mrb[0].mxu0
        %746 = vmatprep.mubr.f32.mxu0 0.0
        %747 = vmatmul.mubr.f32.gmra.mrb[0].mxu0 %v539
        %v748 = vpop.f32.mrb[0].mxu0
        %v749 = vadd.f32 %v575, %v748
        %v750 = vpop.f32.mrb[0].mxu0
        %751 = vmatprep.mubr.f32.mxu0 0.0
        %752 = vmatmul.mubr.f32.gmra.mrb[0].mxu0 %v540
        %v753 = vpop.f32.mrb[0].mxu0
        %v754 = vadd.f32 %v575, %v753
        %v755 = vpop.f32.mrb[0].mxu0
        %756 = vmatprep.mubr.f32.mxu0 0.0
        %757 = vmatmul.mubr.f32.gmra.mrb[0].mxu0 %v541
        %v758 = vpop.f32.mrb[0].mxu0
        %v759 = vadd.f32 %v575, %v758
        %v760 = vpop.f32.mrb[0].mxu0
        %761 = vmatprep.mubr.f32.mxu0 0.0
        %762 = vmatmul.mubr.f32.gmra.mrb[0].mxu0 %v542
        %v763 = vpop.f32.mrb[0].mxu0
        %v764 = vadd.f32 %v575, %v763
        %v765 = vpop.f32.mrb[0].mxu0
        %766 = vmatprep.mubr.f32.mxu0 0.0
        %767 = vmatmul.mubr.f32.gmra.mrb[0].mxu0 %v543
        %v768 = vpop.f32.mrb[0].mxu0
        %v769 = vadd.f32 %v575, %v768
        %v770 = vpop.f32.mrb[0].mxu0
        %771 = vmatprep.mubr.f32.mxu0 0.0
        %772 = vmatmul.mubr.f32.gmra.mrb[0].mxu0 %v544
        %v773 = vpop.f32.mrb[0].mxu0
        %v774 = vadd.f32 %v575, %v773
        %v775 = vpop.f32.mrb[0].mxu0
        %776 = vmatprep.mubr.f32.mxu0 0.0
        %777 = vmatmul.mubr.f32.gmra.mrb[0].mxu0 %v545
        %v778 = vpop.f32.mrb[0].mxu0
        %v779 = vadd.f32 %v575, %v778
        %v780 = vpop.f32.mrb[0].mxu0
        %781 = vmatprep.mubr.f32.mxu0 0.0
        %782 = vmatmul.mubr.f32.gmra.mrb[0].mxu0 %v546
        %v783 = vpop.f32.mrb[0].mxu0
        %v784 = vadd.f32 %v575, %v783
        %v785 = vpop.f32.mrb[0].mxu0
        %786 = vmatprep.mubr.f32.mxu0 0.0
        %787 = vmatmul.mubr.f32.gmra.mrb[0].mxu0 %v547
        %v788 = vpop.f32.mrb[0].mxu0
        %v789 = vadd.f32 %v575, %v788
        %v790 = vpop.f32.mrb[0].mxu0
        %791 = vmatprep.mubr.f32.mxu0 0.0
        %792 = vmatmul.mubr.f32.gmra.mrb[0].mxu0 %v548
        %v793 = vpop.f32.mrb[0].mxu0
        %v794 = vadd.f32 %v575, %v793
        %v795 = vpop.f32.mrb[0].mxu0
        %796 = vmatprep.mubr.f32.mxu0 0.0
        %797 = vmatmul.mubr.f32.gmra.mrb[0].mxu0 %v549
        %v798 = vpop.f32.mrb[0].mxu0
        %v799 = vadd.f32 %v575, %v798
        %v800 = vpop.f32.mrb[0].mxu0
        %801 = vmatprep.mubr.f32.mxu0 0.0
        %802 = vmatmul.mubr.f32.gmra.mrb[0].mxu0 %v550
        %v803 = vpop.f32.mrb[0].mxu0
        %v804 = vadd.f32 %v575, %v803
        %v805 = vpop.f32.mrb[0].mxu0
        %806 = vmatprep.mubr.f32.mxu0 0.0
        %807 = vmatmul.mubr.f32.gmra.mrb[0].mxu0 %v551
        %v808 = vpop.f32.mrb[0].mxu0
        %v809 = vadd.f32 %v575, %v808
        %v810 = vpop.f32.mrb[0].mxu0
        %811 = vmatprep.mubr.f32.mxu0 0.0
        %812 = vmatmul.mubr.f32.gmra.mrb[0].mxu0 %v552
        %v813 = vpop.f32.mrb[0].mxu0
        %v814 = vadd.f32 %v575, %v813
        %v815 = vpop.f32.mrb[0].mxu0
        %816 = vmatprep.mubr.f32.mxu0 0.0
        %817 = vmatmul.mubr.f32.gmra.mrb[0].mxu0 %v553
        %v818 = vpop.f32.mrb[0].mxu0
        %v819 = vadd.f32 %v575, %v818
        %v820 = vpop.f32.mrb[0].mxu0
        %821 = vdwg.mxu0
        %v822 = vlaneseq
        %v823 = vshrl.u32 %v822, 7
        %v824 = vadd.s32 %v823, 8
        %v825 = vadd.s32 %v823, 16
        %v826 = vadd.s32 %v823, 24
        %v827 = vadd.s32 %v823, 32
        %v828 = vadd.s32 %v823, 40
        %v829 = vadd.s32 %v823, 48
        %v830 = vadd.s32 %v823, 56
        %v831 = vadd.s32 %v823, 64
        %v832 = vadd.s32 %v823, 72
        %v833 = vadd.s32 %v823, 80
        %v834 = vadd.s32 %v823, 88
        %v835 = vadd.s32 %v823, 96
        %v836 = vadd.s32 %v823, 104
        %v837 = vadd.s32 %v823, 112
        %v838 = vadd.s32 %v823, 120
        %v839 = vadd.s32 %v823, 128
        %v840 = vadd.s32 %v823, 136
        %v841 = vadd.s32 %v823, 144
        %v842 = vadd.s32 %v823, 152
        %v843 = vadd.s32 %v823, 160
        %v844 = vadd.s32 %v823, 168
        %v845 = vadd.s32 %v823, 176
        %v846 = vadd.s32 %v823, 184
        %v847 = vadd.s32 %v823, 192
        %v848 = vadd.s32 %v823, 200
        %v849 = vadd.s32 %v823, 208
        %v850 = vadd.s32 %v823, 216
        %v851 = vadd.s32 %v823, 224
        %v852 = vadd.s32 %v823, 232
        %v853 = vadd.s32 %v823, 240
        %v854 = vadd.s32 %v823, 248
        %v855 = vadd.s32 %v823, 256
        %v856 = vadd.s32 %v823, 264
        %v857 = vadd.s32 %v823, 272
        %v858 = vadd.s32 %v823, 280
        %vm859 = vcmp.ge.s32.totalorder %v823, 16
        %vm860 = vcmp.ge.s32.totalorder %v824, 16
        %vm861 = vcmp.ge.s32.totalorder %v825, 16
        %vm862 = vcmp.ge.s32.totalorder %v826, 16
        %vm863 = vcmp.ge.s32.totalorder %v827, 16
        %vm864 = vcmp.ge.s32.totalorder %v828, 16
        %vm865 = vcmp.ge.s32.totalorder %v829, 16
        %vm866 = vcmp.ge.s32.totalorder %v830, 16
        %vm867 = vcmp.ge.s32.totalorder %v831, 16
        %vm868 = vcmp.ge.s32.totalorder %v832, 16
        %vm869 = vcmp.ge.s32.totalorder %v833, 16
        %vm870 = vcmp.ge.s32.totalorder %v834, 16
        %vm871 = vcmp.ge.s32.totalorder %v835, 16
        %vm872 = vcmp.ge.s32.totalorder %v836, 16
        %vm873 = vcmp.ge.s32.totalorder %v837, 16
        %vm874 = vcmp.ge.s32.totalorder %v838, 16
        %vm875 = vcmp.ge.s32.totalorder %v839, 16
        %vm876 = vcmp.ge.s32.totalorder %v840, 16
        %vm877 = vcmp.ge.s32.totalorder %v841, 16
        %vm878 = vcmp.ge.s32.totalorder %v842, 16
        %vm879 = vcmp.ge.s32.totalorder %v843, 16
        %vm880 = vcmp.ge.s32.totalorder %v844, 16
        %vm881 = vcmp.ge.s32.totalorder %v845, 16
        %vm882 = vcmp.ge.s32.totalorder %v846, 16
        %vm883 = vcmp.ge.s32.totalorder %v847, 16
        %vm884 = vcmp.ge.s32.totalorder %v848, 16
        %vm885 = vcmp.ge.s32.totalorder %v849, 16
        %vm886 = vcmp.ge.s32.totalorder %v850, 16
        %vm887 = vcmp.ge.s32.totalorder %v851, 16
        %vm888 = vcmp.ge.s32.totalorder %v852, 16
        %vm889 = vcmp.ge.s32.totalorder %v853, 16
        %vm890 = vcmp.ge.s32.totalorder %v854, 16
        %vm891 = vcmp.ge.s32.totalorder %v855, 16
        %vm892 = vcmp.ge.s32.totalorder %v856, 16
        %vm893 = vcmp.ge.s32.totalorder %v857, 16
        %vm894 = vcmp.ge.s32.totalorder %v858, 16
        %p895 = scmp.gt.s32.totalorder %s35, 0
        %s896 = scalar_select %p895, 1, 0
        %v897 = vstv %s896
        %vm898 = vcmp.eq.s32.totalorder %v897, 1
        %vm899 = vmor %vm859, %vm898
        %vm900 = vmor %vm860, %vm898
        %vm901 = vmor %vm861, %vm898
        %vm902 = vmor %vm862, %vm898
        %vm903 = vmor %vm863, %vm898
        %vm904 = vmor %vm864, %vm898
        %vm905 = vmor %vm865, %vm898
        %vm906 = vmor %vm866, %vm898
        %vm907 = vmor %vm867, %vm898
        %vm908 = vmor %vm868, %vm898
        %vm909 = vmor %vm869, %vm898
        %vm910 = vmor %vm870, %vm898
        %vm911 = vmor %vm871, %vm898
        %vm912 = vmor %vm872, %vm898
        %vm913 = vmor %vm873, %vm898
        %vm914 = vmor %vm874, %vm898
        %vm915 = vmor %vm875, %vm898
        %vm916 = vmor %vm876, %vm898
        %vm917 = vmor %vm877, %vm898
        %vm918 = vmor %vm878, %vm898
        %vm919 = vmor %vm879, %vm898
        %vm920 = vmor %vm880, %vm898
        %vm921 = vmor %vm881, %vm898
        %vm922 = vmor %vm882, %vm898
        %vm923 = vmor %vm883, %vm898
        %vm924 = vmor %vm884, %vm898
        %vm925 = vmor %vm885, %vm898
        %vm926 = vmor %vm886, %vm898
        %vm927 = vmor %vm887, %vm898
        %vm928 = vmor %vm888, %vm898
        %vm929 = vmor %vm889, %vm898
        %vm930 = vmor %vm890, %vm898
        %vm931 = vmor %vm891, %vm898
        %vm932 = vmor %vm892, %vm898
        %vm933 = vmor %vm893, %vm898
        %vm934 = vmor %vm894, %vm898
        %vm935 = vcmp.lt.s32.totalorder %v823, 272
        %vm936 = vcmp.lt.s32.totalorder %v824, 272
        %vm937 = vcmp.lt.s32.totalorder %v825, 272
        %vm938 = vcmp.lt.s32.totalorder %v826, 272
        %vm939 = vcmp.lt.s32.totalorder %v827, 272
        %vm940 = vcmp.lt.s32.totalorder %v828, 272
        %vm941 = vcmp.lt.s32.totalorder %v829, 272
        %vm942 = vcmp.lt.s32.totalorder %v830, 272
        %vm943 = vcmp.lt.s32.totalorder %v831, 272
        %vm944 = vcmp.lt.s32.totalorder %v832, 272
        %vm945 = vcmp.lt.s32.totalorder %v833, 272
        %vm946 = vcmp.lt.s32.totalorder %v834, 272
        %vm947 = vcmp.lt.s32.totalorder %v835, 272
        %vm948 = vcmp.lt.s32.totalorder %v836, 272
        %vm949 = vcmp.lt.s32.totalorder %v837, 272
        %vm950 = vcmp.lt.s32.totalorder %v838, 272
        %vm951 = vcmp.lt.s32.totalorder %v839, 272
        %vm952 = vcmp.lt.s32.totalorder %v840, 272
        %vm953 = vcmp.lt.s32.totalorder %v841, 272
        %vm954 = vcmp.lt.s32.totalorder %v842, 272
        %vm955 = vcmp.lt.s32.totalorder %v843, 272
        %vm956 = vcmp.lt.s32.totalorder %v844, 272
        %vm957 = vcmp.lt.s32.totalorder %v845, 272
        %vm958 = vcmp.lt.s32.totalorder %v846, 272
        %vm959 = vcmp.lt.s32.totalorder %v847, 272
        %vm960 = vcmp.lt.s32.totalorder %v848, 272
        %vm961 = vcmp.lt.s32.totalorder %v849, 272
        %vm962 = vcmp.lt.s32.totalorder %v850, 272
        %vm963 = vcmp.lt.s32.totalorder %v851, 272
        %vm964 = vcmp.lt.s32.totalorder %v852, 272
        %vm965 = vcmp.lt.s32.totalorder %v853, 272
        %vm966 = vcmp.lt.s32.totalorder %v854, 272
        %vm967 = vcmp.lt.s32.totalorder %v855, 272
        %vm968 = vcmp.lt.s32.totalorder %v856, 272
        %vm969 = vcmp.lt.s32.totalorder %v857, 272
        %vm970 = vcmp.lt.s32.totalorder %v858, 272
        %p971 = scmp.lt.s32.totalorder %s35, 0
        %s972 = scalar_select %p971, 1, 0
        %v973 = vstv %s972
        %vm974 = vcmp.eq.s32.totalorder %v973, 1
        %vm975 = vmor %vm935, %vm974
        %vm976 = vmor %vm936, %vm974
        %vm977 = vmor %vm937, %vm974
        %vm978 = vmor %vm938, %vm974
        %vm979 = vmor %vm939, %vm974
        %vm980 = vmor %vm940, %vm974
        %vm981 = vmor %vm941, %vm974
        %vm982 = vmor %vm942, %vm974
        %vm983 = vmor %vm943, %vm974
        %vm984 = vmor %vm944, %vm974
        %vm985 = vmor %vm945, %vm974
        %vm986 = vmor %vm946, %vm974
        %vm987 = vmor %vm947, %vm974
        %vm988 = vmor %vm948, %vm974
        %vm989 = vmor %vm949, %vm974
        %vm990 = vmor %vm950, %vm974
        %vm991 = vmor %vm951, %vm974
        %vm992 = vmor %vm952, %vm974
        %vm993 = vmor %vm953, %vm974
        %vm994 = vmor %vm954, %vm974
        %vm995 = vmor %vm955, %vm974
        %vm996 = vmor %vm956, %vm974
        %vm997 = vmor %vm957, %vm974
        %vm998 = vmor %vm958, %vm974
        %vm999 = vmor %vm959, %vm974
        %vm1000 = vmor %vm960, %vm974
        %vm1001 = vmor %vm961, %vm974
        %vm1002 = vmor %vm962, %vm974
        %vm1003 = vmor %vm963, %vm974
        %vm1004 = vmor %vm964, %vm974
        %vm1005 = vmor %vm965, %vm974
        %vm1006 = vmor %vm966, %vm974
        %vm1007 = vmor %vm967, %vm974
        %vm1008 = vmor %vm968, %vm974
        %vm1009 = vmor %vm969, %vm974
        %vm1010 = vmor %vm970, %vm974
        %vm1011 = vmand %vm899, %vm975
        %vm1012 = vmand %vm900, %vm976
        %vm1013 = vmand %vm901, %vm977
        %vm1014 = vmand %vm902, %vm978
        %vm1015 = vmand %vm903, %vm979
        %vm1016 = vmand %vm904, %vm980
        %vm1017 = vmand %vm905, %vm981
        %vm1018 = vmand %vm906, %vm982
        %vm1019 = vmand %vm907, %vm983
        %vm1020 = vmand %vm908, %vm984
        %vm1021 = vmand %vm909, %vm985
        %vm1022 = vmand %vm910, %vm986
        %vm1023 = vmand %vm911, %vm987
        %vm1024 = vmand %vm912, %vm988
        %vm1025 = vmand %vm913, %vm989
        %vm1026 = vmand %vm914, %vm990
        %vm1027 = vmand %vm915, %vm991
        %vm1028 = vmand %vm916, %vm992
        %vm1029 = vmand %vm917, %vm993
        %vm1030 = vmand %vm918, %vm994
        %vm1031 = vmand %vm919, %vm995
        %vm1032 = vmand %vm920, %vm996
        %vm1033 = vmand %vm921, %vm997
        %vm1034 = vmand %vm922, %vm998
        %vm1035 = vmand %vm923, %vm999
        %vm1036 = vmand %vm924, %vm1000
        %vm1037 = vmand %vm925, %vm1001
        %vm1038 = vmand %vm926, %vm1002
        %vm1039 = vmand %vm927, %vm1003
        %vm1040 = vmand %vm928, %vm1004
        %vm1041 = vmand %vm929, %vm1005
        %vm1042 = vmand %vm930, %vm1006
        %vm1043 = vmand %vm931, %vm1007
        %vm1044 = vmand %vm932, %vm1008
        %vm1045 = vmand %vm933, %vm1009
        %vm1046 = vmand %vm934, %vm1010
        %v1047 = vsel %vm1011, 1, 0
        %v1048 = vsel %vm1012, 1, 0
        %v1049 = vsel %vm1013, 1, 0
        %v1050 = vsel %vm1014, 1, 0
        %v1051 = vsel %vm1015, 1, 0
        %v1052 = vsel %vm1016, 1, 0
        %v1053 = vsel %vm1017, 1, 0
        %v1054 = vsel %vm1018, 1, 0
        %v1055 = vsel %vm1019, 1, 0
        %v1056 = vsel %vm1020, 1, 0
        %v1057 = vsel %vm1021, 1, 0
        %v1058 = vsel %vm1022, 1, 0
        %v1059 = vsel %vm1023, 1, 0
        %v1060 = vsel %vm1024, 1, 0
        %v1061 = vsel %vm1025, 1, 0
        %v1062 = vsel %vm1026, 1, 0
        %v1063 = vsel %vm1027, 1, 0
        %v1064 = vsel %vm1028, 1, 0
        %v1065 = vsel %vm1029, 1, 0
        %v1066 = vsel %vm1030, 1, 0
        %v1067 = vsel %vm1031, 1, 0
        %v1068 = vsel %vm1032, 1, 0
        %v1069 = vsel %vm1033, 1, 0
        %v1070 = vsel %vm1034, 1, 0
        %v1071 = vsel %vm1035, 1, 0
        %v1072 = vsel %vm1036, 1, 0
        %v1073 = vsel %vm1037, 1, 0
        %v1074 = vsel %vm1038, 1, 0
        %v1075 = vsel %vm1039, 1, 0
        %v1076 = vsel %vm1040, 1, 0
        %v1077 = vsel %vm1041, 1, 0
        %v1078 = vsel %vm1042, 1, 0
        %v1079 = vsel %vm1043, 1, 0
        %v1080 = vsel %vm1044, 1, 0
        %v1081 = vsel %vm1045, 1, 0
        %v1082 = vsel %vm1046, 1, 0
        %vm1083 = vcmp.eq.s32.totalorder %v1047, 1
        %vm1084 = vcmp.eq.s32.totalorder %v1048, 1
        %vm1085 = vcmp.eq.s32.totalorder %v1049, 1
        %vm1086 = vcmp.eq.s32.totalorder %v1050, 1
        %vm1087 = vcmp.eq.s32.totalorder %v1051, 1
        %vm1088 = vcmp.eq.s32.totalorder %v1052, 1
        %vm1089 = vcmp.eq.s32.totalorder %v1053, 1
        %vm1090 = vcmp.eq.s32.totalorder %v1054, 1
        %vm1091 = vcmp.eq.s32.totalorder %v1055, 1
        %vm1092 = vcmp.eq.s32.totalorder %v1056, 1
        %vm1093 = vcmp.eq.s32.totalorder %v1057, 1
        %vm1094 = vcmp.eq.s32.totalorder %v1058, 1
        %vm1095 = vcmp.eq.s32.totalorder %v1059, 1
        %vm1096 = vcmp.eq.s32.totalorder %v1060, 1
        %vm1097 = vcmp.eq.s32.totalorder %v1061, 1
        %vm1098 = vcmp.eq.s32.totalorder %v1062, 1
        %vm1099 = vcmp.eq.s32.totalorder %v1063, 1
        %vm1100 = vcmp.eq.s32.totalorder %v1064, 1
        %vm1101 = vcmp.eq.s32.totalorder %v1065, 1
        %vm1102 = vcmp.eq.s32.totalorder %v1066, 1
        %vm1103 = vcmp.eq.s32.totalorder %v1067, 1
        %vm1104 = vcmp.eq.s32.totalorder %v1068, 1
        %vm1105 = vcmp.eq.s32.totalorder %v1069, 1
        %vm1106 = vcmp.eq.s32.totalorder %v1070, 1
        %vm1107 = vcmp.eq.s32.totalorder %v1071, 1
        %vm1108 = vcmp.eq.s32.totalorder %v1072, 1
        %vm1109 = vcmp.eq.s32.totalorder %v1073, 1
        %vm1110 = vcmp.eq.s32.totalorder %v1074, 1
        %vm1111 = vcmp.eq.s32.totalorder %v1075, 1
        %vm1112 = vcmp.eq.s32.totalorder %v1076, 1
        %vm1113 = vcmp.eq.s32.totalorder %v1077, 1
        %vm1114 = vcmp.eq.s32.totalorder %v1078, 1
        %vm1115 = vcmp.eq.s32.totalorder %v1079, 1
        %vm1116 = vcmp.eq.s32.totalorder %v1080, 1
        %vm1117 = vcmp.eq.s32.totalorder %v1081, 1
        %vm1118 = vcmp.eq.s32.totalorder %v1082, 1
        %v1119 = vsel %vm1083, %v644, 0.0
        %v1120 = vsel %vm1084, %v649, 0.0
        %v1121 = vsel %vm1085, %v654, 0.0
        %v1122 = vsel %vm1086, %v659, 0.0
        %v1123 = vsel %vm1087, %v664, 0.0
        %v1124 = vsel %vm1088, %v669, 0.0
        %v1125 = vsel %vm1089, %v674, 0.0
        %v1126 = vsel %vm1090, %v679, 0.0
        %v1127 = vsel %vm1091, %v684, 0.0
        %v1128 = vsel %vm1092, %v689, 0.0
        %v1129 = vsel %vm1093, %v694, 0.0
        %v1130 = vsel %vm1094, %v699, 0.0
        %v1131 = vsel %vm1095, %v704, 0.0
        %v1132 = vsel %vm1096, %v709, 0.0
        %v1133 = vsel %vm1097, %v714, 0.0
        %v1134 = vsel %vm1098, %v719, 0.0
        %v1135 = vsel %vm1099, %v724, 0.0
        %v1136 = vsel %vm1100, %v729, 0.0
        %v1137 = vsel %vm1101, %v734, 0.0
        %v1138 = vsel %vm1102, %v739, 0.0
        %v1139 = vsel %vm1103, %v744, 0.0
        %v1140 = vsel %vm1104, %v749, 0.0
        %v1141 = vsel %vm1105, %v754, 0.0
        %v1142 = vsel %vm1106, %v759, 0.0
        %v1143 = vsel %vm1107, %v764, 0.0
        %v1144 = vsel %vm1108, %v769, 0.0
        %v1145 = vsel %vm1109, %v774, 0.0
        %v1146 = vsel %vm1110, %v779, 0.0
        %v1147 = vsel %vm1111, %v784, 0.0
        %v1148 = vsel %vm1112, %v789, 0.0
        %v1149 = vsel %vm1113, %v794, 0.0
        %v1150 = vsel %vm1114, %v799, 0.0
        %v1151 = vsel %vm1115, %v804, 0.0
        %v1152 = vsel %vm1116, %v809, 0.0
        %v1153 = vsel %vm1117, %v814, 0.0
        %v1154 = vsel %vm1118, %v819, 0.0
        %v1155 = vrot.slane %v1119, 7
        %v1156 = vrot.slane %v1120, 7
        %v1157 = vrot.slane %v1121, 7
        %v1158 = vrot.slane %v1122, 7
        %v1159 = vrot.slane %v1123, 7
        %v1160 = vrot.slane %v1124, 7
        %v1161 = vrot.slane %v1125, 7
        %v1162 = vrot.slane %v1126, 7
        %v1163 = vrot.slane %v1127, 7
        %v1164 = vrot.slane %v1128, 7
        %v1165 = vrot.slane %v1129, 7
        %v1166 = vrot.slane %v1130, 7
        %v1167 = vrot.slane %v1131, 7
        %v1168 = vrot.slane %v1132, 7
        %v1169 = vrot.slane %v1133, 7
        %v1170 = vrot.slane %v1134, 7
        %v1171 = vrot.slane %v1135, 7
        %v1172 = vrot.slane %v1136, 7
        %v1173 = vrot.slane %v1137, 7
        %v1174 = vrot.slane %v1138, 7
        %v1175 = vrot.slane %v1139, 7
        %v1176 = vrot.slane %v1140, 7
        %v1177 = vrot.slane %v1141, 7
        %v1178 = vrot.slane %v1142, 7
        %v1179 = vrot.slane %v1143, 7
        %v1180 = vrot.slane %v1144, 7
        %v1181 = vrot.slane %v1145, 7
        %v1182 = vrot.slane %v1146, 7
        %v1183 = vrot.slane %v1147, 7
        %v1184 = vrot.slane %v1148, 7
        %v1185 = vrot.slane %v1149, 7
        %v1186 = vrot.slane %v1150, 7
        %v1187 = vrot.slane %v1151, 7
        %v1188 = vrot.slane %v1152, 7
        %v1189 = vrot.slane %v1153, 7
        %v1190 = vrot.slane %v1154, 7
        %vm1191 = vcmp.lt.s32.totalorder %v823, 1
        %v1192 = vsel %vm1191, %v1189, %v1190
        %v1193 = vsel %vm1191, %v1188, %v1189
        %v1194 = vsel %vm1191, %v1187, %v1188
        %v1195 = vsel %vm1191, %v1186, %v1187
        %v1196 = vsel %vm1191, %v1185, %v1186
        %v1197 = vsel %vm1191, %v1184, %v1185
        %v1198 = vsel %vm1191, %v1183, %v1184
        %v1199 = vsel %vm1191, %v1182, %v1183
        %v1200 = vsel %vm1191, %v1181, %v1182
        %v1201 = vsel %vm1191, %v1180, %v1181
        %v1202 = vsel %vm1191, %v1179, %v1180
        %v1203 = vsel %vm1191, %v1178, %v1179
        %v1204 = vsel %vm1191, %v1177, %v1178
        %v1205 = vsel %vm1191, %v1176, %v1177
        %v1206 = vsel %vm1191, %v1175, %v1176
        %v1207 = vsel %vm1191, %v1174, %v1175
        %v1208 = vsel %vm1191, %v1173, %v1174
        %v1209 = vsel %vm1191, %v1172, %v1173
        %v1210 = vsel %vm1191, %v1171, %v1172
        %v1211 = vsel %vm1191, %v1170, %v1171
        %v1212 = vsel %vm1191, %v1169, %v1170
        %v1213 = vsel %vm1191, %v1168, %v1169
        %v1214 = vsel %vm1191, %v1167, %v1168
        %v1215 = vsel %vm1191, %v1166, %v1167
        %v1216 = vsel %vm1191, %v1165, %v1166
        %v1217 = vsel %vm1191, %v1164, %v1165
        %v1218 = vsel %vm1191, %v1163, %v1164
        %v1219 = vsel %vm1191, %v1162, %v1163
        %v1220 = vsel %vm1191, %v1161, %v1162
        %v1221 = vsel %vm1191, %v1160, %v1161
        %v1222 = vsel %vm1191, %v1159, %v1160
        %v1223 = vsel %vm1191, %v1158, %v1159
        %v1224 = vsel %vm1191, %v1157, %v1158
        %v1225 = vsel %vm1191, %v1156, %v1157
        %v1226 = vsel %vm1191, %v1155, %v1156
        %v1227 = vsel %vm1191, %v1190, %v1155
        %v1228 = vrot.slane %v1119, 1
        %v1229 = vrot.slane %v1120, 1
        %v1230 = vrot.slane %v1121, 1
        %v1231 = vrot.slane %v1122, 1
        %v1232 = vrot.slane %v1123, 1
        %v1233 = vrot.slane %v1124, 1
        %v1234 = vrot.slane %v1125, 1
        %v1235 = vrot.slane %v1126, 1
        %v1236 = vrot.slane %v1127, 1
        %v1237 = vrot.slane %v1128, 1
        %v1238 = vrot.slane %v1129, 1
        %v1239 = vrot.slane %v1130, 1
        %v1240 = vrot.slane %v1131, 1
        %v1241 = vrot.slane %v1132, 1
        %v1242 = vrot.slane %v1133, 1
        %v1243 = vrot.slane %v1134, 1
        %v1244 = vrot.slane %v1135, 1
        %v1245 = vrot.slane %v1136, 1
        %v1246 = vrot.slane %v1137, 1
        %v1247 = vrot.slane %v1138, 1
        %v1248 = vrot.slane %v1139, 1
        %v1249 = vrot.slane %v1140, 1
        %v1250 = vrot.slane %v1141, 1
        %v1251 = vrot.slane %v1142, 1
        %v1252 = vrot.slane %v1143, 1
        %v1253 = vrot.slane %v1144, 1
        %v1254 = vrot.slane %v1145, 1
        %v1255 = vrot.slane %v1146, 1
        %v1256 = vrot.slane %v1147, 1
        %v1257 = vrot.slane %v1148, 1
        %v1258 = vrot.slane %v1149, 1
        %v1259 = vrot.slane %v1150, 1
        %v1260 = vrot.slane %v1151, 1
        %v1261 = vrot.slane %v1152, 1
        %v1262 = vrot.slane %v1153, 1
        %v1263 = vrot.slane %v1154, 1
        %vm1264 = vcmp.lt.s32.totalorder %v823, 7
        %v1265 = vsel %vm1264, %v1262, %v1263
        %v1266 = vsel %vm1264, %v1261, %v1262
        %v1267 = vsel %vm1264, %v1260, %v1261
        %v1268 = vsel %vm1264, %v1259, %v1260
        %v1269 = vsel %vm1264, %v1258, %v1259
        %v1270 = vsel %vm1264, %v1257, %v1258
        %v1271 = vsel %vm1264, %v1256, %v1257
        %v1272 = vsel %vm1264, %v1255, %v1256
        %v1273 = vsel %vm1264, %v1254, %v1255
        %v1274 = vsel %vm1264, %v1253, %v1254
        %v1275 = vsel %vm1264, %v1252, %v1253
        %v1276 = vsel %vm1264, %v1251, %v1252
        %v1277 = vsel %vm1264, %v1250, %v1251
        %v1278 = vsel %vm1264, %v1249, %v1250
        %v1279 = vsel %vm1264, %v1248, %v1249
        %v1280 = vsel %vm1264, %v1247, %v1248
        %v1281 = vsel %vm1264, %v1246, %v1247
        %v1282 = vsel %vm1264, %v1245, %v1246
        %v1283 = vsel %vm1264, %v1244, %v1245
        %v1284 = vsel %vm1264, %v1243, %v1244
        %v1285 = vsel %vm1264, %v1242, %v1243
        %v1286 = vsel %vm1264, %v1241, %v1242
        %v1287 = vsel %vm1264, %v1240, %v1241
        %v1288 = vsel %vm1264, %v1239, %v1240
        %v1289 = vsel %vm1264, %v1238, %v1239
        %v1290 = vsel %vm1264, %v1237, %v1238
        %v1291 = vsel %vm1264, %v1236, %v1237
        %v1292 = vsel %vm1264, %v1235, %v1236
        %v1293 = vsel %vm1264, %v1234, %v1235
        %v1294 = vsel %vm1264, %v1233, %v1234
        %v1295 = vsel %vm1264, %v1232, %v1233
        %v1296 = vsel %vm1264, %v1231, %v1232
        %v1297 = vsel %vm1264, %v1230, %v1231
        %v1298 = vsel %vm1264, %v1229, %v1230
        %v1299 = vsel %vm1264, %v1228, %v1229
        %v1300 = vsel %vm1264, %v1263, %v1228
        %vm1301 = vcmp.gt.s32.totalorder %v823, 0
        %vm1302 = vcmp.gt.s32.totalorder %v824, 0
        %v1303 = vsel %vm1301, 1, 0
        %v1304 = vsel %vm1302, 1, 0
        %vm1305 = vcmp.eq.s32.totalorder %v1303, 1
        %vm1306 = vcmp.eq.s32.totalorder %v1304, 1
        %v1307 = vsel %vm1305, %v1227, 0.0
        %v1308 = vsel %vm1306, %v1226, 0.0
        %v1309 = vsel %vm1305, %v1225, 0.0
        %v1310 = vsel %vm1306, %v1224, 0.0
        %v1311 = vsel %vm1305, %v1223, 0.0
        %v1312 = vsel %vm1306, %v1222, 0.0
        %v1313 = vsel %vm1305, %v1221, 0.0
        %v1314 = vsel %vm1306, %v1220, 0.0
        %v1315 = vsel %vm1305, %v1219, 0.0
        %v1316 = vsel %vm1306, %v1218, 0.0
        %v1317 = vsel %vm1305, %v1217, 0.0
        %v1318 = vsel %vm1306, %v1216, 0.0
        %v1319 = vsel %vm1305, %v1215, 0.0
        %v1320 = vsel %vm1306, %v1214, 0.0
        %v1321 = vsel %vm1305, %v1213, 0.0
        %v1322 = vsel %vm1306, %v1212, 0.0
        %v1323 = vsel %vm1305, %v1211, 0.0
        %v1324 = vsel %vm1306, %v1210, 0.0
        %v1325 = vsel %vm1305, %v1209, 0.0
        %v1326 = vsel %vm1306, %v1208, 0.0
        %v1327 = vsel %vm1305, %v1207, 0.0
        %v1328 = vsel %vm1306, %v1206, 0.0
        %v1329 = vsel %vm1305, %v1205, 0.0
        %v1330 = vsel %vm1306, %v1204, 0.0
        %v1331 = vsel %vm1305, %v1203, 0.0
        %v1332 = vsel %vm1306, %v1202, 0.0
        %v1333 = vsel %vm1305, %v1201, 0.0
        %v1334 = vsel %vm1306, %v1200, 0.0
        %v1335 = vsel %vm1305, %v1199, 0.0
        %v1336 = vsel %vm1306, %v1198, 0.0
        %v1337 = vsel %vm1305, %v1197, 0.0
        %v1338 = vsel %vm1306, %v1196, 0.0
        %v1339 = vsel %vm1305, %v1195, 0.0
        %v1340 = vsel %vm1306, %v1194, 0.0
        %v1341 = vsel %vm1305, %v1193, 0.0
        %v1342 = vsel %vm1306, %v1192, 0.0
        %vm1343 = vcmp.lt.s32.totalorder %v823, 15
        %vm1344 = vcmp.lt.s32.totalorder %v824, 15
        %v1345 = vsel %vm1343, 1, 0
        %v1346 = vsel %vm1344, 1, 0
        %vm1347 = vcmp.eq.s32.totalorder %v1345, 1
        %vm1348 = vcmp.eq.s32.totalorder %v1346, 1
        %v1349 = vsel %vm1347, %v1299, 0.0
        %v1350 = vsel %vm1348, %v1298, 0.0
        %v1351 = vsel %vm1347, %v1297, 0.0
        %v1352 = vsel %vm1348, %v1296, 0.0
        %v1353 = vsel %vm1347, %v1295, 0.0
        %v1354 = vsel %vm1348, %v1294, 0.0
        %v1355 = vsel %vm1347, %v1293, 0.0
        %v1356 = vsel %vm1348, %v1292, 0.0
        %v1357 = vsel %vm1347, %v1291, 0.0
        %v1358 = vsel %vm1348, %v1290, 0.0
        %v1359 = vsel %vm1347, %v1289, 0.0
        %v1360 = vsel %vm1348, %v1288, 0.0
        %v1361 = vsel %vm1347, %v1287, 0.0
        %v1362 = vsel %vm1348, %v1286, 0.0
        %v1363 = vsel %vm1347, %v1285, 0.0
        %v1364 = vsel %vm1348, %v1284, 0.0
        %v1365 = vsel %vm1347, %v1283, 0.0
        %v1366 = vsel %vm1348, %v1282, 0.0
        %v1367 = vsel %vm1347, %v1281, 0.0
        %v1368 = vsel %vm1348, %v1280, 0.0
        %v1369 = vsel %vm1347, %v1279, 0.0
        %v1370 = vsel %vm1348, %v1278, 0.0
        %v1371 = vsel %vm1347, %v1277, 0.0
        %v1372 = vsel %vm1348, %v1276, 0.0
        %v1373 = vsel %vm1347, %v1275, 0.0
        %v1374 = vsel %vm1348, %v1274, 0.0
        %v1375 = vsel %vm1347, %v1273, 0.0
        %v1376 = vsel %vm1348, %v1272, 0.0
        %v1377 = vsel %vm1347, %v1271, 0.0
        %v1378 = vsel %vm1348, %v1270, 0.0
        %v1379 = vsel %vm1347, %v1269, 0.0
        %v1380 = vsel %vm1348, %v1268, 0.0
        %v1381 = vsel %vm1347, %v1267, 0.0
        %v1382 = vsel %vm1348, %v1266, 0.0
        %v1383 = vsel %vm1347, %v1265, 0.0
        %v1384 = vsel %vm1348, %v1300, 0.0
        %v1385 = vld [vmem:[%s5] sm:$0x7]
        %v1386 = vld [vmem:[%s5 + $0x4] sm:$0x7]
        %v1387 = vld [vmem:[%s5 + $0x8] sm:$0x7]
        %v1388 = vld [vmem:[%s6] sm:$0x1]
        %v1389 = vlaneseq
        %v1390 = vshrl.u32 %v1389, 7
        %v1391 = vsub.s32 0, %v1390
        %v1392 = vrot.slane %v1385, %v1391
        %v1393 = vmul.f32 %v1307, %v1392
        %v1394 = vmul.f32 %v1308, %v1392
        %v1395 = vmul.f32 %v1309, %v1392
        %v1396 = vmul.f32 %v1310, %v1392
        %v1397 = vmul.f32 %v1311, %v1392
        %v1398 = vmul.f32 %v1312, %v1392
        %v1399 = vmul.f32 %v1313, %v1392
        %v1400 = vmul.f32 %v1314, %v1392
        %v1401 = vmul.f32 %v1315, %v1392
        %v1402 = vmul.f32 %v1316, %v1392
        %v1403 = vmul.f32 %v1317, %v1392
        %v1404 = vmul.f32 %v1318, %v1392
        %v1405 = vmul.f32 %v1319, %v1392
        %v1406 = vmul.f32 %v1320, %v1392
        %v1407 = vmul.f32 %v1321, %v1392
        %v1408 = vmul.f32 %v1322, %v1392
        %v1409 = vmul.f32 %v1323, %v1392
        %v1410 = vmul.f32 %v1324, %v1392
        %v1411 = vmul.f32 %v1325, %v1392
        %v1412 = vmul.f32 %v1326, %v1392
        %v1413 = vmul.f32 %v1327, %v1392
        %v1414 = vmul.f32 %v1328, %v1392
        %v1415 = vmul.f32 %v1329, %v1392
        %v1416 = vmul.f32 %v1330, %v1392
        %v1417 = vmul.f32 %v1331, %v1392
        %v1418 = vmul.f32 %v1332, %v1392
        %v1419 = vmul.f32 %v1333, %v1392
        %v1420 = vmul.f32 %v1334, %v1392
        %v1421 = vmul.f32 %v1335, %v1392
        %v1422 = vmul.f32 %v1336, %v1392
        %v1423 = vmul.f32 %v1337, %v1392
        %v1424 = vmul.f32 %v1338, %v1392
        %v1425 = vlaneseq
        %v1426 = vshrl.u32 %v1425, 7
        %v1427 = vsub.s32 1, %v1426
        %v1428 = vrot.slane %v1385, %v1427
        %v1429 = vmul.f32 %v1119, %v1428
        %v1430 = vmul.f32 %v1120, %v1428
        %v1431 = vmul.f32 %v1121, %v1428
        %v1432 = vmul.f32 %v1122, %v1428
        %v1433 = vmul.f32 %v1123, %v1428
        %v1434 = vmul.f32 %v1124, %v1428
        %v1435 = vmul.f32 %v1125, %v1428
        %v1436 = vmul.f32 %v1126, %v1428
        %v1437 = vmul.f32 %v1127, %v1428
        %v1438 = vmul.f32 %v1128, %v1428
        %v1439 = vmul.f32 %v1129, %v1428
        %v1440 = vmul.f32 %v1130, %v1428
        %v1441 = vmul.f32 %v1131, %v1428
        %v1442 = vmul.f32 %v1132, %v1428
        %v1443 = vmul.f32 %v1133, %v1428
        %v1444 = vmul.f32 %v1134, %v1428
        %v1445 = vmul.f32 %v1135, %v1428
        %v1446 = vmul.f32 %v1136, %v1428
        %v1447 = vmul.f32 %v1137, %v1428
        %v1448 = vmul.f32 %v1138, %v1428
        %v1449 = vmul.f32 %v1139, %v1428
        %v1450 = vmul.f32 %v1140, %v1428
        %v1451 = vmul.f32 %v1141, %v1428
        %v1452 = vmul.f32 %v1142, %v1428
        %v1453 = vmul.f32 %v1143, %v1428
        %v1454 = vmul.f32 %v1144, %v1428
        %v1455 = vmul.f32 %v1145, %v1428
        %v1456 = vmul.f32 %v1146, %v1428
        %v1457 = vmul.f32 %v1147, %v1428
        %v1458 = vmul.f32 %v1148, %v1428
        %v1459 = vmul.f32 %v1149, %v1428
        %v1460 = vmul.f32 %v1150, %v1428
        %v1461 = vadd.f32 %v1393, %v1429
        %v1462 = vadd.f32 %v1394, %v1430
        %v1463 = vadd.f32 %v1395, %v1431
        %v1464 = vadd.f32 %v1396, %v1432
        %v1465 = vadd.f32 %v1397, %v1433
        %v1466 = vadd.f32 %v1398, %v1434
        %v1467 = vadd.f32 %v1399, %v1435
        %v1468 = vadd.f32 %v1400, %v1436
        %v1469 = vadd.f32 %v1401, %v1437
        %v1470 = vadd.f32 %v1402, %v1438
        %v1471 = vadd.f32 %v1403, %v1439
        %v1472 = vadd.f32 %v1404, %v1440
        %v1473 = vadd.f32 %v1405, %v1441
        %v1474 = vadd.f32 %v1406, %v1442
        %v1475 = vadd.f32 %v1407, %v1443
        %v1476 = vadd.f32 %v1408, %v1444
        %v1477 = vadd.f32 %v1409, %v1445
        %v1478 = vadd.f32 %v1410, %v1446
        %v1479 = vadd.f32 %v1411, %v1447
        %v1480 = vadd.f32 %v1412, %v1448
        %v1481 = vadd.f32 %v1413, %v1449
        %v1482 = vadd.f32 %v1414, %v1450
        %v1483 = vadd.f32 %v1415, %v1451
        %v1484 = vadd.f32 %v1416, %v1452
        %v1485 = vadd.f32 %v1417, %v1453
        %v1486 = vadd.f32 %v1418, %v1454
        %v1487 = vadd.f32 %v1419, %v1455
        %v1488 = vadd.f32 %v1420, %v1456
        %v1489 = vadd.f32 %v1421, %v1457
        %v1490 = vadd.f32 %v1422, %v1458
        %v1491 = vadd.f32 %v1423, %v1459
        %v1492 = vadd.f32 %v1424, %v1460
        %v1493 = vlaneseq
        %v1494 = vshrl.u32 %v1493, 7
        %v1495 = vsub.s32 2, %v1494
        %v1496 = vrot.slane %v1385, %v1495
        %v1497 = vmul.f32 %v1349, %v1496
        %v1498 = vmul.f32 %v1350, %v1496
        %v1499 = vmul.f32 %v1351, %v1496
        %v1500 = vmul.f32 %v1352, %v1496
        %v1501 = vmul.f32 %v1353, %v1496
        %v1502 = vmul.f32 %v1354, %v1496
        %v1503 = vmul.f32 %v1355, %v1496
        %v1504 = vmul.f32 %v1356, %v1496
        %v1505 = vmul.f32 %v1357, %v1496
        %v1506 = vmul.f32 %v1358, %v1496
        %v1507 = vmul.f32 %v1359, %v1496
        %v1508 = vmul.f32 %v1360, %v1496
        %v1509 = vmul.f32 %v1361, %v1496
        %v1510 = vmul.f32 %v1362, %v1496
        %v1511 = vmul.f32 %v1363, %v1496
        %v1512 = vmul.f32 %v1364, %v1496
        %v1513 = vmul.f32 %v1365, %v1496
        %v1514 = vmul.f32 %v1366, %v1496
        %v1515 = vmul.f32 %v1367, %v1496
        %v1516 = vmul.f32 %v1368, %v1496
        %v1517 = vmul.f32 %v1369, %v1496
        %v1518 = vmul.f32 %v1370, %v1496
        %v1519 = vmul.f32 %v1371, %v1496
        %v1520 = vmul.f32 %v1372, %v1496
        %v1521 = vmul.f32 %v1373, %v1496
        %v1522 = vmul.f32 %v1374, %v1496
        %v1523 = vmul.f32 %v1375, %v1496
        %v1524 = vmul.f32 %v1376, %v1496
        %v1525 = vmul.f32 %v1377, %v1496
        %v1526 = vmul.f32 %v1378, %v1496
        %v1527 = vmul.f32 %v1379, %v1496
        %v1528 = vmul.f32 %v1380, %v1496
        %v1529 = vadd.f32 %v1461, %v1497
        %v1530 = vadd.f32 %v1462, %v1498
        %v1531 = vadd.f32 %v1463, %v1499
        %v1532 = vadd.f32 %v1464, %v1500
        %v1533 = vadd.f32 %v1465, %v1501
        %v1534 = vadd.f32 %v1466, %v1502
        %v1535 = vadd.f32 %v1467, %v1503
        %v1536 = vadd.f32 %v1468, %v1504
        %v1537 = vadd.f32 %v1469, %v1505
        %v1538 = vadd.f32 %v1470, %v1506
        %v1539 = vadd.f32 %v1471, %v1507
        %v1540 = vadd.f32 %v1472, %v1508
        %v1541 = vadd.f32 %v1473, %v1509
        %v1542 = vadd.f32 %v1474, %v1510
        %v1543 = vadd.f32 %v1475, %v1511
        %v1544 = vadd.f32 %v1476, %v1512
        %v1545 = vadd.f32 %v1477, %v1513
        %v1546 = vadd.f32 %v1478, %v1514
        %v1547 = vadd.f32 %v1479, %v1515
        %v1548 = vadd.f32 %v1480, %v1516
        %v1549 = vadd.f32 %v1481, %v1517
        %v1550 = vadd.f32 %v1482, %v1518
        %v1551 = vadd.f32 %v1483, %v1519
        %v1552 = vadd.f32 %v1484, %v1520
        %v1553 = vadd.f32 %v1485, %v1521
        %v1554 = vadd.f32 %v1486, %v1522
        %v1555 = vadd.f32 %v1487, %v1523
        %v1556 = vadd.f32 %v1488, %v1524
        %v1557 = vadd.f32 %v1489, %v1525
        %v1558 = vadd.f32 %v1490, %v1526
        %v1559 = vadd.f32 %v1491, %v1527
        %v1560 = vadd.f32 %v1492, %v1528
        %v1561 = vlaneseq
        %v1562 = vshrl.u32 %v1561, 7
        %v1563 = vsub.s32 0, %v1562
        %v1564 = vrot.slane %v1386, %v1563
        %v1565 = vmul.f32 %v1309, %v1564
        %v1566 = vmul.f32 %v1310, %v1564
        %v1567 = vmul.f32 %v1311, %v1564
        %v1568 = vmul.f32 %v1312, %v1564
        %v1569 = vmul.f32 %v1313, %v1564
        %v1570 = vmul.f32 %v1314, %v1564
        %v1571 = vmul.f32 %v1315, %v1564
        %v1572 = vmul.f32 %v1316, %v1564
        %v1573 = vmul.f32 %v1317, %v1564
        %v1574 = vmul.f32 %v1318, %v1564
        %v1575 = vmul.f32 %v1319, %v1564
        %v1576 = vmul.f32 %v1320, %v1564
        %v1577 = vmul.f32 %v1321, %v1564
        %v1578 = vmul.f32 %v1322, %v1564
        %v1579 = vmul.f32 %v1323, %v1564
        %v1580 = vmul.f32 %v1324, %v1564
        %v1581 = vmul.f32 %v1325, %v1564
        %v1582 = vmul.f32 %v1326, %v1564
        %v1583 = vmul.f32 %v1327, %v1564
        %v1584 = vmul.f32 %v1328, %v1564
        %v1585 = vmul.f32 %v1329, %v1564
        %v1586 = vmul.f32 %v1330, %v1564
        %v1587 = vmul.f32 %v1331, %v1564
        %v1588 = vmul.f32 %v1332, %v1564
        %v1589 = vmul.f32 %v1333, %v1564
        %v1590 = vmul.f32 %v1334, %v1564
        %v1591 = vmul.f32 %v1335, %v1564
        %v1592 = vmul.f32 %v1336, %v1564
        %v1593 = vmul.f32 %v1337, %v1564
        %v1594 = vmul.f32 %v1338, %v1564
        %v1595 = vmul.f32 %v1339, %v1564
        %v1596 = vmul.f32 %v1340, %v1564
        %v1597 = vlaneseq
        %v1598 = vshrl.u32 %v1597, 7
        %v1599 = vsub.s32 1, %v1598
        %v1600 = vrot.slane %v1386, %v1599
        %v1601 = vmul.f32 %v1121, %v1600
        %v1602 = vmul.f32 %v1122, %v1600
        %v1603 = vmul.f32 %v1123, %v1600
        %v1604 = vmul.f32 %v1124, %v1600
        %v1605 = vmul.f32 %v1125, %v1600
        %v1606 = vmul.f32 %v1126, %v1600
        %v1607 = vmul.f32 %v1127, %v1600
        %v1608 = vmul.f32 %v1128, %v1600
        %v1609 = vmul.f32 %v1129, %v1600
        %v1610 = vmul.f32 %v1130, %v1600
        %v1611 = vmul.f32 %v1131, %v1600
        %v1612 = vmul.f32 %v1132, %v1600
        %v1613 = vmul.f32 %v1133, %v1600
        %v1614 = vmul.f32 %v1134, %v1600
        %v1615 = vmul.f32 %v1135, %v1600
        %v1616 = vmul.f32 %v1136, %v1600
        %v1617 = vmul.f32 %v1137, %v1600
        %v1618 = vmul.f32 %v1138, %v1600
        %v1619 = vmul.f32 %v1139, %v1600
        %v1620 = vmul.f32 %v1140, %v1600
        %v1621 = vmul.f32 %v1141, %v1600
        %v1622 = vmul.f32 %v1142, %v1600
        %v1623 = vmul.f32 %v1143, %v1600
        %v1624 = vmul.f32 %v1144, %v1600
        %v1625 = vmul.f32 %v1145, %v1600
        %v1626 = vmul.f32 %v1146, %v1600
        %v1627 = vmul.f32 %v1147, %v1600
        %v1628 = vmul.f32 %v1148, %v1600
        %v1629 = vmul.f32 %v1149, %v1600
        %v1630 = vmul.f32 %v1150, %v1600
        %v1631 = vmul.f32 %v1151, %v1600
        %v1632 = vmul.f32 %v1152, %v1600
        %v1633 = vadd.f32 %v1565, %v1601
        %v1634 = vadd.f32 %v1566, %v1602
        %v1635 = vadd.f32 %v1567, %v1603
        %v1636 = vadd.f32 %v1568, %v1604
        %v1637 = vadd.f32 %v1569, %v1605
        %v1638 = vadd.f32 %v1570, %v1606
        %v1639 = vadd.f32 %v1571, %v1607
        %v1640 = vadd.f32 %v1572, %v1608
        %v1641 = vadd.f32 %v1573, %v1609
        %v1642 = vadd.f32 %v1574, %v1610
        %v1643 = vadd.f32 %v1575, %v1611
        %v1644 = vadd.f32 %v1576, %v1612
        %v1645 = vadd.f32 %v1577, %v1613
        %v1646 = vadd.f32 %v1578, %v1614
        %v1647 = vadd.f32 %v1579, %v1615
        %v1648 = vadd.f32 %v1580, %v1616
        %v1649 = vadd.f32 %v1581, %v1617
        %v1650 = vadd.f32 %v1582, %v1618
        %v1651 = vadd.f32 %v1583, %v1619
        %v1652 = vadd.f32 %v1584, %v1620
        %v1653 = vadd.f32 %v1585, %v1621
        %v1654 = vadd.f32 %v1586, %v1622
        %v1655 = vadd.f32 %v1587, %v1623
        %v1656 = vadd.f32 %v1588, %v1624
        %v1657 = vadd.f32 %v1589, %v1625
        %v1658 = vadd.f32 %v1590, %v1626
        %v1659 = vadd.f32 %v1591, %v1627
        %v1660 = vadd.f32 %v1592, %v1628
        %v1661 = vadd.f32 %v1593, %v1629
        %v1662 = vadd.f32 %v1594, %v1630
        %v1663 = vadd.f32 %v1595, %v1631
        %v1664 = vadd.f32 %v1596, %v1632
        %v1665 = vlaneseq
        %v1666 = vshrl.u32 %v1665, 7
        %v1667 = vsub.s32 2, %v1666
        %v1668 = vrot.slane %v1386, %v1667
        %v1669 = vmul.f32 %v1351, %v1668
        %v1670 = vmul.f32 %v1352, %v1668
        %v1671 = vmul.f32 %v1353, %v1668
        %v1672 = vmul.f32 %v1354, %v1668
        %v1673 = vmul.f32 %v1355, %v1668
        %v1674 = vmul.f32 %v1356, %v1668
        %v1675 = vmul.f32 %v1357, %v1668
        %v1676 = vmul.f32 %v1358, %v1668
        %v1677 = vmul.f32 %v1359, %v1668
        %v1678 = vmul.f32 %v1360, %v1668
        %v1679 = vmul.f32 %v1361, %v1668
        %v1680 = vmul.f32 %v1362, %v1668
        %v1681 = vmul.f32 %v1363, %v1668
        %v1682 = vmul.f32 %v1364, %v1668
        %v1683 = vmul.f32 %v1365, %v1668
        %v1684 = vmul.f32 %v1366, %v1668
        %v1685 = vmul.f32 %v1367, %v1668
        %v1686 = vmul.f32 %v1368, %v1668
        %v1687 = vmul.f32 %v1369, %v1668
        %v1688 = vmul.f32 %v1370, %v1668
        %v1689 = vmul.f32 %v1371, %v1668
        %v1690 = vmul.f32 %v1372, %v1668
        %v1691 = vmul.f32 %v1373, %v1668
        %v1692 = vmul.f32 %v1374, %v1668
        %v1693 = vmul.f32 %v1375, %v1668
        %v1694 = vmul.f32 %v1376, %v1668
        %v1695 = vmul.f32 %v1377, %v1668
        %v1696 = vmul.f32 %v1378, %v1668
        %v1697 = vmul.f32 %v1379, %v1668
        %v1698 = vmul.f32 %v1380, %v1668
        %v1699 = vmul.f32 %v1381, %v1668
        %v1700 = vmul.f32 %v1382, %v1668
        %v1701 = vadd.f32 %v1633, %v1669
        %v1702 = vadd.f32 %v1634, %v1670
        %v1703 = vadd.f32 %v1635, %v1671
        %v1704 = vadd.f32 %v1636, %v1672
        %v1705 = vadd.f32 %v1637, %v1673
        %v1706 = vadd.f32 %v1638, %v1674
        %v1707 = vadd.f32 %v1639, %v1675
        %v1708 = vadd.f32 %v1640, %v1676
        %v1709 = vadd.f32 %v1641, %v1677
        %v1710 = vadd.f32 %v1642, %v1678
        %v1711 = vadd.f32 %v1643, %v1679
        %v1712 = vadd.f32 %v1644, %v1680
        %v1713 = vadd.f32 %v1645, %v1681
        %v1714 = vadd.f32 %v1646, %v1682
        %v1715 = vadd.f32 %v1647, %v1683
        %v1716 = vadd.f32 %v1648, %v1684
        %v1717 = vadd.f32 %v1649, %v1685
        %v1718 = vadd.f32 %v1650, %v1686
        %v1719 = vadd.f32 %v1651, %v1687
        %v1720 = vadd.f32 %v1652, %v1688
        %v1721 = vadd.f32 %v1653, %v1689
        %v1722 = vadd.f32 %v1654, %v1690
        %v1723 = vadd.f32 %v1655, %v1691
        %v1724 = vadd.f32 %v1656, %v1692
        %v1725 = vadd.f32 %v1657, %v1693
        %v1726 = vadd.f32 %v1658, %v1694
        %v1727 = vadd.f32 %v1659, %v1695
        %v1728 = vadd.f32 %v1660, %v1696
        %v1729 = vadd.f32 %v1661, %v1697
        %v1730 = vadd.f32 %v1662, %v1698
        %v1731 = vadd.f32 %v1663, %v1699
        %v1732 = vadd.f32 %v1664, %v1700
        %v1733 = vlaneseq
        %v1734 = vshrl.u32 %v1733, 7
        %v1735 = vsub.s32 0, %v1734
        %v1736 = vrot.slane %v1387, %v1735
        %v1737 = vmul.f32 %v1311, %v1736
        %v1738 = vmul.f32 %v1312, %v1736
        %v1739 = vmul.f32 %v1313, %v1736
        %v1740 = vmul.f32 %v1314, %v1736
        %v1741 = vmul.f32 %v1315, %v1736
        %v1742 = vmul.f32 %v1316, %v1736
        %v1743 = vmul.f32 %v1317, %v1736
        %v1744 = vmul.f32 %v1318, %v1736
        %v1745 = vmul.f32 %v1319, %v1736
        %v1746 = vmul.f32 %v1320, %v1736
        %v1747 = vmul.f32 %v1321, %v1736
        %v1748 = vmul.f32 %v1322, %v1736
        %v1749 = vmul.f32 %v1323, %v1736
        %v1750 = vmul.f32 %v1324, %v1736
        %v1751 = vmul.f32 %v1325, %v1736
        %v1752 = vmul.f32 %v1326, %v1736
        %v1753 = vmul.f32 %v1327, %v1736
        %v1754 = vmul.f32 %v1328, %v1736
        %v1755 = vmul.f32 %v1329, %v1736
        %v1756 = vmul.f32 %v1330, %v1736
        %v1757 = vmul.f32 %v1331, %v1736
        %v1758 = vmul.f32 %v1332, %v1736
        %v1759 = vmul.f32 %v1333, %v1736
        %v1760 = vmul.f32 %v1334, %v1736
        %v1761 = vmul.f32 %v1335, %v1736
        %v1762 = vmul.f32 %v1336, %v1736
        %v1763 = vmul.f32 %v1337, %v1736
        %v1764 = vmul.f32 %v1338, %v1736
        %v1765 = vmul.f32 %v1339, %v1736
        %v1766 = vmul.f32 %v1340, %v1736
        %v1767 = vmul.f32 %v1341, %v1736
        %v1768 = vmul.f32 %v1342, %v1736
        %v1769 = vlaneseq
        %v1770 = vshrl.u32 %v1769, 7
        %v1771 = vsub.s32 1, %v1770
        %v1772 = vrot.slane %v1387, %v1771
        %v1773 = vmul.f32 %v1123, %v1772
        %v1774 = vmul.f32 %v1124, %v1772
        %v1775 = vmul.f32 %v1125, %v1772
        %v1776 = vmul.f32 %v1126, %v1772
        %v1777 = vmul.f32 %v1127, %v1772
        %v1778 = vmul.f32 %v1128, %v1772
        %v1779 = vmul.f32 %v1129, %v1772
        %v1780 = vmul.f32 %v1130, %v1772
        %v1781 = vmul.f32 %v1131, %v1772
        %v1782 = vmul.f32 %v1132, %v1772
        %v1783 = vmul.f32 %v1133, %v1772
        %v1784 = vmul.f32 %v1134, %v1772
        %v1785 = vmul.f32 %v1135, %v1772
        %v1786 = vmul.f32 %v1136, %v1772
        %v1787 = vmul.f32 %v1137, %v1772
        %v1788 = vmul.f32 %v1138, %v1772
        %v1789 = vmul.f32 %v1139, %v1772
        %v1790 = vmul.f32 %v1140, %v1772
        %v1791 = vmul.f32 %v1141, %v1772
        %v1792 = vmul.f32 %v1142, %v1772
        %v1793 = vmul.f32 %v1143, %v1772
        %v1794 = vmul.f32 %v1144, %v1772
        %v1795 = vmul.f32 %v1145, %v1772
        %v1796 = vmul.f32 %v1146, %v1772
        %v1797 = vmul.f32 %v1147, %v1772
        %v1798 = vmul.f32 %v1148, %v1772
        %v1799 = vmul.f32 %v1149, %v1772
        %v1800 = vmul.f32 %v1150, %v1772
        %v1801 = vmul.f32 %v1151, %v1772
        %v1802 = vmul.f32 %v1152, %v1772
        %v1803 = vmul.f32 %v1153, %v1772
        %v1804 = vmul.f32 %v1154, %v1772
        %v1805 = vadd.f32 %v1737, %v1773
        %v1806 = vadd.f32 %v1738, %v1774
        %v1807 = vadd.f32 %v1739, %v1775
        %v1808 = vadd.f32 %v1740, %v1776
        %v1809 = vadd.f32 %v1741, %v1777
        %v1810 = vadd.f32 %v1742, %v1778
        %v1811 = vadd.f32 %v1743, %v1779
        %v1812 = vadd.f32 %v1744, %v1780
        %v1813 = vadd.f32 %v1745, %v1781
        %v1814 = vadd.f32 %v1746, %v1782
        %v1815 = vadd.f32 %v1747, %v1783
        %v1816 = vadd.f32 %v1748, %v1784
        %v1817 = vadd.f32 %v1749, %v1785
        %v1818 = vadd.f32 %v1750, %v1786
        %v1819 = vadd.f32 %v1751, %v1787
        %v1820 = vadd.f32 %v1752, %v1788
        %v1821 = vadd.f32 %v1753, %v1789
        %v1822 = vadd.f32 %v1754, %v1790
        %v1823 = vadd.f32 %v1755, %v1791
        %v1824 = vadd.f32 %v1756, %v1792
        %v1825 = vadd.f32 %v1757, %v1793
        %v1826 = vadd.f32 %v1758, %v1794
        %v1827 = vadd.f32 %v1759, %v1795
        %v1828 = vadd.f32 %v1760, %v1796
        %v1829 = vadd.f32 %v1761, %v1797
        %v1830 = vadd.f32 %v1762, %v1798
        %v1831 = vadd.f32 %v1763, %v1799
        %v1832 = vadd.f32 %v1764, %v1800
        %v1833 = vadd.f32 %v1765, %v1801
        %v1834 = vadd.f32 %v1766, %v1802
        %v1835 = vadd.f32 %v1767, %v1803
        %v1836 = vadd.f32 %v1768, %v1804
        %v1837 = vlaneseq
        %v1838 = vshrl.u32 %v1837, 7
        %v1839 = vsub.s32 2, %v1838
        %v1840 = vrot.slane %v1387, %v1839
        %v1841 = vmul.f32 %v1353, %v1840
        %v1842 = vmul.f32 %v1354, %v1840
        %v1843 = vmul.f32 %v1355, %v1840
        %v1844 = vmul.f32 %v1356, %v1840
        %v1845 = vmul.f32 %v1357, %v1840
        %v1846 = vmul.f32 %v1358, %v1840
        %v1847 = vmul.f32 %v1359, %v1840
        %v1848 = vmul.f32 %v1360, %v1840
        %v1849 = vmul.f32 %v1361, %v1840
        %v1850 = vmul.f32 %v1362, %v1840
        %v1851 = vmul.f32 %v1363, %v1840
        %v1852 = vmul.f32 %v1364, %v1840
        %v1853 = vmul.f32 %v1365, %v1840
        %v1854 = vmul.f32 %v1366, %v1840
        %v1855 = vmul.f32 %v1367, %v1840
        %v1856 = vmul.f32 %v1368, %v1840
        %v1857 = vmul.f32 %v1369, %v1840
        %v1858 = vmul.f32 %v1370, %v1840
        %v1859 = vmul.f32 %v1371, %v1840
        %v1860 = vmul.f32 %v1372, %v1840
        %v1861 = vmul.f32 %v1373, %v1840
        %v1862 = vmul.f32 %v1374, %v1840
        %v1863 = vmul.f32 %v1375, %v1840
        %v1864 = vmul.f32 %v1376, %v1840
        %v1865 = vmul.f32 %v1377, %v1840
        %v1866 = vmul.f32 %v1378, %v1840
        %v1867 = vmul.f32 %v1379, %v1840
        %v1868 = vmul.f32 %v1380, %v1840
        %v1869 = vmul.f32 %v1381, %v1840
        %v1870 = vmul.f32 %v1382, %v1840
        %v1871 = vmul.f32 %v1383, %v1840
        %v1872 = vmul.f32 %v1384, %v1840
        %v1873 = vadd.f32 %v1805, %v1841
        %v1874 = vadd.f32 %v1806, %v1842
        %v1875 = vadd.f32 %v1807, %v1843
        %v1876 = vadd.f32 %v1808, %v1844
        %v1877 = vadd.f32 %v1809, %v1845
        %v1878 = vadd.f32 %v1810, %v1846
        %v1879 = vadd.f32 %v1811, %v1847
        %v1880 = vadd.f32 %v1812, %v1848
        %v1881 = vadd.f32 %v1813, %v1849
        %v1882 = vadd.f32 %v1814, %v1850
        %v1883 = vadd.f32 %v1815, %v1851
        %v1884 = vadd.f32 %v1816, %v1852
        %v1885 = vadd.f32 %v1817, %v1853
        %v1886 = vadd.f32 %v1818, %v1854
        %v1887 = vadd.f32 %v1819, %v1855
        %v1888 = vadd.f32 %v1820, %v1856
        %v1889 = vadd.f32 %v1821, %v1857
        %v1890 = vadd.f32 %v1822, %v1858
        %v1891 = vadd.f32 %v1823, %v1859
        %v1892 = vadd.f32 %v1824, %v1860
        %v1893 = vadd.f32 %v1825, %v1861
        %v1894 = vadd.f32 %v1826, %v1862
        %v1895 = vadd.f32 %v1827, %v1863
        %v1896 = vadd.f32 %v1828, %v1864
        %v1897 = vadd.f32 %v1829, %v1865
        %v1898 = vadd.f32 %v1830, %v1866
        %v1899 = vadd.f32 %v1831, %v1867
        %v1900 = vadd.f32 %v1832, %v1868
        %v1901 = vadd.f32 %v1833, %v1869
        %v1902 = vadd.f32 %v1834, %v1870
        %v1903 = vadd.f32 %v1835, %v1871
        %v1904 = vadd.f32 %v1836, %v1872
        %v1905 = vadd.f32 %v1529, %v1701
        %v1906 = vadd.f32 %v1530, %v1702
        %v1907 = vadd.f32 %v1531, %v1703
        %v1908 = vadd.f32 %v1532, %v1704
        %v1909 = vadd.f32 %v1533, %v1705
        %v1910 = vadd.f32 %v1534, %v1706
        %v1911 = vadd.f32 %v1535, %v1707
        %v1912 = vadd.f32 %v1536, %v1708
        %v1913 = vadd.f32 %v1537, %v1709
        %v1914 = vadd.f32 %v1538, %v1710
        %v1915 = vadd.f32 %v1539, %v1711
        %v1916 = vadd.f32 %v1540, %v1712
        %v1917 = vadd.f32 %v1541, %v1713
        %v1918 = vadd.f32 %v1542, %v1714
        %v1919 = vadd.f32 %v1543, %v1715
        %v1920 = vadd.f32 %v1544, %v1716
        %v1921 = vadd.f32 %v1545, %v1717
        %v1922 = vadd.f32 %v1546, %v1718
        %v1923 = vadd.f32 %v1547, %v1719
        %v1924 = vadd.f32 %v1548, %v1720
        %v1925 = vadd.f32 %v1549, %v1721
        %v1926 = vadd.f32 %v1550, %v1722
        %v1927 = vadd.f32 %v1551, %v1723
        %v1928 = vadd.f32 %v1552, %v1724
        %v1929 = vadd.f32 %v1553, %v1725
        %v1930 = vadd.f32 %v1554, %v1726
        %v1931 = vadd.f32 %v1555, %v1727
        %v1932 = vadd.f32 %v1556, %v1728
        %v1933 = vadd.f32 %v1557, %v1729
        %v1934 = vadd.f32 %v1558, %v1730
        %v1935 = vadd.f32 %v1559, %v1731
        %v1936 = vadd.f32 %v1560, %v1732
        %v1938 = vlaneseq
        %v1939 = vshrl.u32 %v1938, 7
        %v1940 = vsub.s32 0, %v1939
        %v1941 = vrot.slane %v1388, %v1940
        %v1943 = vadd.f32 %v1873, %v1941
        %v1944 = vadd.f32 %v1874, %v1941
        %v1945 = vadd.f32 %v1875, %v1941
        %v1946 = vadd.f32 %v1876, %v1941
        %v1947 = vadd.f32 %v1877, %v1941
        %v1948 = vadd.f32 %v1878, %v1941
        %v1949 = vadd.f32 %v1879, %v1941
        %v1950 = vadd.f32 %v1880, %v1941
        %v1951 = vadd.f32 %v1881, %v1941
        %v1952 = vadd.f32 %v1882, %v1941
        %v1953 = vadd.f32 %v1883, %v1941
        %v1954 = vadd.f32 %v1884, %v1941
        %v1955 = vadd.f32 %v1885, %v1941
        %v1956 = vadd.f32 %v1886, %v1941
        %v1957 = vadd.f32 %v1887, %v1941
        %v1958 = vadd.f32 %v1888, %v1941
        %v1959 = vadd.f32 %v1889, %v1941
        %v1960 = vadd.f32 %v1890, %v1941
        %v1961 = vadd.f32 %v1891, %v1941
        %v1962 = vadd.f32 %v1892, %v1941
        %v1963 = vadd.f32 %v1893, %v1941
        %v1964 = vadd.f32 %v1894, %v1941
        %v1965 = vadd.f32 %v1895, %v1941
        %v1966 = vadd.f32 %v1896, %v1941
        %v1967 = vadd.f32 %v1897, %v1941
        %v1968 = vadd.f32 %v1898, %v1941
        %v1969 = vadd.f32 %v1899, %v1941
        %v1970 = vadd.f32 %v1900, %v1941
        %v1971 = vadd.f32 %v1901, %v1941
        %v1972 = vadd.f32 %v1902, %v1941
        %v1973 = vadd.f32 %v1903, %v1941
        %v1974 = vadd.f32 %v1904, %v1941
        %v1975 = vadd.f32 %v1905, %v1943
        %v1976 = vadd.f32 %v1906, %v1944
        %v1977 = vadd.f32 %v1907, %v1945
        %v1978 = vadd.f32 %v1908, %v1946
        %v1979 = vadd.f32 %v1909, %v1947
        %v1980 = vadd.f32 %v1910, %v1948
        %v1981 = vadd.f32 %v1911, %v1949
        %v1982 = vadd.f32 %v1912, %v1950
        %v1983 = vadd.f32 %v1913, %v1951
        %v1984 = vadd.f32 %v1914, %v1952
        %v1985 = vadd.f32 %v1915, %v1953
        %v1986 = vadd.f32 %v1916, %v1954
        %v1987 = vadd.f32 %v1917, %v1955
        %v1988 = vadd.f32 %v1918, %v1956
        %v1989 = vadd.f32 %v1919, %v1957
        %v1990 = vadd.f32 %v1920, %v1958
        %v1991 = vadd.f32 %v1921, %v1959
        %v1992 = vadd.f32 %v1922, %v1960
        %v1993 = vadd.f32 %v1923, %v1961
        %v1994 = vadd.f32 %v1924, %v1962
        %v1995 = vadd.f32 %v1925, %v1963
        %v1996 = vadd.f32 %v1926, %v1964
        %v1997 = vadd.f32 %v1927, %v1965
        %v1998 = vadd.f32 %v1928, %v1966
        %v1999 = vadd.f32 %v1929, %v1967
        %v2000 = vadd.f32 %v1930, %v1968
        %v2001 = vadd.f32 %v1931, %v1969
        %v2002 = vadd.f32 %v1932, %v1970
        %v2003 = vadd.f32 %v1933, %v1971
        %v2004 = vadd.f32 %v1934, %v1972
        %v2005 = vadd.f32 %v1935, %v1973
        %v2006 = vadd.f32 %v1936, %v1974
        %v2007 = vmul.f32 %v1975, 0.5
        %v2008 = vmul.f32 %v1976, 0.5
        %v2009 = vmul.f32 %v1977, 0.5
        %v2010 = vmul.f32 %v1978, 0.5
        %v2011 = vmul.f32 %v1979, 0.5
        %v2012 = vmul.f32 %v1980, 0.5
        %v2013 = vmul.f32 %v1981, 0.5
        %v2014 = vmul.f32 %v1982, 0.5
        %v2015 = vmul.f32 %v1983, 0.5
        %v2016 = vmul.f32 %v1984, 0.5
        %v2017 = vmul.f32 %v1985, 0.5
        %v2018 = vmul.f32 %v1986, 0.5
        %v2019 = vmul.f32 %v1987, 0.5
        %v2020 = vmul.f32 %v1988, 0.5
        %v2021 = vmul.f32 %v1989, 0.5
        %v2022 = vmul.f32 %v1990, 0.5
        %v2023 = vmul.f32 %v1991, 0.5
        %v2024 = vmul.f32 %v1992, 0.5
        %v2025 = vmul.f32 %v1993, 0.5
        %v2026 = vmul.f32 %v1994, 0.5
        %v2027 = vmul.f32 %v1995, 0.5
        %v2028 = vmul.f32 %v1996, 0.5
        %v2029 = vmul.f32 %v1997, 0.5
        %v2030 = vmul.f32 %v1998, 0.5
        %v2031 = vmul.f32 %v1999, 0.5
        %v2032 = vmul.f32 %v2000, 0.5
        %v2033 = vmul.f32 %v2001, 0.5
        %v2034 = vmul.f32 %v2002, 0.5
        %v2035 = vmul.f32 %v2003, 0.5
        %v2036 = vmul.f32 %v2004, 0.5
        %v2037 = vmul.f32 %v2005, 0.5
        %v2038 = vmul.f32 %v2006, 0.5
        %v2039 = vmul.f32 %v1975, 0.70710677
        %v2040 = vmul.f32 %v1976, 0.70710677
        %v2041 = vmul.f32 %v1977, 0.70710677
        %v2042 = vmul.f32 %v1978, 0.70710677
        %v2043 = vmul.f32 %v1979, 0.70710677
        %v2044 = vmul.f32 %v1980, 0.70710677
        %v2045 = vmul.f32 %v1981, 0.70710677
        %v2046 = vmul.f32 %v1982, 0.70710677
        %v2047 = vmul.f32 %v1983, 0.70710677
        %v2048 = vmul.f32 %v1984, 0.70710677
        %v2049 = vmul.f32 %v1985, 0.70710677
        %v2050 = vmul.f32 %v1986, 0.70710677
        %v2051 = vmul.f32 %v1987, 0.70710677
        %v2052 = vmul.f32 %v1988, 0.70710677
        %v2053 = vmul.f32 %v1989, 0.70710677
        %v2054 = vmul.f32 %v1990, 0.70710677
        %v2055 = vmul.f32 %v1991, 0.70710677
        %v2056 = vmul.f32 %v1992, 0.70710677
        %v2057 = vmul.f32 %v1993, 0.70710677
        %v2058 = vmul.f32 %v1994, 0.70710677
        %v2059 = vmul.f32 %v1995, 0.70710677
        %v2060 = vmul.f32 %v1996, 0.70710677
        %v2061 = vmul.f32 %v1997, 0.70710677
        %v2062 = vmul.f32 %v1998, 0.70710677
        %v2063 = vmul.f32 %v1999, 0.70710677
        %v2064 = vmul.f32 %v2000, 0.70710677
        %v2065 = vmul.f32 %v2001, 0.70710677
        %v2066 = vmul.f32 %v2002, 0.70710677
        %v2067 = vmul.f32 %v2003, 0.70710677
        %v2068 = vmul.f32 %v2004, 0.70710677
        %v2069 = vmul.f32 %v2005, 0.70710677
        %v2070 = vmul.f32 %v2006, 0.70710677
        %v2071 = verf.f32.pop %v2039
        %v2072 = verf.f32.pop %v2040
        %v2073 = verf.f32.pop %v2041
        %v2074 = verf.f32.pop %v2042
        %v2075 = verf.f32.pop %v2043
        %v2076 = verf.f32.pop %v2044
        %v2077 = verf.f32.pop %v2045
        %v2078 = verf.f32.pop %v2046
        %v2079 = verf.f32.pop %v2047
        %v2080 = verf.f32.pop %v2048
        %v2081 = verf.f32.pop %v2049
        %v2082 = verf.f32.pop %v2050
        %v2083 = verf.f32.pop %v2051
        %v2084 = verf.f32.pop %v2052
        %v2085 = verf.f32.pop %v2053
        %v2086 = verf.f32.pop %v2054
        %v2087 = verf.f32.pop %v2055
        %v2088 = verf.f32.pop %v2056
        %v2089 = verf.f32.pop %v2057
        %v2090 = verf.f32.pop %v2058
        %v2091 = verf.f32.pop %v2059
        %v2092 = verf.f32.pop %v2060
        %v2093 = verf.f32.pop %v2061
        %v2094 = verf.f32.pop %v2062
        %v2095 = verf.f32.pop %v2063
        %v2096 = verf.f32.pop %v2064
        %v2097 = verf.f32.pop %v2065
        %v2098 = verf.f32.pop %v2066
        %v2099 = verf.f32.pop %v2067
        %v2100 = verf.f32.pop %v2068
        %v2101 = verf.f32.pop %v2069
        %v2102 = verf.f32.pop %v2070
        %v2103 = vadd.f32 %v2071, 1.0
        %v2104 = vadd.f32 %v2072, 1.0
        %v2105 = vadd.f32 %v2073, 1.0
        %v2106 = vadd.f32 %v2074, 1.0
        %v2107 = vadd.f32 %v2075, 1.0
        %v2108 = vadd.f32 %v2076, 1.0
        %v2109 = vadd.f32 %v2077, 1.0
        %v2110 = vadd.f32 %v2078, 1.0
        %v2111 = vadd.f32 %v2079, 1.0
        %v2112 = vadd.f32 %v2080, 1.0
        %v2113 = vadd.f32 %v2081, 1.0
        %v2114 = vadd.f32 %v2082, 1.0
        %v2115 = vadd.f32 %v2083, 1.0
        %v2116 = vadd.f32 %v2084, 1.0
        %v2117 = vadd.f32 %v2085, 1.0
        %v2118 = vadd.f32 %v2086, 1.0
        %v2119 = vadd.f32 %v2087, 1.0
        %v2120 = vadd.f32 %v2088, 1.0
        %v2121 = vadd.f32 %v2089, 1.0
        %v2122 = vadd.f32 %v2090, 1.0
        %v2123 = vadd.f32 %v2091, 1.0
        %v2124 = vadd.f32 %v2092, 1.0
        %v2125 = vadd.f32 %v2093, 1.0
        %v2126 = vadd.f32 %v2094, 1.0
        %v2127 = vadd.f32 %v2095, 1.0
        %v2128 = vadd.f32 %v2096, 1.0
        %v2129 = vadd.f32 %v2097, 1.0
        %v2130 = vadd.f32 %v2098, 1.0
        %v2131 = vadd.f32 %v2099, 1.0
        %v2132 = vadd.f32 %v2100, 1.0
        %v2133 = vadd.f32 %v2101, 1.0
        %v2134 = vadd.f32 %v2102, 1.0
        %v2135 = vmul.f32 %v2007, %v2103
        %v2136 = vmul.f32 %v2008, %v2104
        %v2137 = vmul.f32 %v2009, %v2105
        %v2138 = vmul.f32 %v2010, %v2106
        %v2139 = vmul.f32 %v2011, %v2107
        %v2140 = vmul.f32 %v2012, %v2108
        %v2141 = vmul.f32 %v2013, %v2109
        %v2142 = vmul.f32 %v2014, %v2110
        %v2143 = vmul.f32 %v2015, %v2111
        %v2144 = vmul.f32 %v2016, %v2112
        %v2145 = vmul.f32 %v2017, %v2113
        %v2146 = vmul.f32 %v2018, %v2114
        %v2147 = vmul.f32 %v2019, %v2115
        %v2148 = vmul.f32 %v2020, %v2116
        %v2149 = vmul.f32 %v2021, %v2117
        %v2150 = vmul.f32 %v2022, %v2118
        %v2151 = vmul.f32 %v2023, %v2119
        %v2152 = vmul.f32 %v2024, %v2120
        %v2153 = vmul.f32 %v2025, %v2121
        %v2154 = vmul.f32 %v2026, %v2122
        %v2155 = vmul.f32 %v2027, %v2123
        %v2156 = vmul.f32 %v2028, %v2124
        %v2157 = vmul.f32 %v2029, %v2125
        %v2158 = vmul.f32 %v2030, %v2126
        %v2159 = vmul.f32 %v2031, %v2127
        %v2160 = vmul.f32 %v2032, %v2128
        %v2161 = vmul.f32 %v2033, %v2129
        %v2162 = vmul.f32 %v2034, %v2130
        %v2163 = vmul.f32 %v2035, %v2131
        %v2164 = vmul.f32 %v2036, %v2132
        %v2165 = vmul.f32 %v2037, %v2133
        %v2166 = vmul.f32 %v2038, %v2134
        %v2167 = vld [vmem:[#allocation10] sm:$0xff]
        %v2168 = vld [vmem:[#allocation10 + $0x8] sm:$0xff]
        %v2169 = vld [vmem:[#allocation10 + $0x10] sm:$0xff]
        %v2170 = vld [vmem:[#allocation10 + $0x18] sm:$0xff]
        %v2171 = vld [vmem:[#allocation10 + $0x20] sm:$0xff]
        %v2172 = vld [vmem:[#allocation10 + $0x28] sm:$0xff]
        %v2173 = vld [vmem:[#allocation10 + $0x30] sm:$0xff]
        %v2174 = vld [vmem:[#allocation10 + $0x38] sm:$0xff]
        %v2175 = vld [vmem:[#allocation10 + $0x40] sm:$0xff]
        %v2176 = vld [vmem:[#allocation10 + $0x48] sm:$0xff]
        %v2177 = vld [vmem:[#allocation10 + $0x50] sm:$0xff]
        %v2178 = vld [vmem:[#allocation10 + $0x58] sm:$0xff]
        %v2179 = vld [vmem:[#allocation10 + $0x60] sm:$0xff]
        %v2180 = vld [vmem:[#allocation10 + $0x68] sm:$0xff]
        %v2181 = vld [vmem:[#allocation10 + $0x70] sm:$0xff]
        %v2182 = vld [vmem:[#allocation10 + $0x78] sm:$0xff]
        %v2183 = vld [vmem:[%s8] sm:$0x1]
        %v2185 = vlaneseq
        %v2186 = vshrl.u32 %v2185, 7
        %v2187 = vsub.s32 0, %v2186
        %v2188 = vrot.slane %v2183, %v2187
        %2190 = vmatprep.subr.mxu0 0.0
        %2191 = vmatpush1.msra.mxu0 %v2167
        %2192 = vmatprep.subr.mxu0 0.0
        %2193 = vmatpush1.msra.mxu0 %v2168
        %2194 = vmatprep.subr.mxu0 0.0
        %2195 = vmatpush1.msra.mxu0 %v2169
        %2196 = vmatprep.subr.mxu0 0.0
        %2197 = vmatpush1.msra.mxu0 %v2170
        %2198 = vmatprep.subr.mxu0 0.0
        %2199 = vmatpush1.msra.mxu0 %v2171
        %2200 = vmatprep.subr.mxu0 0.0
        %2201 = vmatpush1.msra.mxu0 %v2172
        %2202 = vmatprep.subr.mxu0 0.0
        %2203 = vmatpush1.msra.mxu0 %v2173
        %2204 = vmatprep.subr.mxu0 0.0
        %2205 = vmatpush1.msra.mxu0 %v2174
        %2206 = vmatprep.subr.mxu0 0.0
        %2207 = vmatpush1.msra.mxu0 %v2175
        %2208 = vmatprep.subr.mxu0 0.0
        %2209 = vmatpush1.msra.mxu0 %v2176
        %2210 = vmatprep.subr.mxu0 0.0
        %2211 = vmatpush1.msra.mxu0 %v2177
        %2212 = vmatprep.subr.mxu0 0.0
        %2213 = vmatpush1.msra.mxu0 %v2178
        %2214 = vmatprep.subr.mxu0 0.0
        %2215 = vmatpush1.msra.mxu0 %v2179
        %2216 = vmatprep.subr.mxu0 0.0
        %2217 = vmatpush1.msra.mxu0 %v2180
        %2218 = vmatprep.subr.mxu0 0.0
        %2219 = vmatpush1.msra.mxu0 %v2181
        %2220 = vmatprep.subr.mxu0 0.0
        %2221 = vmatpush1.msra.mxu0 %v2182
        %2222 = vmatprep.subr.mxu0 0.0
        %2223 = vmatpush1.msra.mxu0 0.0
        %2224 = vmatprep.subr.mxu0 0.0
        %2225 = vmatpush1.msra.mxu0 0.0
        %2226 = vmatprep.subr.mxu0 0.0
        %2227 = vmatpush1.msra.mxu0 0.0
        %2228 = vmatprep.subr.mxu0 0.0
        %2229 = vmatpush1.msra.mxu0 0.0
        %2230 = vmatprep.subr.mxu0 0.0
        %2231 = vmatpush1.msra.mxu0 0.0
        %2232 = vmatprep.subr.mxu0 0.0
        %2233 = vmatpush1.msra.mxu0 0.0
        %2234 = vmatprep.subr.mxu0 0.0
        %2235 = vmatpush1.msra.mxu0 0.0
        %2236 = vmatprep.subr.mxu0 0.0
        %2237 = vmatpush1.msra.mxu0 0.0
        %2238 = vmatprep.subr.mxu0 0.0
        %2239 = vmatpush1.msra.mxu0 0.0
        %2240 = vmatprep.subr.mxu0 0.0
        %2241 = vmatpush1.msra.mxu0 0.0
        %2242 = vmatprep.subr.mxu0 0.0
        %2243 = vmatpush1.msra.mxu0 0.0
        %2244 = vmatprep.subr.mxu0 0.0
        %2245 = vmatpush1.msra.mxu0 0.0
        %2246 = vmatprep.subr.mxu0 0.0
        %2247 = vmatpush1.msra.mxu0 0.0
        %2248 = vmatprep.subr.mxu0 0.0
        %2249 = vmatpush1.msra.mxu0 0.0
        %2250 = vmatprep.subr.mxu0 0.0
        %2251 = vmatpush1.msra.mxu0 0.0
        %2252 = vmatprep.subr.mxu0 0.0
        %2253 = vmatpush1.msra.mxu0 0.0
        %2254 = vmatprep.mubr.f32.mxu0 0.0
        %2255 = vmatmul.mubr.f32.gmra.mrb[0].mxu0 %v2135
        %v2256 = vpop.f32.mrb[0].mxu0
        %v2257 = vadd.f32 %v2188, %v2256
        %v2258 = vpop.f32.mrb[0].mxu0
        %2259 = vmatprep.mubr.f32.mxu0 0.0
        %2260 = vmatmul.mubr.f32.gmra.mrb[0].mxu0 %v2136
        %v2261 = vpop.f32.mrb[0].mxu0
        %v2262 = vadd.f32 %v2188, %v2261
        %v2263 = vpop.f32.mrb[0].mxu0
        %2264 = vmatprep.mubr.f32.mxu0 0.0
        %2265 = vmatmul.mubr.f32.gmra.mrb[0].mxu0 %v2137
        %v2266 = vpop.f32.mrb[0].mxu0
        %v2267 = vadd.f32 %v2188, %v2266
        %v2268 = vpop.f32.mrb[0].mxu0
        %2269 = vmatprep.mubr.f32.mxu0 0.0
        %2270 = vmatmul.mubr.f32.gmra.mrb[0].mxu0 %v2138
        %v2271 = vpop.f32.mrb[0].mxu0
        %v2272 = vadd.f32 %v2188, %v2271
        %v2273 = vpop.f32.mrb[0].mxu0
        %2274 = vmatprep.mubr.f32.mxu0 0.0
        %2275 = vmatmul.mubr.f32.gmra.mrb[0].mxu0 %v2139
        %v2276 = vpop.f32.mrb[0].mxu0
        %v2277 = vadd.f32 %v2188, %v2276
        %v2278 = vpop.f32.mrb[0].mxu0
        %2279 = vmatprep.mubr.f32.mxu0 0.0
        %2280 = vmatmul.mubr.f32.gmra.mrb[0].mxu0 %v2140
        %v2281 = vpop.f32.mrb[0].mxu0
        %v2282 = vadd.f32 %v2188, %v2281
        %v2283 = vpop.f32.mrb[0].mxu0
        %2284 = vmatprep.mubr.f32.mxu0 0.0
        %2285 = vmatmul.mubr.f32.gmra.mrb[0].mxu0 %v2141
        %v2286 = vpop.f32.mrb[0].mxu0
        %v2287 = vadd.f32 %v2188, %v2286
        %v2288 = vpop.f32.mrb[0].mxu0
        %2289 = vmatprep.mubr.f32.mxu0 0.0
        %2290 = vmatmul.mubr.f32.gmra.mrb[0].mxu0 %v2142
        %v2291 = vpop.f32.mrb[0].mxu0
        %v2292 = vadd.f32 %v2188, %v2291
        %v2293 = vpop.f32.mrb[0].mxu0
        %2294 = vmatprep.mubr.f32.mxu0 0.0
        %2295 = vmatmul.mubr.f32.gmra.mrb[0].mxu0 %v2143
        %v2296 = vpop.f32.mrb[0].mxu0
        %v2297 = vadd.f32 %v2188, %v2296
        %v2298 = vpop.f32.mrb[0].mxu0
        %2299 = vmatprep.mubr.f32.mxu0 0.0
        %2300 = vmatmul.mubr.f32.gmra.mrb[0].mxu0 %v2144
        %v2301 = vpop.f32.mrb[0].mxu0
        %v2302 = vadd.f32 %v2188, %v2301
        %v2303 = vpop.f32.mrb[0].mxu0
        %2304 = vmatprep.mubr.f32.mxu0 0.0
        %2305 = vmatmul.mubr.f32.gmra.mrb[0].mxu0 %v2145
        %v2306 = vpop.f32.mrb[0].mxu0
        %v2307 = vadd.f32 %v2188, %v2306
        %v2308 = vpop.f32.mrb[0].mxu0
        %2309 = vmatprep.mubr.f32.mxu0 0.0
        %2310 = vmatmul.mubr.f32.gmra.mrb[0].mxu0 %v2146
        %v2311 = vpop.f32.mrb[0].mxu0
        %v2312 = vadd.f32 %v2188, %v2311
        %v2313 = vpop.f32.mrb[0].mxu0
        %2314 = vmatprep.mubr.f32.mxu0 0.0
        %2315 = vmatmul.mubr.f32.gmra.mrb[0].mxu0 %v2147
        %v2316 = vpop.f32.mrb[0].mxu0
        %v2317 = vadd.f32 %v2188, %v2316
        %v2318 = vpop.f32.mrb[0].mxu0
        %2319 = vmatprep.mubr.f32.mxu0 0.0
        %2320 = vmatmul.mubr.f32.gmra.mrb[0].mxu0 %v2148
        %v2321 = vpop.f32.mrb[0].mxu0
        %v2322 = vadd.f32 %v2188, %v2321
        %v2323 = vpop.f32.mrb[0].mxu0
        %2324 = vmatprep.mubr.f32.mxu0 0.0
        %2325 = vmatmul.mubr.f32.gmra.mrb[0].mxu0 %v2149
        %v2326 = vpop.f32.mrb[0].mxu0
        %v2327 = vadd.f32 %v2188, %v2326
        %v2328 = vpop.f32.mrb[0].mxu0
        %2329 = vmatprep.mubr.f32.mxu0 0.0
        %2330 = vmatmul.mubr.f32.gmra.mrb[0].mxu0 %v2150
        %v2331 = vpop.f32.mrb[0].mxu0
        %v2332 = vadd.f32 %v2188, %v2331
        %v2333 = vpop.f32.mrb[0].mxu0
        %2334 = vmatprep.mubr.f32.mxu0 0.0
        %2335 = vmatmul.mubr.f32.gmra.mrb[0].mxu0 %v2151
        %v2336 = vpop.f32.mrb[0].mxu0
        %v2337 = vadd.f32 %v2188, %v2336
        %v2338 = vpop.f32.mrb[0].mxu0
        %2339 = vmatprep.mubr.f32.mxu0 0.0
        %2340 = vmatmul.mubr.f32.gmra.mrb[0].mxu0 %v2152
        %v2341 = vpop.f32.mrb[0].mxu0
        %v2342 = vadd.f32 %v2188, %v2341
        %v2343 = vpop.f32.mrb[0].mxu0
        %2344 = vmatprep.mubr.f32.mxu0 0.0
        %2345 = vmatmul.mubr.f32.gmra.mrb[0].mxu0 %v2153
        %v2346 = vpop.f32.mrb[0].mxu0
        %v2347 = vadd.f32 %v2188, %v2346
        %v2348 = vpop.f32.mrb[0].mxu0
        %2349 = vmatprep.mubr.f32.mxu0 0.0
        %2350 = vmatmul.mubr.f32.gmra.mrb[0].mxu0 %v2154
        %v2351 = vpop.f32.mrb[0].mxu0
        %v2352 = vadd.f32 %v2188, %v2351
        %v2353 = vpop.f32.mrb[0].mxu0
        %2354 = vmatprep.mubr.f32.mxu0 0.0
        %2355 = vmatmul.mubr.f32.gmra.mrb[0].mxu0 %v2155
        %v2356 = vpop.f32.mrb[0].mxu0
        %v2357 = vadd.f32 %v2188, %v2356
        %v2358 = vpop.f32.mrb[0].mxu0
        %2359 = vmatprep.mubr.f32.mxu0 0.0
        %2360 = vmatmul.mubr.f32.gmra.mrb[0].mxu0 %v2156
        %v2361 = vpop.f32.mrb[0].mxu0
        %v2362 = vadd.f32 %v2188, %v2361
        %v2363 = vpop.f32.mrb[0].mxu0
        %2364 = vmatprep.mubr.f32.mxu0 0.0
        %2365 = vmatmul.mubr.f32.gmra.mrb[0].mxu0 %v2157
        %v2366 = vpop.f32.mrb[0].mxu0
        %v2367 = vadd.f32 %v2188, %v2366
        %v2368 = vpop.f32.mrb[0].mxu0
        %2369 = vmatprep.mubr.f32.mxu0 0.0
        %2370 = vmatmul.mubr.f32.gmra.mrb[0].mxu0 %v2158
        %v2371 = vpop.f32.mrb[0].mxu0
        %v2372 = vadd.f32 %v2188, %v2371
        %v2373 = vpop.f32.mrb[0].mxu0
        %2374 = vmatprep.mubr.f32.mxu0 0.0
        %2375 = vmatmul.mubr.f32.gmra.mrb[0].mxu0 %v2159
        %v2376 = vpop.f32.mrb[0].mxu0
        %v2377 = vadd.f32 %v2188, %v2376
        %v2378 = vpop.f32.mrb[0].mxu0
        %2379 = vmatprep.mubr.f32.mxu0 0.0
        %2380 = vmatmul.mubr.f32.gmra.mrb[0].mxu0 %v2160
        %v2381 = vpop.f32.mrb[0].mxu0
        %v2382 = vadd.f32 %v2188, %v2381
        %v2383 = vpop.f32.mrb[0].mxu0
        %2384 = vmatprep.mubr.f32.mxu0 0.0
        %2385 = vmatmul.mubr.f32.gmra.mrb[0].mxu0 %v2161
        %v2386 = vpop.f32.mrb[0].mxu0
        %v2387 = vadd.f32 %v2188, %v2386
        %v2388 = vpop.f32.mrb[0].mxu0
        %2389 = vmatprep.mubr.f32.mxu0 0.0
        %2390 = vmatmul.mubr.f32.gmra.mrb[0].mxu0 %v2162
        %v2391 = vpop.f32.mrb[0].mxu0
        %v2392 = vadd.f32 %v2188, %v2391
        %v2393 = vpop.f32.mrb[0].mxu0
        %2394 = vmatprep.mubr.f32.mxu0 0.0
        %2395 = vmatmul.mubr.f32.gmra.mrb[0].mxu0 %v2163
        %v2396 = vpop.f32.mrb[0].mxu0
        %v2397 = vadd.f32 %v2188, %v2396
        %v2398 = vpop.f32.mrb[0].mxu0
        %2399 = vmatprep.mubr.f32.mxu0 0.0
        %2400 = vmatmul.mubr.f32.gmra.mrb[0].mxu0 %v2164
        %v2401 = vpop.f32.mrb[0].mxu0
        %v2402 = vadd.f32 %v2188, %v2401
        %v2403 = vpop.f32.mrb[0].mxu0
        %2404 = vmatprep.mubr.f32.mxu0 0.0
        %2405 = vmatmul.mubr.f32.gmra.mrb[0].mxu0 %v2165
        %v2406 = vpop.f32.mrb[0].mxu0
        %v2407 = vadd.f32 %v2188, %v2406
        %v2408 = vpop.f32.mrb[0].mxu0
        %2409 = vmatprep.mubr.f32.mxu0 0.0
        %2410 = vmatmul.mubr.f32.gmra.mrb[0].mxu0 %v2166
        %v2411 = vpop.f32.mrb[0].mxu0
        %v2412 = vadd.f32 %v2188, %v2411
        %v2413 = vpop.f32.mrb[0].mxu0
        %2414 = vdwg.mxu0
        %2415 = vst [vmem:[%s507] sm:$0xff] %v2257
        %2416 = vst [vmem:[%s507 + $0x8] sm:$0xff] %v2262
        %2417 = vst [vmem:[%s507 + $0x10] sm:$0xff] %v2267
        %2418 = vst [vmem:[%s507 + $0x18] sm:$0xff] %v2272
        %2419 = vst [vmem:[%s507 + $0x20] sm:$0xff] %v2277
        %2420 = vst [vmem:[%s507 + $0x28] sm:$0xff] %v2282
        %2421 = vst [vmem:[%s507 + $0x30] sm:$0xff] %v2287
        %2422 = vst [vmem:[%s507 + $0x38] sm:$0xff] %v2292
        %2423 = vst [vmem:[%s507 + $0x40] sm:$0xff] %v2297
        %2424 = vst [vmem:[%s507 + $0x48] sm:$0xff] %v2302
        %2425 = vst [vmem:[%s507 + $0x50] sm:$0xff] %v2307
        %2426 = vst [vmem:[%s507 + $0x58] sm:$0xff] %v2312
        %2427 = vst [vmem:[%s507 + $0x60] sm:$0xff] %v2317
        %2428 = vst [vmem:[%s507 + $0x68] sm:$0xff] %v2322
        %2429 = vst [vmem:[%s507 + $0x70] sm:$0xff] %v2327
        %2430 = vst [vmem:[%s507 + $0x78] sm:$0xff] %v2332
        %2431 = vst [vmem:[%s507 + $0x80] sm:$0xff] %v2337
        %2432 = vst [vmem:[%s507 + $0x88] sm:$0xff] %v2342
        %2433 = vst [vmem:[%s507 + $0x90] sm:$0xff] %v2347
        %2434 = vst [vmem:[%s507 + $0x98] sm:$0xff] %v2352
        %2435 = vst [vmem:[%s507 + $0xa0] sm:$0xff] %v2357
        %2436 = vst [vmem:[%s507 + $0xa8] sm:$0xff] %v2362
        %2437 = vst [vmem:[%s507 + $0xb0] sm:$0xff] %v2367
        %2438 = vst [vmem:[%s507 + $0xb8] sm:$0xff] %v2372
        %2439 = vst [vmem:[%s507 + $0xc0] sm:$0xff] %v2377
        %2440 = vst [vmem:[%s507 + $0xc8] sm:$0xff] %v2382
        %2441 = vst [vmem:[%s507 + $0xd0] sm:$0xff] %v2387
        %2442 = vst [vmem:[%s507 + $0xd8] sm:$0xff] %v2392
        %2443 = vst [vmem:[%s507 + $0xe0] sm:$0xff] %v2397
        %2444 = vst [vmem:[%s507 + $0xe8] sm:$0xff] %v2402
        %2445 = vst [vmem:[%s507 + $0xf0] sm:$0xff] %v2407
        %2446 = vst [vmem:[%s507 + $0xf8] sm:$0xff] %v2412
        %s2447 = sand.u32 %s278, 1
        %s2448 = scalar_lea.sflag [#allocation4], %s2447
        %s2449 = sand.u32 %s278, 1
        %s2450 = smul.addr %s2449, 256
        %s2451 = scalar_lea.vmem [#allocation11], %s2450
        // Predicated region
        $region77: #{tpu_custom_call.1} parent=55 // pred_check
          %p2452 = pneg %p288
        $region78: #{tpu_custom_call.1} parent=55 // pred_check_branch
          %2454 = sbr.rel (%p2452) target = $region80
        $region79: #{tpu_custom_call.1} parent=55 // pred_region
          %s2455 = smul.u32 16, %s35
          %s2457 = ssub.s32 4096, 4096
          %2458 = vsyncadd %s2448, %s2457
          %s2459 = smul.addr %s2455, 2
          %s2460 = smul.addr %s34, 32
          %s2461 = sadd.s32 %s2459, %s2460
          %s2462 = smul.addr %s2461, 128
          %s2463 = scalar_lea.hbm %s9, %s2462
          %s2464 = sshll.u32 %s2451, 4
          %s2465 = int_to_ptr.vmem [resolvable:$true] %s2464
          %2470 = dma.vmem_to_hbm [thread:$0]  %s2465, 4096, %s2463, %s2448, 128, 128, 8
        $region80: #{tpu_custom_call.1} parent=55 // pred_fallthru
          _
      $region56: #{tpu_custom_call.1} parent=5 // pred_fallthru
        _
      %p2471 = scmp.le.s32.totalorder 2, %s25
      // Predicated region
      $region81: #{tpu_custom_call.1} parent=5 // pred_check
        %p2472 = pneg %p2471
      $region82: #{tpu_custom_call.1} parent=5 // pred_check_branch
        %2474 = sbr.rel (%p2472) target = $region84
      $region83: #{tpu_custom_call.1} parent=5 // pred_region
        %s2475 = ssub.s32 %s25, 2
        // Predicated region
        $region85: #{tpu_custom_call.1} parent=83 // pred_check
          %p2476 = pneg %p294
        $region86: #{tpu_custom_call.1} parent=83 // pred_check_branch
          %2478 = sbr.rel (%p2476) target = $region88
        $region87: #{tpu_custom_call.1} parent=83 // pred_region
          %s2479 = sand.u32 %s279, 1
          %s2480 = scalar_lea.sflag [#allocation4], %s2479
          %s2481 = sand.u32 %s279, 1
          %s2482 = smul.addr %s2481, 256
          %s2483 = scalar_lea.vmem [#allocation11], %s2482
          %2484 = dma.done %s2480, 4096
        $region88: #{tpu_custom_call.1} parent=83 // pred_fallthru
          _
      $region84: #{tpu_custom_call.1} parent=5 // pred_fallthru
        _
    $region6: #{tpu_custom_call.1} parent=1 // loop_footer
      %s29 = sadd.s32 1, %s25
    $region7: #{tpu_custom_call.1} parent=1 // loop_footer_branch
      %24 = sbr.rel target = $region3
    $region8: #{tpu_custom_call.1} parent=1 // loop_exit
      _
    %2485 = vsyncpa [#allocation3], 1
    %s2486 = scalar_lea.sflag [#allocation3], 1
    %2487 = vsyncpa %s2486, 1
    %2488 = vsyncpa [#allocation6], 1
    %s2489 = scalar_lea.sflag [#allocation6], 1
    %2490 = vsyncpa %s2489, 1
    %2491 = vsyncpa [#allocation9], 1
    %2492 = vsyncpa [#allocation4], 1
    %s2493 = scalar_lea.sflag [#allocation4], 1
    %2494 = vsyncpa %s2493, 1

// kernel: tpu_custom_call.1
$region0: #{tpu_custom_call.1}
  #allocation0 [shape = 'u32[]', space=smem, size = 0x4, offset = 0x4, fixed_abs, tag = 'smem constant byte address 0x4 - core index']
  #allocation1 [shape = 'u32[144,128]{1,0:T(1,128)}', space=vmem, size = 0x12000, scoped, tag = 'internal scratch']
  %s0 = inlined_call_operand.hbm [shape: f32[2,16,16,128], index: 0, kind: input, shape index: {}]
  %s1 = inlined_call_operand.hbm [shape: f32[2,16,16,128], index: 1, kind: input, shape index: {}]
  %s2 = inlined_call_operand.hbm [shape: f32[2,16,16,128], index: 2, kind: input, shape index: {}]
  %s3 = inlined_call_operand.hbm [shape: f32[128,128], index: 3, kind: input, shape index: {}]
  %s4 = inlined_call_operand.vmem [shape: f32[1,128], index: 4, kind: input, shape index: {}]
  %s5 = inlined_call_operand.vmem [shape: f32[3,3,128], index: 5, kind: input, shape index: {}]
  %s6 = inlined_call_operand.vmem [shape: f32[1,128], index: 6, kind: input, shape index: {}]
  %s7 = inlined_call_operand.hbm [shape: f32[128,128], index: 7, kind: input, shape index: {}]
  %s8 = inlined_call_operand.vmem [shape: f32[1,128], index: 8, kind: input, shape index: {}]
  %s9 = inlined_call_operand.hbm [shape: f32[2,16,16,128], index: 9, kind: output, shape index: {}]
  %s10 = sld [smem:[#allocation0]]
  $region89: #{tpu_custom_call.1} parent=0
    _
  %s12 = ssub.s32 1, %s10
  %s13 = scalar_select 0, %s12, %s10
  $region1: #{tpu_custom_call.1} parent=0
    #allocation2 [shape = 'u8[16384]{0}', space=vmem, size = 0x4000, scoped, tag = 'input window, operand 0']
    #allocation3 [shape = 's32[2]{0}', space=sflag, size = 0x8, scoped, tag = 'scoped memory for tpu_custom_call.1']
    #allocation4 [shape = 's32[2]{0}', space=sflag, size = 0x8, scoped, tag = 'scoped memory for tpu_custom_call.1']
    #allocation5 [shape = 'u8[262144]{0}', space=vmem, size = 0x40000, scoped, tag = 'input window, operand 1']
    #allocation6 [shape = 's32[2]{0}', space=sflag, size = 0x8, scoped, tag = 'scoped memory for tpu_custom_call.1']
    #allocation7 [shape = 'u8[16384]{0}', space=vmem, size = 0x4000, scoped, tag = 'input window, operand 2']
    #allocation8 [shape = 'u8[65536]{0}', space=vmem, size = 0x10000, scoped, tag = 'input window, operand 3, single buffered']
    #allocation9 [shape = 's32[1]{0}', space=sflag, size = 0x4, scoped, tag = 'scoped memory for tpu_custom_call.1']
    #allocation10 [shape = 'u8[65536]{0}', space=vmem, size = 0x10000, scoped, tag = 'input window, operand 7, single buffered']
    #allocation11 [shape = 'u8[262144]{0}', space=vmem, size = 0x40000, scoped, tag = 'output window, operand 0']
    %14 = vsyncpa [#allocation3], 0
    %s15 = scalar_lea.sflag [#allocation3], 1
    %16 = vsyncpa %s15, 0
    %17 = vsyncpa [#allocation6], 0
    %s18 = scalar_lea.sflag [#allocation6], 1
    %19 = vsyncpa %s18, 0
    %20 = vsyncpa [#allocation9], 0
    %21 = vsyncpa [#allocation4], 0
    %s22 = scalar_lea.sflag [#allocation4], 1
    %23 = vsyncpa %s22, 0
    loop: start=0, step=1, limit=4
    $region2: #{tpu_custom_call.1} parent=1 // loop_pre_header
      _
    $region3: #{tpu_custom_call.1} parent=1 // loop_header
      %s25 = sphi 0, %s29
      %p26 = scmp.ge.s32.totalorder %s25, 4
      %s32 = sphi 0, %s44
      %s33 = sphi 0, %s40
      %s34 = sphi 0, %s32
      %s35 = sphi 0, %s33
      %s36 = sphi 0, %s34
      %s37 = sphi 0, %s35
      %s57 = sphi 0, %s59
      %s60 = sphi 0, %s57
      %s61 = sphi 0, %s60
      %s77 = sphi 0, %s61
      %s85 = sphi 0, %s87
      %s88 = sphi 0, %s85
      %s89 = sphi 0, %s88
      %s105 = sphi 0, %s89
      %s121 = sphi 0, %s123
      %s124 = sphi 0, %s121
      %s125 = sphi 0, %s124
      %s141 = sphi 0, %s125
      %s145 = sphi 0, %s145
      %s147 = sphi 0, %s145
      %s148 = sphi 0, %s147
      %s162 = sphi 0, %s148
      %s166 = sphi 0, %s166
      %s168 = sphi 0, %s166
      %s169 = sphi 0, %s168
      %s183 = sphi 0, %s169
      %s187 = sphi 0, %s187
      %s189 = sphi 0, %s187
      %s190 = sphi 0, %s189
      %s204 = sphi 0, %s190
      %s208 = sphi 0, %s208
      %s210 = sphi 0, %s208
      %s211 = sphi 0, %s210
      %s225 = sphi 0, %s211
      %s229 = sphi 0, %s229
      %s231 = sphi 0, %s229
      %s232 = sphi 0, %s231
      %s246 = sphi 0, %s232
      %s250 = sphi 0, %s250
      %s252 = sphi 0, %s250
      %s253 = sphi 0, %s252
      %s267 = sphi 0, %s253
      %s275 = sphi 0, %s277
      %s278 = sphi 0, %s275
      %s279 = sphi 0, %s278
      %s295 = sphi 0, %s279
    $region4: #{tpu_custom_call.1} parent=1 // loop_header_branch
      %28 = sbr.rel (%p26) target = $region8
    $region5: #{tpu_custom_call.1} parent=1 // loop_body
      %s30 = ssub.s32 %s25, 1
      %s31 = ssub.s32 %s25, 2
      %s38 = sadd.s32 1, %s33
      %p39 = scmp.ge.s32.totalorder %s38, 1
      %s40 = scalar_select %p39, 0, %s38
      %s41 = sadd.s32 1, %s32
      %s42 = scalar_select %p39, %s41, %s32
      %p43 = scmp.ge.s32.totalorder %s42, 2
      %s44 = scalar_select %p43, 0, %s42
      %s45 = smul.u32 %s33, 16
      %s46 = ssub.s32 %s45, 1
      %p47 = scmp.gt.s32.totalorder %s46, 0
      %s48 = scalar_select %p47, %s46, 0
      %s49 = smul.u32 %s40, 16
      %s50 = ssub.s32 %s49, 1
      %p51 = scmp.gt.s32.totalorder %s50, 0
      %s52 = scalar_select %p51, %s50, 0
      %s53 = ssub.s32 %s32, %s44
      %s54 = ssub.s32 %s48, %s52
      %s55 = sor.u32 %s53, %s54
      %p56 = scmp.eq.s32.totalorder %s55, 0
      %s58 = sadd.s32 %s57, 1
      %s59 = scalar_select %p56, %s57, %s58
      %p62 = pneg %p56
      %p63 = scmp.eq.s32.totalorder %s25, 1
      %p64 = por %p62, %p63
      %p65 = scmp.ne.s32.totalorder %s57, %s60
      %p66 = scmp.eq.s32.totalorder %s25, 0
      %p67 = por %p65, %p66
      %p68 = scmp.ne.s32.totalorder %s57, %s60
      %p69 = scmp.eq.s32.totalorder %s30, 1
      %p70 = por %p68, %p69
      %p71 = scmp.ne.s32.totalorder %s60, %s61
      %p72 = scmp.eq.s32.totalorder %s30, 0
      %p73 = por %p71, %p72
      %p74 = scmp.ne.s32.totalorder %s60, %s61
      %p75 = scmp.eq.s32.totalorder %s31, 1
      %p76 = por %p74, %p75
      %p78 = scmp.ne.s32.totalorder %s61, %s77
      %p79 = scmp.eq.s32.totalorder %s31, 0
      %p80 = por %p78, %p79
      %s81 = ssub.s32 %s32, %s44
      %s82 = ssub.s32 %s33, %s40
      %s83 = sor.u32 %s81, %s82
      %p84 = scmp.eq.s32.totalorder %s83, 0
      %s86 = sadd.s32 %s85, 1
      %s87 = scalar_select %p84, %s85, %s86
      %p90 = pneg %p84
      %p91 = scmp.eq.s32.totalorder %s25, 1
      %p92 = por %p90, %p91
      %p93 = scmp.ne.s32.totalorder %s85, %s88
      %p94 = scmp.eq.s32.totalorder %s25, 0
      %p95 = por %p93, %p94
      %p96 = scmp.ne.s32.totalorder %s85, %s88
      %p97 = scmp.eq.s32.totalorder %s30, 1
      %p98 = por %p96, %p97
      %p99 = scmp.ne.s32.totalorder %s88, %s89
      %p100 = scmp.eq.s32.totalorder %s30, 0
      %p101 = por %p99, %p100
      %p102 = scmp.ne.s32.totalorder %s88, %s89
      %p103 = scmp.eq.s32.totalorder %s31, 1
      %p104 = por %p102, %p103
      %p106 = scmp.ne.s32.totalorder %s89, %s105
      %p107 = scmp.eq.s32.totalorder %s31, 0
      %p108 = por %p106, %p107
      %s109 = smul.u32 %s33, 16
      %s110 = sadd.s32 %s109, 16
      %p111 = scmp.lt.s32.totalorder %s110, 15
      %s112 = scalar_select %p111, %s110, 15
      %s113 = smul.u32 %s40, 16
      %s114 = sadd.s32 %s113, 16
      %p115 = scmp.lt.s32.totalorder %s114, 15
      %s116 = scalar_select %p115, %s114, 15
      %s117 = ssub.s32 %s32, %s44
      %s118 = ssub.s32 %s112, %s116
      %s119 = sor.u32 %s117, %s118
      %p120 = scmp.eq.s32.totalorder %s119, 0
      %s122 = sadd.s32 %s121, 1
      %s123 = scalar_select %p120, %s121, %s122
      %p126 = pneg %p120
      %p127 = scmp.eq.s32.totalorder %s25, 1
      %p128 = por %p126, %p127
      %p129 = scmp.ne.s32.totalorder %s121, %s124
      %p130 = scmp.eq.s32.totalorder %s25, 0
      %p131 = por %p129, %p130
      %p132 = scmp.ne.s32.totalorder %s121, %s124
      %p133 = scmp.eq.s32.totalorder %s30, 1
      %p134 = por %p132, %p133
      %p135 = scmp.ne.s32.totalorder %s124, %s125
      %p136 = scmp.eq.s32.totalorder %s30, 0
      %p137 = por %p135, %p136
      %p138 = scmp.ne.s32.totalorder %s124, %s125
      %p139 = scmp.eq.s32.totalorder %s31, 1
      %p140 = por %p138, %p139
      %p142 = scmp.ne.s32.totalorder %s125, %s141
      %p143 = scmp.eq.s32.totalorder %s31, 0
      %p144 = por %p142, %p143
      %s146 = sadd.s32 %s145, 1
      %p149 = scmp.eq.s32.totalorder %s25, 1
      %p150 = scmp.ne.s32.totalorder %s145, %s147
      %p151 = scmp.eq.s32.totalorder %s25, 0
      %p152 = por %p150, %p151
      %p153 = scmp.ne.s32.totalorder %s145, %s147
      %p154 = scmp.eq.s32.totalorder %s30, 1
      %p155 = por %p153, %p154
      %p156 = scmp.ne.s32.totalorder %s147, %s148
      %p157 = scmp.eq.s32.totalorder %s30, 0
      %p158 = por %p156, %p157
      %p159 = scmp.ne.s32.totalorder %s147, %s148
      %p160 = scmp.eq.s32.totalorder %s31, 1
      %p161 = por %p159, %p160
      %p163 = scmp.ne.s32.totalorder %s148, %s162
      %p164 = scmp.eq.s32.totalorder %s31, 0
      %p165 = por %p163, %p164
      %s167 = sadd.s32 %s166, 1
      %p170 = scmp.eq.s32.totalorder %s25, 1
      %p171 = scmp.ne.s32.totalorder %s166, %s168
      %p172 = scmp.eq.s32.totalorder %s25, 0
      %p173 = por %p171, %p172
      %p174 = scmp.ne.s32.totalorder %s166, %s168
      %p175 = scmp.eq.s32.totalorder %s30, 1
      %p176 = por %p174, %p175
      %p177 = scmp.ne.s32.totalorder %s168, %s169
      %p178 = scmp.eq.s32.totalorder %s30, 0
      %p179 = por %p177, %p178
      %p180 = scmp.ne.s32.totalorder %s168, %s169
      %p181 = scmp.eq.s32.totalorder %s31, 1
      %p182 = por %p180, %p181
      %p184 = scmp.ne.s32.totalorder %s169, %s183
      %p185 = scmp.eq.s32.totalorder %s31, 0
      %p186 = por %p184, %p185
      %s188 = sadd.s32 %s187, 1
      %p191 = scmp.eq.s32.totalorder %s25, 1
      %p192 = scmp.ne.s32.totalorder %s187, %s189
      %p193 = scmp.eq.s32.totalorder %s25, 0
      %p194 = por %p192, %p193
      %p195 = scmp.ne.s32.totalorder %s187, %s189
      %p196 = scmp.eq.s32.totalorder %s30, 1
      %p197 = por %p195, %p196
      %p198 = scmp.ne.s32.totalorder %s189, %s190
      %p199 = scmp.eq.s32.totalorder %s30, 0
      %p200 = por %p198, %p199
      %p201 = scmp.ne.s32.totalorder %s189, %s190
      %p202 = scmp.eq.s32.totalorder %s31, 1
      %p203 = por %p201, %p202
      %p205 = scmp.ne.s32.totalorder %s190, %s204
      %p206 = scmp.eq.s32.totalorder %s31, 0
      %p207 = por %p205, %p206
      %s209 = sadd.s32 %s208, 1
      %p212 = scmp.eq.s32.totalorder %s25, 1
      %p213 = scmp.ne.s32.totalorder %s208, %s210
      %p214 = scmp.eq.s32.totalorder %s25, 0
      %p215 = por %p213, %p214
      %p216 = scmp.ne.s32.totalorder %s208, %s210
      %p217 = scmp.eq.s32.totalorder %s30, 1
      %p218 = por %p216, %p217
      %p219 = scmp.ne.s32.totalorder %s210, %s211
      %p220 = scmp.eq.s32.totalorder %s30, 0
      %p221 = por %p219, %p220
      %p222 = scmp.ne.s32.totalorder %s210, %s211
      %p223 = scmp.eq.s32.totalorder %s31, 1
      %p224 = por %p222, %p223
      %p226 = scmp.ne.s32.totalorder %s211, %s225
      %p227 = scmp.eq.s32.totalorder %s31, 0
      %p228 = por %p226, %p227
      %s230 = sadd.s32 %s229, 1
      %p233 = scmp.eq.s32.totalorder %s25, 1
      %p234 = scmp.ne.s32.totalorder %s229, %s231
      %p235 = scmp.eq.s32.totalorder %s25, 0
      %p236 = por %p234, %p235
      %p237 = scmp.ne.s32.totalorder %s229, %s231
      %p238 = scmp.eq.s32.totalorder %s30, 1
      %p239 = por %p237, %p238
      %p240 = scmp.ne.s32.totalorder %s231, %s232
      %p241 = scmp.eq.s32.totalorder %s30, 0
      %p242 = por %p240, %p241
      %p243 = scmp.ne.s32.totalorder %s231, %s232
      %p244 = scmp.eq.s32.totalorder %s31, 1
      %p245 = por %p243, %p244
      %p247 = scmp.ne.s32.totalorder %s232, %s246
      %p248 = scmp.eq.s32.totalorder %s31, 0
      %p249 = por %p247, %p248
      %s251 = sadd.s32 %s250, 1
      %p254 = scmp.eq.s32.totalorder %s25, 1
      %p255 = scmp.ne.s32.totalorder %s250, %s252
      %p256 = scmp.eq.s32.totalorder %s25, 0
      %p257 = por %p255, %p256
      %p258 = scmp.ne.s32.totalorder %s250, %s252
      %p259 = scmp.eq.s32.totalorder %s30, 1
      %p260 = por %p258, %p259
      %p261 = scmp.ne.s32.totalorder %s252, %s253
      %p262 = scmp.eq.s32.totalorder %s30, 0
      %p263 = por %p261, %p262
      %p264 = scmp.ne.s32.totalorder %s252, %s253
      %p265 = scmp.eq.s32.totalorder %s31, 1
      %p266 = por %p264, %p265
      %p268 = scmp.ne.s32.totalorder %s253, %s267
      %p269 = scmp.eq.s32.totalorder %s31, 0
      %p270 = por %p268, %p269
      %s271 = ssub.s32 %s32, %s44
      %s272 = ssub.s32 %s33, %s40
      %s273 = sor.u32 %s271, %s272
      %p274 = scmp.eq.s32.totalorder %s273, 0
      %s276 = sadd.s32 %s275, 1
      %s277 = scalar_select %p274, %s275, %s276
      %p280 = pneg %p274
      %p281 = scmp.eq.s32.totalorder %s25, 1
      %p282 = por %p280, %p281
      %p283 = scmp.ne.s32.totalorder %s275, %s278
      %p284 = scmp.eq.s32.totalorder %s25, 0
      %p285 = por %p283, %p284
      %p286 = scmp.ne.s32.totalorder %s275, %s278
      %p287 = scmp.eq.s32.totalorder %s30, 1
      %p288 = por %p286, %p287
      %p289 = scmp.ne.s32.totalorder %s278, %s279
      %p290 = scmp.eq.s32.totalorder %s30, 0
      %p291 = por %p289, %p290
      %p292 = scmp.ne.s32.totalorder %s278, %s279
      %p293 = scmp.eq.s32.totalorder %s31, 1
      %p294 = por %p292, %p293
      %p296 = scmp.ne.s32.totalorder %s279, %s295
      %p297 = scmp.eq.s32.totalorder %s31, 0
      %p298 = por %p296, %p297
      %p299 = scmp.le.s32.totalorder 1, %s25
      %p300 = scmp.lt.s32.totalorder %s25, 3
      %p301 = pnand %p299, %p300
      %p302 = pneg %p301
      // Predicated region
      $region9: #{tpu_custom_call.1} parent=5 // pred_check
        _
      $region10: #{tpu_custom_call.1} parent=5 // pred_check_branch
        %304 = sbr.rel (%p301) target = $region12
      $region11: #{tpu_custom_call.1} parent=5 // pred_region
        %s305 = ssub.s32 %s25, 1
        // Predicated region
        $region13: #{tpu_custom_call.1} parent=11 // pred_check
          %p306 = pneg %p158
        $region14: #{tpu_custom_call.1} parent=11 // pred_check_branch
          %308 = sbr.rel (%p306) target = $region16
        $region15: #{tpu_custom_call.1} parent=11 // pred_region
          %s310 = ssub.s32 2048, 2048
          %311 = vsyncadd [#allocation9], %s310
          %s312 = sshll.u32 [#allocation8], 4
          %s313 = int_to_ptr.vmem [resolvable:$true] %s312
          %318 = dma.hbm_to_vmem [thread:$0]  %s3, 2048, %s313, [#allocation9], 128, 128, 8
        $region16: #{tpu_custom_call.1} parent=11 // pred_fallthru
          _
        // Predicated region
        $region17: #{tpu_custom_call.1} parent=11 // pred_check
          %p319 = pneg %p179
        $region18: #{tpu_custom_call.1} parent=11 // pred_check_branch
          %321 = sbr.rel (%p319) target = $region20
        $region19: #{tpu_custom_call.1} parent=11 // pred_region
          _
        $region20: #{tpu_custom_call.1} parent=11 // pred_fallthru
          _
        // Predicated region
        $region21: #{tpu_custom_call.1} parent=11 // pred_check
          %p322 = pneg %p200
        $region22: #{tpu_custom_call.1} parent=11 // pred_check_branch
          %324 = sbr.rel (%p322) target = $region24
        $region23: #{tpu_custom_call.1} parent=11 // pred_region
          _
        $region24: #{tpu_custom_call.1} parent=11 // pred_fallthru
          _
        // Predicated region
        $region25: #{tpu_custom_call.1} parent=11 // pred_check
          %p325 = pneg %p221
        $region26: #{tpu_custom_call.1} parent=11 // pred_check_branch
          %327 = sbr.rel (%p325) target = $region28
        $region27: #{tpu_custom_call.1} parent=11 // pred_region
          _
        $region28: #{tpu_custom_call.1} parent=11 // pred_fallthru
          _
        // Predicated region
        $region29: #{tpu_custom_call.1} parent=11 // pred_check
          %p328 = pneg %p242
        $region30: #{tpu_custom_call.1} parent=11 // pred_check_branch
          %330 = sbr.rel (%p328) target = $region32
        $region31: #{tpu_custom_call.1} parent=11 // pred_region
          %s332 = ssub.s32 2048, 2048
          %333 = vsyncadd [#allocation9], %s332
          %s334 = sshll.u32 [#allocation10], 4
          %s335 = int_to_ptr.vmem [resolvable:$true] %s334
          %340 = dma.hbm_to_vmem [thread:$0]  %s7, 2048, %s335, [#allocation9], 128, 128, 8
        $region32: #{tpu_custom_call.1} parent=11 // pred_fallthru
          _
        // Predicated region
        $region33: #{tpu_custom_call.1} parent=11 // pred_check
          %p341 = pneg %p263
        $region34: #{tpu_custom_call.1} parent=11 // pred_check_branch
          %343 = sbr.rel (%p341) target = $region36
        $region35: #{tpu_custom_call.1} parent=11 // pred_region
          _
        $region36: #{tpu_custom_call.1} parent=11 // pred_fallthru
          _
      $region12: #{tpu_custom_call.1} parent=5 // pred_fallthru
        _
      %p344 = scmp.lt.s32.totalorder %s25, 2
      // Predicated region
      $region37: #{tpu_custom_call.1} parent=5 // pred_check
        %p345 = pneg %p344
      $region38: #{tpu_custom_call.1} parent=5 // pred_check_branch
        %347 = sbr.rel (%p345) target = $region40
      $region39: #{tpu_custom_call.1} parent=5 // pred_region
        // Predicated region
        $region41: #{tpu_custom_call.1} parent=39 // pred_check
          %p348 = pneg %p67
        $region42: #{tpu_custom_call.1} parent=39 // pred_check_branch
          %350 = sbr.rel (%p348) target = $region44
        $region43: #{tpu_custom_call.1} parent=39 // pred_region
          %s351 = sand.u32 %s57, 1
          %s352 = scalar_lea.sflag [#allocation3], %s351
          %s353 = sand.u32 %s57, 1
          %s354 = smul.addr %s353, 16
          %s355 = scalar_lea.vmem [#allocation2], %s354
          %s356 = smul.u32 %s33, 16
          %s357 = ssub.s32 %s356, 1
          %p358 = scmp.gt.s32.totalorder %s357, 0
          %s359 = scalar_select %p358, %s357, 0
          %s361 = ssub.s32 256, 256
          %362 = vsyncadd %s352, %s361
          %s363 = smul.addr %s359, 2
          %s364 = smul.addr %s32, 32
          %s365 = sadd.s32 %s363, %s364
          %s366 = smul.addr %s365, 128
          %s367 = scalar_lea.hbm %s0, %s366
          %s368 = sshll.u32 %s355, 4
          %s369 = int_to_ptr.vmem [resolvable:$true] %s368
          %374 = dma.hbm_to_vmem [thread:$0]  %s367, 256, %s369, %s352, 128, 128, 8
        $region44: #{tpu_custom_call.1} parent=39 // pred_fallthru
          _
        // Predicated region
        $region45: #{tpu_custom_call.1} parent=39 // pred_check
          %p375 = pneg %p95
        $region46: #{tpu_custom_call.1} parent=39 // pred_check_branch
          %377 = sbr.rel (%p375) target = $region48
        $region47: #{tpu_custom_call.1} parent=39 // pred_region
          %s378 = sand.u32 %s25, 1
          %s379 = scalar_lea.sflag [#allocation6], %s378
          %s380 = sand.u32 %s85, 1
          %s381 = smul.addr %s380, 256
          %s382 = scalar_lea.vmem [#allocation5], %s381
          %s383 = smul.u32 16, %s33
          %s385 = ssub.s32 4096, 4096
          %386 = vsyncadd %s379, %s385
          %s387 = smul.addr %s383, 2
          %s388 = smul.addr %s32, 32
          %s389 = sadd.s32 %s387, %s388
          %s390 = smul.addr %s389, 128
          %s391 = scalar_lea.hbm %s1, %s390
          %s392 = sshll.u32 %s382, 4
          %s393 = int_to_ptr.vmem [resolvable:$true] %s392
          %398 = dma.hbm_to_vmem [thread:$0]  %s391, 4096, %s393, %s379, 128, 128, 8
        $region48: #{tpu_custom_call.1} parent=39 // pred_fallthru
          _
        // Predicated region
        $region49: #{tpu_custom_call.1} parent=39 // pred_check
          %p399 = pneg %p131
        $region50: #{tpu_custom_call.1} parent=39 // pred_check_branch
          %401 = sbr.rel (%p399) target = $region52
        $region51: #{tpu_custom_call.1} parent=39 // pred_region
          %s402 = sand.u32 %s25, 1
          %s403 = scalar_lea.sflag [#allocation6], %s402
          %s404 = sand.u32 %s121, 1
          %s405 = smul.addr %s404, 16
          %s406 = scalar_lea.vmem [#allocation7], %s405
          %s407 = smul.u32 %s33, 16
          %s408 = sadd.s32 %s407, 16
          %p409 = scmp.lt.s32.totalorder %s408, 15
          %s410 = scalar_select %p409, %s408, 15
          %s412 = ssub.s32 256, 256
          %413 = vsyncadd %s403, %s412
          %s414 = smul.addr %s410, 2
          %s415 = smul.addr %s32, 32
          %s416 = sadd.s32 %s414, %s415
          %s417 = smul.addr %s416, 128
          %s418 = scalar_lea.hbm %s2, %s417
          %s419 = sshll.u32 %s406, 4
          %s420 = int_to_ptr.vmem [resolvable:$true] %s419
          %425 = dma.hbm_to_vmem [thread:$0]  %s418, 256, %s420, %s403, 128, 128, 8
        $region52: #{tpu_custom_call.1} parent=39 // pred_fallthru
          _
      $region40: #{tpu_custom_call.1} parent=5 // pred_fallthru
        _
      %p426 = scmp.le.s32.totalorder 1, %s25
      %p427 = scmp.lt.s32.totalorder %s25, 3
      %p428 = pnand %p426, %p427
      %p429 = pneg %p428
      // Predicated region
      $region53: #{tpu_custom_call.1} parent=5 // pred_check
        _
      $region54: #{tpu_custom_call.1} parent=5 // pred_check_branch
        %431 = sbr.rel (%p428) target = $region56
      $region55: #{tpu_custom_call.1} parent=5 // pred_region
        %s432 = ssub.s32 %s25, 1
        %s433 = sand.u32 %s60, 1
        %s434 = scalar_lea.sflag [#allocation3], %s433
        %s435 = sand.u32 %s60, 1
        %s436 = smul.addr %s435, 16
        %s437 = scalar_lea.vmem [#allocation2], %s436
        // Predicated region
        $region57: #{tpu_custom_call.1} parent=55 // pred_check
          %p438 = pneg %p73
        $region58: #{tpu_custom_call.1} parent=55 // pred_check_branch
          %440 = sbr.rel (%p438) target = $region60
        $region59: #{tpu_custom_call.1} parent=55 // pred_region
          %441 = dma.done %s434, 256
        $region60: #{tpu_custom_call.1} parent=55 // pred_fallthru
          _
        %s442 = sand.u32 %s30, 1
        %s443 = scalar_lea.sflag [#allocation6], %s442
        %s444 = sand.u32 %s88, 1
        %s445 = smul.addr %s444, 256
        %s446 = scalar_lea.vmem [#allocation5], %s445
        // Predicated region
        $region61: #{tpu_custom_call.1} parent=55 // pred_check
          %p447 = pneg %p101
        $region62: #{tpu_custom_call.1} parent=55 // pred_check_branch
          %449 = sbr.rel (%p447) target = $region64
        $region63: #{tpu_custom_call.1} parent=55 // pred_region
          %450 = dma.done %s443, 4096
        $region64: #{tpu_custom_call.1} parent=55 // pred_fallthru
          _
        %s451 = sand.u32 %s30, 1
        %s452 = scalar_lea.sflag [#allocation6], %s451
        %s453 = sand.u32 %s124, 1
        %s454 = smul.addr %s453, 16
        %s455 = scalar_lea.vmem [#allocation7], %s454
        // Predicated region
        $region65: #{tpu_custom_call.1} parent=55 // pred_check
          %p456 = pneg %p137
        $region66: #{tpu_custom_call.1} parent=55 // pred_check_branch
          %458 = sbr.rel (%p456) target = $region68
        $region67: #{tpu_custom_call.1} parent=55 // pred_region
          %459 = dma.done %s452, 256
        $region68: #{tpu_custom_call.1} parent=55 // pred_fallthru
          _
        // Predicated region
        $region69: #{tpu_custom_call.1} parent=55 // pred_check
          %p460 = pneg %p158
        $region70: #{tpu_custom_call.1} parent=55 // pred_check_branch
          %462 = sbr.rel (%p460) target = $region72
        $region71: #{tpu_custom_call.1} parent=55 // pred_region
          %463 = dma.done [#allocation9], 2048
        $region72: #{tpu_custom_call.1} parent=55 // pred_fallthru
          _
        // Predicated region
        $region73: #{tpu_custom_call.1} parent=55 // pred_check
          %p464 = pneg %p242
        $region74: #{tpu_custom_call.1} parent=55 // pred_check_branch
          %466 = sbr.rel (%p464) target = $region76
        $region75: #{tpu_custom_call.1} parent=55 // pred_region
          %467 = dma.done [#allocation9], 2048
        $region76: #{tpu_custom_call.1} parent=55 // pred_fallthru
          _
        %s468 = sand.u32 %s60, 1
        %s469 = scalar_lea.sflag [#allocation3], %s468
        %s470 = sand.u32 %s60, 1
        %s471 = smul.addr %s470, 16
        %s472 = scalar_lea.vmem [#allocation2], %s471
        %p473 = pneg %p73
        %p474 = pneg %p70
        %s475 = sand.u32 %s30, 1
        %s476 = scalar_lea.sflag [#allocation6], %s475
        %s477 = sand.u32 %s88, 1
        %s478 = smul.addr %s477, 256
        %s479 = scalar_lea.vmem [#allocation5], %s478
        %p480 = pneg %p101
        %p481 = pneg %p98
        %s482 = sand.u32 %s30, 1
        %s483 = scalar_lea.sflag [#allocation6], %s482
        %s484 = sand.u32 %s124, 1
        %s485 = smul.addr %s484, 16
        %s486 = scalar_lea.vmem [#allocation7], %s485
        %p487 = pneg %p137
        %p488 = pneg %p134
        %p489 = pneg %p158
        %p490 = pneg %p155
        %p491 = pneg %p179
        %p492 = pneg %p176
        %p493 = pneg %p200
        %p494 = pneg %p197
        %p495 = pneg %p221
        %p496 = pneg %p218
        %p497 = pneg %p242
        %p498 = pneg %p239
        %p499 = pneg %p263
        %p500 = pneg %p260
        %p501 = pneg %p291
        %p502 = pneg %p288
        %s503 = sand.u32 %s278, 1
        %s504 = scalar_lea.sflag [#allocation4], %s503
        %s505 = sand.u32 %s278, 1
        %s506 = smul.addr %s505, 256
        %s507 = scalar_lea.vmem [#allocation11], %s506
        %s508 = smul.u32 %s35, 16
        %s509 = ssub.s32 %s508, 1
        %p510 = scmp.gt.s32.totalorder %s509, 0
        %s511 = scalar_select %p510, %s509, 0
        %s512 = smul.u32 16, %s35
        %s513 = smul.u32 %s35, 16
        %s514 = sadd.s32 %s513, 16
        %p515 = scmp.lt.s32.totalorder %s514, 15
        %s516 = scalar_select %p515, %s514, 15
        %s517 = smul.u32 16, %s35
        %v518 = vld [vmem:[%s437] sm:$0xff]
        %v519 = vld [vmem:[%s437 + $0x8] sm:$0xff]
        %v520 = vld [vmem:[%s446] sm:$0xff]
        %v521 = vld [vmem:[%s446 + $0x8] sm:$0xff]
        %v522 = vld [vmem:[%s446 + $0x10] sm:$0xff]
        %v523 = vld [vmem:[%s446 + $0x18] sm:$0xff]
        %v524 = vld [vmem:[%s446 + $0x20] sm:$0xff]
        %v525 = vld [vmem:[%s446 + $0x28] sm:$0xff]
        %v526 = vld [vmem:[%s446 + $0x30] sm:$0xff]
        %v527 = vld [vmem:[%s446 + $0x38] sm:$0xff]
        %v528 = vld [vmem:[%s446 + $0x40] sm:$0xff]
        %v529 = vld [vmem:[%s446 + $0x48] sm:$0xff]
        %v530 = vld [vmem:[%s446 + $0x50] sm:$0xff]
        %v531 = vld [vmem:[%s446 + $0x58] sm:$0xff]
        %v532 = vld [vmem:[%s446 + $0x60] sm:$0xff]
        %v533 = vld [vmem:[%s446 + $0x68] sm:$0xff]
        %v534 = vld [vmem:[%s446 + $0x70] sm:$0xff]
        %v535 = vld [vmem:[%s446 + $0x78] sm:$0xff]
        %v536 = vld [vmem:[%s446 + $0x80] sm:$0xff]
        %v537 = vld [vmem:[%s446 + $0x88] sm:$0xff]
        %v538 = vld [vmem:[%s446 + $0x90] sm:$0xff]
        %v539 = vld [vmem:[%s446 + $0x98] sm:$0xff]
        %v540 = vld [vmem:[%s446 + $0xa0] sm:$0xff]
        %v541 = vld [vmem:[%s446 + $0xa8] sm:$0xff]
        %v542 = vld [vmem:[%s446 + $0xb0] sm:$0xff]
        %v543 = vld [vmem:[%s446 + $0xb8] sm:$0xff]
        %v544 = vld [vmem:[%s446 + $0xc0] sm:$0xff]
        %v545 = vld [vmem:[%s446 + $0xc8] sm:$0xff]
        %v546 = vld [vmem:[%s446 + $0xd0] sm:$0xff]
        %v547 = vld [vmem:[%s446 + $0xd8] sm:$0xff]
        %v548 = vld [vmem:[%s446 + $0xe0] sm:$0xff]
        %v549 = vld [vmem:[%s446 + $0xe8] sm:$0xff]
        %v550 = vld [vmem:[%s446 + $0xf0] sm:$0xff]
        %v551 = vld [vmem:[%s446 + $0xf8] sm:$0xff]
        %v552 = vld [vmem:[%s455] sm:$0xff]
        %v553 = vld [vmem:[%s455 + $0x8] sm:$0xff]
        %v554 = vld [vmem:[#allocation8] sm:$0xff]
        %v555 = vld [vmem:[#allocation8 + $0x8] sm:$0xff]
        %v556 = vld [vmem:[#allocation8 + $0x10] sm:$0xff]
        %v557 = vld [vmem:[#allocation8 + $0x18] sm:$0xff]
        %v558 = vld [vmem:[#allocation8 + $0x20] sm:$0xff]
        %v559 = vld [vmem:[#allocation8 + $0x28] sm:$0xff]
        %v560 = vld [vmem:[#allocation8 + $0x30] sm:$0xff]
        %v561 = vld [vmem:[#allocation8 + $0x38] sm:$0xff]
        %v562 = vld [vmem:[#allocation8 + $0x40] sm:$0xff]
        %v563 = vld [vmem:[#allocation8 + $0x48] sm:$0xff]
        %v564 = vld [vmem:[#allocation8 + $0x50] sm:$0xff]
        %v565 = vld [vmem:[#allocation8 + $0x58] sm:$0xff]
        %v566 = vld [vmem:[#allocation8 + $0x60] sm:$0xff]
        %v567 = vld [vmem:[#allocation8 + $0x68] sm:$0xff]
        %v568 = vld [vmem:[#allocation8 + $0x70] sm:$0xff]
        %v569 = vld [vmem:[#allocation8 + $0x78] sm:$0xff]
        %v570 = vld [vmem:[%s4] sm:$0x1]
        %v572 = vlaneseq
        %v573 = vshrl.u32 %v572, 7
        %v574 = vsub.s32 0, %v573
        %v575 = vrot.slane %v570, %v574
        %577 = vmatprep.subr.mxu0 0.0
        %578 = vmatpush1.msra.mxu0 %v554
        %579 = vmatprep.subr.mxu0 0.0
        %580 = vmatpush1.msra.mxu0 %v555
        %581 = vmatprep.subr.mxu0 0.0
        %582 = vmatpush1.msra.mxu0 %v556
        %583 = vmatprep.subr.mxu0 0.0
        %584 = vmatpush1.msra.mxu0 %v557
        %585 = vmatprep.subr.mxu0 0.0
        %586 = vmatpush1.msra.mxu0 %v558
        %587 = vmatprep.subr.mxu0 0.0
        %588 = vmatpush1.msra.mxu0 %v559
        %589 = vmatprep.subr.mxu0 0.0
        %590 = vmatpush1.msra.mxu0 %v560
        %591 = vmatprep.subr.mxu0 0.0
        %592 = vmatpush1.msra.mxu0 %v561
        %593 = vmatprep.subr.mxu0 0.0
        %594 = vmatpush1.msra.mxu0 %v562
        %595 = vmatprep.subr.mxu0 0.0
        %596 = vmatpush1.msra.mxu0 %v563
        %597 = vmatprep.subr.mxu0 0.0
        %598 = vmatpush1.msra.mxu0 %v564
        %599 = vmatprep.subr.mxu0 0.0
        %600 = vmatpush1.msra.mxu0 %v565
        %601 = vmatprep.subr.mxu0 0.0
        %602 = vmatpush1.msra.mxu0 %v566
        %603 = vmatprep.subr.mxu0 0.0
        %604 = vmatpush1.msra.mxu0 %v567
        %605 = vmatprep.subr.mxu0 0.0
        %606 = vmatpush1.msra.mxu0 %v568
        %607 = vmatprep.subr.mxu0 0.0
        %608 = vmatpush1.msra.mxu0 %v569
        %609 = vmatprep.subr.mxu0 0.0
        %610 = vmatpush1.msra.mxu0 0.0
        %611 = vmatprep.subr.mxu0 0.0
        %612 = vmatpush1.msra.mxu0 0.0
        %613 = vmatprep.subr.mxu0 0.0
        %614 = vmatpush1.msra.mxu0 0.0
        %615 = vmatprep.subr.mxu0 0.0
        %616 = vmatpush1.msra.mxu0 0.0
        %617 = vmatprep.subr.mxu0 0.0
        %618 = vmatpush1.msra.mxu0 0.0
        %619 = vmatprep.subr.mxu0 0.0
        %620 = vmatpush1.msra.mxu0 0.0
        %621 = vmatprep.subr.mxu0 0.0
        %622 = vmatpush1.msra.mxu0 0.0
        %623 = vmatprep.subr.mxu0 0.0
        %624 = vmatpush1.msra.mxu0 0.0
        %625 = vmatprep.subr.mxu0 0.0
        %626 = vmatpush1.msra.mxu0 0.0
        %627 = vmatprep.subr.mxu0 0.0
        %628 = vmatpush1.msra.mxu0 0.0
        %629 = vmatprep.subr.mxu0 0.0
        %630 = vmatpush1.msra.mxu0 0.0
        %631 = vmatprep.subr.mxu0 0.0
        %632 = vmatpush1.msra.mxu0 0.0
        %633 = vmatprep.subr.mxu0 0.0
        %634 = vmatpush1.msra.mxu0 0.0
        %635 = vmatprep.subr.mxu0 0.0
        %636 = vmatpush1.msra.mxu0 0.0
        %637 = vmatprep.subr.mxu0 0.0
        %638 = vmatpush1.msra.mxu0 0.0
        %639 = vmatprep.subr.mxu0 0.0
        %640 = vmatpush1.msra.mxu0 0.0
        %641 = vmatprep.mubr.f32.mxu0 0.0
        %642 = vmatmul.mubr.f32.gmra.mrb[0].mxu0 %v518
        %v643 = vpop.f32.mrb[0].mxu0
        %v644 = vadd.f32 %v575, %v643
        %v645 = vpop.f32.mrb[0].mxu0
        %646 = vmatprep.mubr.f32.mxu0 0.0
        %647 = vmatmul.mubr.f32.gmra.mrb[0].mxu0 %v519
        %v648 = vpop.f32.mrb[0].mxu0
        %v649 = vadd.f32 %v575, %v648
        %v650 = vpop.f32.mrb[0].mxu0
        %651 = vmatprep.mubr.f32.mxu0 0.0
        %652 = vmatmul.mubr.f32.gmra.mrb[0].mxu0 %v520
        %v653 = vpop.f32.mrb[0].mxu0
        %v654 = vadd.f32 %v575, %v653
        %v655 = vpop.f32.mrb[0].mxu0
        %656 = vmatprep.mubr.f32.mxu0 0.0
        %657 = vmatmul.mubr.f32.gmra.mrb[0].mxu0 %v521
        %v658 = vpop.f32.mrb[0].mxu0
        %v659 = vadd.f32 %v575, %v658
        %v660 = vpop.f32.mrb[0].mxu0
        %661 = vmatprep.mubr.f32.mxu0 0.0
        %662 = vmatmul.mubr.f32.gmra.mrb[0].mxu0 %v522
        %v663 = vpop.f32.mrb[0].mxu0
        %v664 = vadd.f32 %v575, %v663
        %v665 = vpop.f32.mrb[0].mxu0
        %666 = vmatprep.mubr.f32.mxu0 0.0
        %667 = vmatmul.mubr.f32.gmra.mrb[0].mxu0 %v523
        %v668 = vpop.f32.mrb[0].mxu0
        %v669 = vadd.f32 %v575, %v668
        %v670 = vpop.f32.mrb[0].mxu0
        %671 = vmatprep.mubr.f32.mxu0 0.0
        %672 = vmatmul.mubr.f32.gmra.mrb[0].mxu0 %v524
        %v673 = vpop.f32.mrb[0].mxu0
        %v674 = vadd.f32 %v575, %v673
        %v675 = vpop.f32.mrb[0].mxu0
        %676 = vmatprep.mubr.f32.mxu0 0.0
        %677 = vmatmul.mubr.f32.gmra.mrb[0].mxu0 %v525
        %v678 = vpop.f32.mrb[0].mxu0
        %v679 = vadd.f32 %v575, %v678
        %v680 = vpop.f32.mrb[0].mxu0
        %681 = vmatprep.mubr.f32.mxu0 0.0
        %682 = vmatmul.mubr.f32.gmra.mrb[0].mxu0 %v526
        %v683 = vpop.f32.mrb[0].mxu0
        %v684 = vadd.f32 %v575, %v683
        %v685 = vpop.f32.mrb[0].mxu0
        %686 = vmatprep.mubr.f32.mxu0 0.0
        %687 = vmatmul.mubr.f32.gmra.mrb[0].mxu0 %v527
        %v688 = vpop.f32.mrb[0].mxu0
        %v689 = vadd.f32 %v575, %v688
        %v690 = vpop.f32.mrb[0].mxu0
        %691 = vmatprep.mubr.f32.mxu0 0.0
        %692 = vmatmul.mubr.f32.gmra.mrb[0].mxu0 %v528
        %v693 = vpop.f32.mrb[0].mxu0
        %v694 = vadd.f32 %v575, %v693
        %v695 = vpop.f32.mrb[0].mxu0
        %696 = vmatprep.mubr.f32.mxu0 0.0
        %697 = vmatmul.mubr.f32.gmra.mrb[0].mxu0 %v529
        %v698 = vpop.f32.mrb[0].mxu0
        %v699 = vadd.f32 %v575, %v698
        %v700 = vpop.f32.mrb[0].mxu0
        %701 = vmatprep.mubr.f32.mxu0 0.0
        %702 = vmatmul.mubr.f32.gmra.mrb[0].mxu0 %v530
        %v703 = vpop.f32.mrb[0].mxu0
        %v704 = vadd.f32 %v575, %v703
        %v705 = vpop.f32.mrb[0].mxu0
        %706 = vmatprep.mubr.f32.mxu0 0.0
        %707 = vmatmul.mubr.f32.gmra.mrb[0].mxu0 %v531
        %v708 = vpop.f32.mrb[0].mxu0
        %v709 = vadd.f32 %v575, %v708
        %v710 = vpop.f32.mrb[0].mxu0
        %711 = vmatprep.mubr.f32.mxu0 0.0
        %712 = vmatmul.mubr.f32.gmra.mrb[0].mxu0 %v532
        %v713 = vpop.f32.mrb[0].mxu0
        %v714 = vadd.f32 %v575, %v713
        %v715 = vpop.f32.mrb[0].mxu0
        %716 = vmatprep.mubr.f32.mxu0 0.0
        %717 = vmatmul.mubr.f32.gmra.mrb[0].mxu0 %v533
        %v718 = vpop.f32.mrb[0].mxu0
        %v719 = vadd.f32 %v575, %v718
        %v720 = vpop.f32.mrb[0].mxu0
        %721 = vmatprep.mubr.f32.mxu0 0.0
        %722 = vmatmul.mubr.f32.gmra.mrb[0].mxu0 %v534
        %v723 = vpop.f32.mrb[0].mxu0
        %v724 = vadd.f32 %v575, %v723
        %v725 = vpop.f32.mrb[0].mxu0
        %726 = vmatprep.mubr.f32.mxu0 0.0
        %727 = vmatmul.mubr.f32.gmra.mrb[0].mxu0 %v535
        %v728 = vpop.f32.mrb[0].mxu0
        %v729 = vadd.f32 %v575, %v728
        %v730 = vpop.f32.mrb[0].mxu0
        %731 = vmatprep.mubr.f32.mxu0 0.0
        %732 = vmatmul.mubr.f32.gmra.mrb[0].mxu0 %v536
        %v733 = vpop.f32.mrb[0].mxu0
        %v734 = vadd.f32 %v575, %v733
        %v735 = vpop.f32.mrb[0].mxu0
        %736 = vmatprep.mubr.f32.mxu0 0.0
        %737 = vmatmul.mubr.f32.gmra.mrb[0].mxu0 %v537
        %v738 = vpop.f32.mrb[0].mxu0
        %v739 = vadd.f32 %v575, %v738
        %v740 = vpop.f32.mrb[0].mxu0
        %741 = vmatprep.mubr.f32.mxu0 0.0
        %742 = vmatmul.mubr.f32.gmra.mrb[0].mxu0 %v538
        %v743 = vpop.f32.mrb[0].mxu0
        %v744 = vadd.f32 %v575, %v743
        %v745 = vpop.f32.mrb[0].mxu0
        %746 = vmatprep.mubr.f32.mxu0 0.0
        %747 = vmatmul.mubr.f32.gmra.mrb[0].mxu0 %v539
        %v748 = vpop.f32.mrb[0].mxu0
        %v749 = vadd.f32 %v575, %v748
        %v750 = vpop.f32.mrb[0].mxu0
        %751 = vmatprep.mubr.f32.mxu0 0.0
        %752 = vmatmul.mubr.f32.gmra.mrb[0].mxu0 %v540
        %v753 = vpop.f32.mrb[0].mxu0
        %v754 = vadd.f32 %v575, %v753
        %v755 = vpop.f32.mrb[0].mxu0
        %756 = vmatprep.mubr.f32.mxu0 0.0
        %757 = vmatmul.mubr.f32.gmra.mrb[0].mxu0 %v541
        %v758 = vpop.f32.mrb[0].mxu0
        %v759 = vadd.f32 %v575, %v758
        %v760 = vpop.f32.mrb[0].mxu0
        %761 = vmatprep.mubr.f32.mxu0 0.0
        %762 = vmatmul.mubr.f32.gmra.mrb[0].mxu0 %v542
        %v763 = vpop.f32.mrb[0].mxu0
        %v764 = vadd.f32 %v575, %v763
        %v765 = vpop.f32.mrb[0].mxu0
        %766 = vmatprep.mubr.f32.mxu0 0.0
        %767 = vmatmul.mubr.f32.gmra.mrb[0].mxu0 %v543
        %v768 = vpop.f32.mrb[0].mxu0
        %v769 = vadd.f32 %v575, %v768
        %v770 = vpop.f32.mrb[0].mxu0
        %771 = vmatprep.mubr.f32.mxu0 0.0
        %772 = vmatmul.mubr.f32.gmra.mrb[0].mxu0 %v544
        %v773 = vpop.f32.mrb[0].mxu0
        %v774 = vadd.f32 %v575, %v773
        %v775 = vpop.f32.mrb[0].mxu0
        %776 = vmatprep.mubr.f32.mxu0 0.0
        %777 = vmatmul.mubr.f32.gmra.mrb[0].mxu0 %v545
        %v778 = vpop.f32.mrb[0].mxu0
        %v779 = vadd.f32 %v575, %v778
        %v780 = vpop.f32.mrb[0].mxu0
        %781 = vmatprep.mubr.f32.mxu0 0.0
        %782 = vmatmul.mubr.f32.gmra.mrb[0].mxu0 %v546
        %v783 = vpop.f32.mrb[0].mxu0
        %v784 = vadd.f32 %v575, %v783
        %v785 = vpop.f32.mrb[0].mxu0
        %786 = vmatprep.mubr.f32.mxu0 0.0
        %787 = vmatmul.mubr.f32.gmra.mrb[0].mxu0 %v547
        %v788 = vpop.f32.mrb[0].mxu0
        %v789 = vadd.f32 %v575, %v788
        %v790 = vpop.f32.mrb[0].mxu0
        %791 = vmatprep.mubr.f32.mxu0 0.0
        %792 = vmatmul.mubr.f32.gmra.mrb[0].mxu0 %v548
        %v793 = vpop.f32.mrb[0].mxu0
        %v794 = vadd.f32 %v575, %v793
        %v795 = vpop.f32.mrb[0].mxu0
        %796 = vmatprep.mubr.f32.mxu0 0.0
        %797 = vmatmul.mubr.f32.gmra.mrb[0].mxu0 %v549
        %v798 = vpop.f32.mrb[0].mxu0
        %v799 = vadd.f32 %v575, %v798
        %v800 = vpop.f32.mrb[0].mxu0
        %801 = vmatprep.mubr.f32.mxu0 0.0
        %802 = vmatmul.mubr.f32.gmra.mrb[0].mxu0 %v550
        %v803 = vpop.f32.mrb[0].mxu0
        %v804 = vadd.f32 %v575, %v803
        %v805 = vpop.f32.mrb[0].mxu0
        %806 = vmatprep.mubr.f32.mxu0 0.0
        %807 = vmatmul.mubr.f32.gmra.mrb[0].mxu0 %v551
        %v808 = vpop.f32.mrb[0].mxu0
        %v809 = vadd.f32 %v575, %v808
        %v810 = vpop.f32.mrb[0].mxu0
        %811 = vmatprep.mubr.f32.mxu0 0.0
        %812 = vmatmul.mubr.f32.gmra.mrb[0].mxu0 %v552
        %v813 = vpop.f32.mrb[0].mxu0
        %v814 = vadd.f32 %v575, %v813
        %v815 = vpop.f32.mrb[0].mxu0
        %816 = vmatprep.mubr.f32.mxu0 0.0
        %817 = vmatmul.mubr.f32.gmra.mrb[0].mxu0 %v553
        %v818 = vpop.f32.mrb[0].mxu0
        %v819 = vadd.f32 %v575, %v818
        %v820 = vpop.f32.mrb[0].mxu0
        %821 = vdwg.mxu0
        %v822 = vlaneseq
        %v823 = vshrl.u32 %v822, 7
        %v824 = vadd.s32 %v823, 8
        %v825 = vadd.s32 %v823, 16
        %v826 = vadd.s32 %v823, 24
        %v827 = vadd.s32 %v823, 32
        %v828 = vadd.s32 %v823, 40
        %v829 = vadd.s32 %v823, 48
        %v830 = vadd.s32 %v823, 56
        %v831 = vadd.s32 %v823, 64
        %v832 = vadd.s32 %v823, 72
        %v833 = vadd.s32 %v823, 80
        %v834 = vadd.s32 %v823, 88
        %v835 = vadd.s32 %v823, 96
        %v836 = vadd.s32 %v823, 104
        %v837 = vadd.s32 %v823, 112
        %v838 = vadd.s32 %v823, 120
        %v839 = vadd.s32 %v823, 128
        %v840 = vadd.s32 %v823, 136
        %v841 = vadd.s32 %v823, 144
        %v842 = vadd.s32 %v823, 152
        %v843 = vadd.s32 %v823, 160
        %v844 = vadd.s32 %v823, 168
        %v845 = vadd.s32 %v823, 176
        %v846 = vadd.s32 %v823, 184
        %v847 = vadd.s32 %v823, 192
        %v848 = vadd.s32 %v823, 200
        %v849 = vadd.s32 %v823, 208
        %v850 = vadd.s32 %v823, 216
        %v851 = vadd.s32 %v823, 224
        %v852 = vadd.s32 %v823, 232
        %v853 = vadd.s32 %v823, 240
        %v854 = vadd.s32 %v823, 248
        %v855 = vadd.s32 %v823, 256
        %v856 = vadd.s32 %v823, 264
        %v857 = vadd.s32 %v823, 272
        %v858 = vadd.s32 %v823, 280
        %vm859 = vcmp.ge.s32.totalorder %v823, 16
        %vm860 = vcmp.ge.s32.totalorder %v824, 16
        %vm861 = vcmp.ge.s32.totalorder %v825, 16
        %vm862 = vcmp.ge.s32.totalorder %v826, 16
        %vm863 = vcmp.ge.s32.totalorder %v827, 16
        %vm864 = vcmp.ge.s32.totalorder %v828, 16
        %vm865 = vcmp.ge.s32.totalorder %v829, 16
        %vm866 = vcmp.ge.s32.totalorder %v830, 16
        %vm867 = vcmp.ge.s32.totalorder %v831, 16
        %vm868 = vcmp.ge.s32.totalorder %v832, 16
        %vm869 = vcmp.ge.s32.totalorder %v833, 16
        %vm870 = vcmp.ge.s32.totalorder %v834, 16
        %vm871 = vcmp.ge.s32.totalorder %v835, 16
        %vm872 = vcmp.ge.s32.totalorder %v836, 16
        %vm873 = vcmp.ge.s32.totalorder %v837, 16
        %vm874 = vcmp.ge.s32.totalorder %v838, 16
        %vm875 = vcmp.ge.s32.totalorder %v839, 16
        %vm876 = vcmp.ge.s32.totalorder %v840, 16
        %vm877 = vcmp.ge.s32.totalorder %v841, 16
        %vm878 = vcmp.ge.s32.totalorder %v842, 16
        %vm879 = vcmp.ge.s32.totalorder %v843, 16
        %vm880 = vcmp.ge.s32.totalorder %v844, 16
        %vm881 = vcmp.ge.s32.totalorder %v845, 16
        %vm882 = vcmp.ge.s32.totalorder %v846, 16
        %vm883 = vcmp.ge.s32.totalorder %v847, 16
        %vm884 = vcmp.ge.s32.totalorder %v848, 16
        %vm885 = vcmp.ge.s32.totalorder %v849, 16
        %vm886 = vcmp.ge.s32.totalorder %v850, 16
        %vm887 = vcmp.ge.s32.totalorder %v851, 16
        %vm888 = vcmp.ge.s32.totalorder %v852, 16
        %vm889 = vcmp.ge.s32.totalorder %v853, 16
        %vm890 = vcmp.ge.s32.totalorder %v854, 16
        %vm891 = vcmp.ge.s32.totalorder %v855, 16
        %vm892 = vcmp.ge.s32.totalorder %v856, 16
        %vm893 = vcmp.ge.s32.totalorder %v857, 16
        %vm894 = vcmp.ge.s32.totalorder %v858, 16
        %p895 = scmp.gt.s32.totalorder %s35, 0
        %s896 = scalar_select %p895, 1, 0
        %v897 = vstv %s896
        %vm898 = vcmp.eq.s32.totalorder %v897, 1
        %vm899 = vmor %vm859, %vm898
        %vm900 = vmor %vm860, %vm898
        %vm901 = vmor %vm861, %vm898
        %vm902 = vmor %vm862, %vm898
        %vm903 = vmor %vm863, %vm898
        %vm904 = vmor %vm864, %vm898
        %vm905 = vmor %vm865, %vm898
        %vm906 = vmor %vm866, %vm898
        %vm907 = vmor %vm867, %vm898
        %vm908 = vmor %vm868, %vm898
        %vm909 = vmor %vm869, %vm898
        %vm910 = vmor %vm870, %vm898
        %vm911 = vmor %vm871, %vm898
        %vm912 = vmor %vm872, %vm898
        %vm913 = vmor %vm873, %vm898
        %vm914 = vmor %vm874, %vm898
        %vm915 = vmor %vm875, %vm898
        %vm916 = vmor %vm876, %vm898
        %vm917 = vmor %vm877, %vm898
        %vm918 = vmor %vm878, %vm898
        %vm919 = vmor %vm879, %vm898
        %vm920 = vmor %vm880, %vm898
        %vm921 = vmor %vm881, %vm898
        %vm922 = vmor %vm882, %vm898
        %vm923 = vmor %vm883, %vm898
        %vm924 = vmor %vm884, %vm898
        %vm925 = vmor %vm885, %vm898
        %vm926 = vmor %vm886, %vm898
        %vm927 = vmor %vm887, %vm898
        %vm928 = vmor %vm888, %vm898
        %vm929 = vmor %vm889, %vm898
        %vm930 = vmor %vm890, %vm898
        %vm931 = vmor %vm891, %vm898
        %vm932 = vmor %vm892, %vm898
        %vm933 = vmor %vm893, %vm898
        %vm934 = vmor %vm894, %vm898
        %vm935 = vcmp.lt.s32.totalorder %v823, 272
        %vm936 = vcmp.lt.s32.totalorder %v824, 272
        %vm937 = vcmp.lt.s32.totalorder %v825, 272
        %vm938 = vcmp.lt.s32.totalorder %v826, 272
        %vm939 = vcmp.lt.s32.totalorder %v827, 272
        %vm940 = vcmp.lt.s32.totalorder %v828, 272
        %vm941 = vcmp.lt.s32.totalorder %v829, 272
        %vm942 = vcmp.lt.s32.totalorder %v830, 272
        %vm943 = vcmp.lt.s32.totalorder %v831, 272
        %vm944 = vcmp.lt.s32.totalorder %v832, 272
        %vm945 = vcmp.lt.s32.totalorder %v833, 272
        %vm946 = vcmp.lt.s32.totalorder %v834, 272
        %vm947 = vcmp.lt.s32.totalorder %v835, 272
        %vm948 = vcmp.lt.s32.totalorder %v836, 272
        %vm949 = vcmp.lt.s32.totalorder %v837, 272
        %vm950 = vcmp.lt.s32.totalorder %v838, 272
        %vm951 = vcmp.lt.s32.totalorder %v839, 272
        %vm952 = vcmp.lt.s32.totalorder %v840, 272
        %vm953 = vcmp.lt.s32.totalorder %v841, 272
        %vm954 = vcmp.lt.s32.totalorder %v842, 272
        %vm955 = vcmp.lt.s32.totalorder %v843, 272
        %vm956 = vcmp.lt.s32.totalorder %v844, 272
        %vm957 = vcmp.lt.s32.totalorder %v845, 272
        %vm958 = vcmp.lt.s32.totalorder %v846, 272
        %vm959 = vcmp.lt.s32.totalorder %v847, 272
        %vm960 = vcmp.lt.s32.totalorder %v848, 272
        %vm961 = vcmp.lt.s32.totalorder %v849, 272
        %vm962 = vcmp.lt.s32.totalorder %v850, 272
        %vm963 = vcmp.lt.s32.totalorder %v851, 272
        %vm964 = vcmp.lt.s32.totalorder %v852, 272
        %vm965 = vcmp.lt.s32.totalorder %v853, 272
        %vm966 = vcmp.lt.s32.totalorder %v854, 272
        %vm967 = vcmp.lt.s32.totalorder %v855, 272
        %vm968 = vcmp.lt.s32.totalorder %v856, 272
        %vm969 = vcmp.lt.s32.totalorder %v857, 272
        %vm970 = vcmp.lt.s32.totalorder %v858, 272
        %p971 = scmp.lt.s32.totalorder %s35, 0
        %s972 = scalar_select %p971, 1, 0
        %v973 = vstv %s972
        %vm974 = vcmp.eq.s32.totalorder %v973, 1
        %vm975 = vmor %vm935, %vm974
        %vm976 = vmor %vm936, %vm974
        %vm977 = vmor %vm937, %vm974
        %vm978 = vmor %vm938, %vm974
        %vm979 = vmor %vm939, %vm974
        %vm980 = vmor %vm940, %vm974
        %vm981 = vmor %vm941, %vm974
        %vm982 = vmor %vm942, %vm974
        %vm983 = vmor %vm943, %vm974
        %vm984 = vmor %vm944, %vm974
        %vm985 = vmor %vm945, %vm974
        %vm986 = vmor %vm946, %vm974
        %vm987 = vmor %vm947, %vm974
        %vm988 = vmor %vm948, %vm974
        %vm989 = vmor %vm949, %vm974
        %vm990 = vmor %vm950, %vm974
        %vm991 = vmor %vm951, %vm974
        %vm992 = vmor %vm952, %vm974
        %vm993 = vmor %vm953, %vm974
        %vm994 = vmor %vm954, %vm974
        %vm995 = vmor %vm955, %vm974
        %vm996 = vmor %vm956, %vm974
        %vm997 = vmor %vm957, %vm974
        %vm998 = vmor %vm958, %vm974
        %vm999 = vmor %vm959, %vm974
        %vm1000 = vmor %vm960, %vm974
        %vm1001 = vmor %vm961, %vm974
        %vm1002 = vmor %vm962, %vm974
        %vm1003 = vmor %vm963, %vm974
        %vm1004 = vmor %vm964, %vm974
        %vm1005 = vmor %vm965, %vm974
        %vm1006 = vmor %vm966, %vm974
        %vm1007 = vmor %vm967, %vm974
        %vm1008 = vmor %vm968, %vm974
        %vm1009 = vmor %vm969, %vm974
        %vm1010 = vmor %vm970, %vm974
        %vm1011 = vmand %vm899, %vm975
        %vm1012 = vmand %vm900, %vm976
        %vm1013 = vmand %vm901, %vm977
        %vm1014 = vmand %vm902, %vm978
        %vm1015 = vmand %vm903, %vm979
        %vm1016 = vmand %vm904, %vm980
        %vm1017 = vmand %vm905, %vm981
        %vm1018 = vmand %vm906, %vm982
        %vm1019 = vmand %vm907, %vm983
        %vm1020 = vmand %vm908, %vm984
        %vm1021 = vmand %vm909, %vm985
        %vm1022 = vmand %vm910, %vm986
        %vm1023 = vmand %vm911, %vm987
        %vm1024 = vmand %vm912, %vm988
        %vm1025 = vmand %vm913, %vm989
        %vm1026 = vmand %vm914, %vm990
        %vm1027 = vmand %vm915, %vm991
        %vm1028 = vmand %vm916, %vm992
        %vm1029 = vmand %vm917, %vm993
        %vm1030 = vmand %vm918, %vm994
        %vm1031 = vmand %vm919, %vm995
        %vm1032 = vmand %vm920, %vm996
        %vm1033 = vmand %vm921, %vm997
        %vm1034 = vmand %vm922, %vm998
        %vm1035 = vmand %vm923, %vm999
        %vm1036 = vmand %vm924, %vm1000
        %vm1037 = vmand %vm925, %vm1001
        %vm1038 = vmand %vm926, %vm1002
        %vm1039 = vmand %vm927, %vm1003
        %vm1040 = vmand %vm928, %vm1004
        %vm1041 = vmand %vm929, %vm1005
        %vm1042 = vmand %vm930, %vm1006
        %vm1043 = vmand %vm931, %vm1007
        %vm1044 = vmand %vm932, %vm1008
        %vm1045 = vmand %vm933, %vm1009
        %vm1046 = vmand %vm934, %vm1010
        %v1047 = vsel %vm1011, 1, 0
        %v1048 = vsel %vm1012, 1, 0
        %v1049 = vsel %vm1013, 1, 0
        %v1050 = vsel %vm1014, 1, 0
        %v1051 = vsel %vm1015, 1, 0
        %v1052 = vsel %vm1016, 1, 0
        %v1053 = vsel %vm1017, 1, 0
        %v1054 = vsel %vm1018, 1, 0
        %v1055 = vsel %vm1019, 1, 0
        %v1056 = vsel %vm1020, 1, 0
        %v1057 = vsel %vm1021, 1, 0
        %v1058 = vsel %vm1022, 1, 0
        %v1059 = vsel %vm1023, 1, 0
        %v1060 = vsel %vm1024, 1, 0
        %v1061 = vsel %vm1025, 1, 0
        %v1062 = vsel %vm1026, 1, 0
        %v1063 = vsel %vm1027, 1, 0
        %v1064 = vsel %vm1028, 1, 0
        %v1065 = vsel %vm1029, 1, 0
        %v1066 = vsel %vm1030, 1, 0
        %v1067 = vsel %vm1031, 1, 0
        %v1068 = vsel %vm1032, 1, 0
        %v1069 = vsel %vm1033, 1, 0
        %v1070 = vsel %vm1034, 1, 0
        %v1071 = vsel %vm1035, 1, 0
        %v1072 = vsel %vm1036, 1, 0
        %v1073 = vsel %vm1037, 1, 0
        %v1074 = vsel %vm1038, 1, 0
        %v1075 = vsel %vm1039, 1, 0
        %v1076 = vsel %vm1040, 1, 0
        %v1077 = vsel %vm1041, 1, 0
        %v1078 = vsel %vm1042, 1, 0
        %v1079 = vsel %vm1043, 1, 0
        %v1080 = vsel %vm1044, 1, 0
        %v1081 = vsel %vm1045, 1, 0
        %v1082 = vsel %vm1046, 1, 0
        %vm1083 = vcmp.eq.s32.totalorder %v1047, 1
        %vm1084 = vcmp.eq.s32.totalorder %v1048, 1
        %vm1085 = vcmp.eq.s32.totalorder %v1049, 1
        %vm1086 = vcmp.eq.s32.totalorder %v1050, 1
        %vm1087 = vcmp.eq.s32.totalorder %v1051, 1
        %vm1088 = vcmp.eq.s32.totalorder %v1052, 1
        %vm1089 = vcmp.eq.s32.totalorder %v1053, 1
        %vm1090 = vcmp.eq.s32.totalorder %v1054, 1
        %vm1091 = vcmp.eq.s32.totalorder %v1055, 1
        %vm1092 = vcmp.eq.s32.totalorder %v1056, 1
        %vm1093 = vcmp.eq.s32.totalorder %v1057, 1
        %vm1094 = vcmp.eq.s32.totalorder %v1058, 1
        %vm1095 = vcmp.eq.s32.totalorder %v1059, 1
        %vm1096 = vcmp.eq.s32.totalorder %v1060, 1
        %vm1097 = vcmp.eq.s32.totalorder %v1061, 1
        %vm1098 = vcmp.eq.s32.totalorder %v1062, 1
        %vm1099 = vcmp.eq.s32.totalorder %v1063, 1
        %vm1100 = vcmp.eq.s32.totalorder %v1064, 1
        %vm1101 = vcmp.eq.s32.totalorder %v1065, 1
        %vm1102 = vcmp.eq.s32.totalorder %v1066, 1
        %vm1103 = vcmp.eq.s32.totalorder %v1067, 1
        %vm1104 = vcmp.eq.s32.totalorder %v1068, 1
        %vm1105 = vcmp.eq.s32.totalorder %v1069, 1
        %vm1106 = vcmp.eq.s32.totalorder %v1070, 1
        %vm1107 = vcmp.eq.s32.totalorder %v1071, 1
        %vm1108 = vcmp.eq.s32.totalorder %v1072, 1
        %vm1109 = vcmp.eq.s32.totalorder %v1073, 1
        %vm1110 = vcmp.eq.s32.totalorder %v1074, 1
        %vm1111 = vcmp.eq.s32.totalorder %v1075, 1
        %vm1112 = vcmp.eq.s32.totalorder %v1076, 1
        %vm1113 = vcmp.eq.s32.totalorder %v1077, 1
        %vm1114 = vcmp.eq.s32.totalorder %v1078, 1
        %vm1115 = vcmp.eq.s32.totalorder %v1079, 1
        %vm1116 = vcmp.eq.s32.totalorder %v1080, 1
        %vm1117 = vcmp.eq.s32.totalorder %v1081, 1
        %vm1118 = vcmp.eq.s32.totalorder %v1082, 1
        %v1119 = vsel %vm1083, %v644, 0.0
        %v1120 = vsel %vm1084, %v649, 0.0
        %v1121 = vsel %vm1085, %v654, 0.0
        %v1122 = vsel %vm1086, %v659, 0.0
        %v1123 = vsel %vm1087, %v664, 0.0
        %v1124 = vsel %vm1088, %v669, 0.0
        %v1125 = vsel %vm1089, %v674, 0.0
        %v1126 = vsel %vm1090, %v679, 0.0
        %v1127 = vsel %vm1091, %v684, 0.0
        %v1128 = vsel %vm1092, %v689, 0.0
        %v1129 = vsel %vm1093, %v694, 0.0
        %v1130 = vsel %vm1094, %v699, 0.0
        %v1131 = vsel %vm1095, %v704, 0.0
        %v1132 = vsel %vm1096, %v709, 0.0
        %v1133 = vsel %vm1097, %v714, 0.0
        %v1134 = vsel %vm1098, %v719, 0.0
        %v1135 = vsel %vm1099, %v724, 0.0
        %v1136 = vsel %vm1100, %v729, 0.0
        %v1137 = vsel %vm1101, %v734, 0.0
        %v1138 = vsel %vm1102, %v739, 0.0
        %v1139 = vsel %vm1103, %v744, 0.0
        %v1140 = vsel %vm1104, %v749, 0.0
        %v1141 = vsel %vm1105, %v754, 0.0
        %v1142 = vsel %vm1106, %v759, 0.0
        %v1143 = vsel %vm1107, %v764, 0.0
        %v1144 = vsel %vm1108, %v769, 0.0
        %v1145 = vsel %vm1109, %v774, 0.0
        %v1146 = vsel %vm1110, %v779, 0.0
        %v1147 = vsel %vm1111, %v784, 0.0
        %v1148 = vsel %vm1112, %v789, 0.0
        %v1149 = vsel %vm1113, %v794, 0.0
        %v1150 = vsel %vm1114, %v799, 0.0
        %v1151 = vsel %vm1115, %v804, 0.0
        %v1152 = vsel %vm1116, %v809, 0.0
        %v1153 = vsel %vm1117, %v814, 0.0
        %v1154 = vsel %vm1118, %v819, 0.0
        %v1155 = vrot.slane %v1119, 7
        %v1156 = vrot.slane %v1120, 7
        %v1157 = vrot.slane %v1121, 7
        %v1158 = vrot.slane %v1122, 7
        %v1159 = vrot.slane %v1123, 7
        %v1160 = vrot.slane %v1124, 7
        %v1161 = vrot.slane %v1125, 7
        %v1162 = vrot.slane %v1126, 7
        %v1163 = vrot.slane %v1127, 7
        %v1164 = vrot.slane %v1128, 7
        %v1165 = vrot.slane %v1129, 7
        %v1166 = vrot.slane %v1130, 7
        %v1167 = vrot.slane %v1131, 7
        %v1168 = vrot.slane %v1132, 7
        %v1169 = vrot.slane %v1133, 7
        %v1170 = vrot.slane %v1134, 7
        %v1171 = vrot.slane %v1135, 7
        %v1172 = vrot.slane %v1136, 7
        %v1173 = vrot.slane %v1137, 7
        %v1174 = vrot.slane %v1138, 7
        %v1175 = vrot.slane %v1139, 7
        %v1176 = vrot.slane %v1140, 7
        %v1177 = vrot.slane %v1141, 7
        %v1178 = vrot.slane %v1142, 7
        %v1179 = vrot.slane %v1143, 7
        %v1180 = vrot.slane %v1144, 7
        %v1181 = vrot.slane %v1145, 7
        %v1182 = vrot.slane %v1146, 7
        %v1183 = vrot.slane %v1147, 7
        %v1184 = vrot.slane %v1148, 7
        %v1185 = vrot.slane %v1149, 7
        %v1186 = vrot.slane %v1150, 7
        %v1187 = vrot.slane %v1151, 7
        %v1188 = vrot.slane %v1152, 7
        %v1189 = vrot.slane %v1153, 7
        %v1190 = vrot.slane %v1154, 7
        %vm1191 = vcmp.lt.s32.totalorder %v823, 1
        %v1192 = vsel %vm1191, %v1189, %v1190
        %v1193 = vsel %vm1191, %v1188, %v1189
        %v1194 = vsel %vm1191, %v1187, %v1188
        %v1195 = vsel %vm1191, %v1186, %v1187
        %v1196 = vsel %vm1191, %v1185, %v1186
        %v1197 = vsel %vm1191, %v1184, %v1185
        %v1198 = vsel %vm1191, %v1183, %v1184
        %v1199 = vsel %vm1191, %v1182, %v1183
        %v1200 = vsel %vm1191, %v1181, %v1182
        %v1201 = vsel %vm1191, %v1180, %v1181
        %v1202 = vsel %vm1191, %v1179, %v1180
        %v1203 = vsel %vm1191, %v1178, %v1179
        %v1204 = vsel %vm1191, %v1177, %v1178
        %v1205 = vsel %vm1191, %v1176, %v1177
        %v1206 = vsel %vm1191, %v1175, %v1176
        %v1207 = vsel %vm1191, %v1174, %v1175
        %v1208 = vsel %vm1191, %v1173, %v1174
        %v1209 = vsel %vm1191, %v1172, %v1173
        %v1210 = vsel %vm1191, %v1171, %v1172
        %v1211 = vsel %vm1191, %v1170, %v1171
        %v1212 = vsel %vm1191, %v1169, %v1170
        %v1213 = vsel %vm1191, %v1168, %v1169
        %v1214 = vsel %vm1191, %v1167, %v1168
        %v1215 = vsel %vm1191, %v1166, %v1167
        %v1216 = vsel %vm1191, %v1165, %v1166
        %v1217 = vsel %vm1191, %v1164, %v1165
        %v1218 = vsel %vm1191, %v1163, %v1164
        %v1219 = vsel %vm1191, %v1162, %v1163
        %v1220 = vsel %vm1191, %v1161, %v1162
        %v1221 = vsel %vm1191, %v1160, %v1161
        %v1222 = vsel %vm1191, %v1159, %v1160
        %v1223 = vsel %vm1191, %v1158, %v1159
        %v1224 = vsel %vm1191, %v1157, %v1158
        %v1225 = vsel %vm1191, %v1156, %v1157
        %v1226 = vsel %vm1191, %v1155, %v1156
        %v1227 = vsel %vm1191, %v1190, %v1155
        %v1228 = vrot.slane %v1119, 1
        %v1229 = vrot.slane %v1120, 1
        %v1230 = vrot.slane %v1121, 1
        %v1231 = vrot.slane %v1122, 1
        %v1232 = vrot.slane %v1123, 1
        %v1233 = vrot.slane %v1124, 1
        %v1234 = vrot.slane %v1125, 1
        %v1235 = vrot.slane %v1126, 1
        %v1236 = vrot.slane %v1127, 1
        %v1237 = vrot.slane %v1128, 1
        %v1238 = vrot.slane %v1129, 1
        %v1239 = vrot.slane %v1130, 1
        %v1240 = vrot.slane %v1131, 1
        %v1241 = vrot.slane %v1132, 1
        %v1242 = vrot.slane %v1133, 1
        %v1243 = vrot.slane %v1134, 1
        %v1244 = vrot.slane %v1135, 1
        %v1245 = vrot.slane %v1136, 1
        %v1246 = vrot.slane %v1137, 1
        %v1247 = vrot.slane %v1138, 1
        %v1248 = vrot.slane %v1139, 1
        %v1249 = vrot.slane %v1140, 1
        %v1250 = vrot.slane %v1141, 1
        %v1251 = vrot.slane %v1142, 1
        %v1252 = vrot.slane %v1143, 1
        %v1253 = vrot.slane %v1144, 1
        %v1254 = vrot.slane %v1145, 1
        %v1255 = vrot.slane %v1146, 1
        %v1256 = vrot.slane %v1147, 1
        %v1257 = vrot.slane %v1148, 1
        %v1258 = vrot.slane %v1149, 1
        %v1259 = vrot.slane %v1150, 1
        %v1260 = vrot.slane %v1151, 1
        %v1261 = vrot.slane %v1152, 1
        %v1262 = vrot.slane %v1153, 1
        %v1263 = vrot.slane %v1154, 1
        %vm1264 = vcmp.lt.s32.totalorder %v823, 7
        %v1265 = vsel %vm1264, %v1262, %v1263
        %v1266 = vsel %vm1264, %v1261, %v1262
        %v1267 = vsel %vm1264, %v1260, %v1261
        %v1268 = vsel %vm1264, %v1259, %v1260
        %v1269 = vsel %vm1264, %v1258, %v1259
        %v1270 = vsel %vm1264, %v1257, %v1258
        %v1271 = vsel %vm1264, %v1256, %v1257
        %v1272 = vsel %vm1264, %v1255, %v1256
        %v1273 = vsel %vm1264, %v1254, %v1255
        %v1274 = vsel %vm1264, %v1253, %v1254
        %v1275 = vsel %vm1264, %v1252, %v1253
        %v1276 = vsel %vm1264, %v1251, %v1252
        %v1277 = vsel %vm1264, %v1250, %v1251
        %v1278 = vsel %vm1264, %v1249, %v1250
        %v1279 = vsel %vm1264, %v1248, %v1249
        %v1280 = vsel %vm1264, %v1247, %v1248
        %v1281 = vsel %vm1264, %v1246, %v1247
        %v1282 = vsel %vm1264, %v1245, %v1246
        %v1283 = vsel %vm1264, %v1244, %v1245
        %v1284 = vsel %vm1264, %v1243, %v1244
        %v1285 = vsel %vm1264, %v1242, %v1243
        %v1286 = vsel %vm1264, %v1241, %v1242
        %v1287 = vsel %vm1264, %v1240, %v1241
        %v1288 = vsel %vm1264, %v1239, %v1240
        %v1289 = vsel %vm1264, %v1238, %v1239
        %v1290 = vsel %vm1264, %v1237, %v1238
        %v1291 = vsel %vm1264, %v1236, %v1237
        %v1292 = vsel %vm1264, %v1235, %v1236
        %v1293 = vsel %vm1264, %v1234, %v1235
        %v1294 = vsel %vm1264, %v1233, %v1234
        %v1295 = vsel %vm1264, %v1232, %v1233
        %v1296 = vsel %vm1264, %v1231, %v1232
        %v1297 = vsel %vm1264, %v1230, %v1231
        %v1298 = vsel %vm1264, %v1229, %v1230
        %v1299 = vsel %vm1264, %v1228, %v1229
        %v1300 = vsel %vm1264, %v1263, %v1228
        %vm1301 = vcmp.gt.s32.totalorder %v823, 0
        %vm1302 = vcmp.gt.s32.totalorder %v824, 0
        %v1303 = vsel %vm1301, 1, 0
        %v1304 = vsel %vm1302, 1, 0
        %vm1305 = vcmp.eq.s32.totalorder %v1303, 1
        %vm1306 = vcmp.eq.s32.totalorder %v1304, 1
        %v1307 = vsel %vm1305, %v1227, 0.0
        %v1308 = vsel %vm1306, %v1226, 0.0
        %v1309 = vsel %vm1305, %v1225, 0.0
        %v1310 = vsel %vm1306, %v1224, 0.0
        %v1311 = vsel %vm1305, %v1223, 0.0
        %v1312 = vsel %vm1306, %v1222, 0.0
        %v1313 = vsel %vm1305, %v1221, 0.0
        %v1314 = vsel %vm1306, %v1220, 0.0
        %v1315 = vsel %vm1305, %v1219, 0.0
        %v1316 = vsel %vm1306, %v1218, 0.0
        %v1317 = vsel %vm1305, %v1217, 0.0
        %v1318 = vsel %vm1306, %v1216, 0.0
        %v1319 = vsel %vm1305, %v1215, 0.0
        %v1320 = vsel %vm1306, %v1214, 0.0
        %v1321 = vsel %vm1305, %v1213, 0.0
        %v1322 = vsel %vm1306, %v1212, 0.0
        %v1323 = vsel %vm1305, %v1211, 0.0
        %v1324 = vsel %vm1306, %v1210, 0.0
        %v1325 = vsel %vm1305, %v1209, 0.0
        %v1326 = vsel %vm1306, %v1208, 0.0
        %v1327 = vsel %vm1305, %v1207, 0.0
        %v1328 = vsel %vm1306, %v1206, 0.0
        %v1329 = vsel %vm1305, %v1205, 0.0
        %v1330 = vsel %vm1306, %v1204, 0.0
        %v1331 = vsel %vm1305, %v1203, 0.0
        %v1332 = vsel %vm1306, %v1202, 0.0
        %v1333 = vsel %vm1305, %v1201, 0.0
        %v1334 = vsel %vm1306, %v1200, 0.0
        %v1335 = vsel %vm1305, %v1199, 0.0
        %v1336 = vsel %vm1306, %v1198, 0.0
        %v1337 = vsel %vm1305, %v1197, 0.0
        %v1338 = vsel %vm1306, %v1196, 0.0
        %v1339 = vsel %vm1305, %v1195, 0.0
        %v1340 = vsel %vm1306, %v1194, 0.0
        %v1341 = vsel %vm1305, %v1193, 0.0
        %v1342 = vsel %vm1306, %v1192, 0.0
        %vm1343 = vcmp.lt.s32.totalorder %v823, 15
        %vm1344 = vcmp.lt.s32.totalorder %v824, 15
        %v1345 = vsel %vm1343, 1, 0
        %v1346 = vsel %vm1344, 1, 0
        %vm1347 = vcmp.eq.s32.totalorder %v1345, 1
        %vm1348 = vcmp.eq.s32.totalorder %v1346, 1
        %v1349 = vsel %vm1347, %v1299, 0.0
        %v1350 = vsel %vm1348, %v1298, 0.0
        %v1351 = vsel %vm1347, %v1297, 0.0
        %v1352 = vsel %vm1348, %v1296, 0.0
        %v1353 = vsel %vm1347, %v1295, 0.0
        %v1354 = vsel %vm1348, %v1294, 0.0
        %v1355 = vsel %vm1347, %v1293, 0.0
        %v1356 = vsel %vm1348, %v1292, 0.0
        %v1357 = vsel %vm1347, %v1291, 0.0
        %v1358 = vsel %vm1348, %v1290, 0.0
        %v1359 = vsel %vm1347, %v1289, 0.0
        %v1360 = vsel %vm1348, %v1288, 0.0
        %v1361 = vsel %vm1347, %v1287, 0.0
        %v1362 = vsel %vm1348, %v1286, 0.0
        %v1363 = vsel %vm1347, %v1285, 0.0
        %v1364 = vsel %vm1348, %v1284, 0.0
        %v1365 = vsel %vm1347, %v1283, 0.0
        %v1366 = vsel %vm1348, %v1282, 0.0
        %v1367 = vsel %vm1347, %v1281, 0.0
        %v1368 = vsel %vm1348, %v1280, 0.0
        %v1369 = vsel %vm1347, %v1279, 0.0
        %v1370 = vsel %vm1348, %v1278, 0.0
        %v1371 = vsel %vm1347, %v1277, 0.0
        %v1372 = vsel %vm1348, %v1276, 0.0
        %v1373 = vsel %vm1347, %v1275, 0.0
        %v1374 = vsel %vm1348, %v1274, 0.0
        %v1375 = vsel %vm1347, %v1273, 0.0
        %v1376 = vsel %vm1348, %v1272, 0.0
        %v1377 = vsel %vm1347, %v1271, 0.0
        %v1378 = vsel %vm1348, %v1270, 0.0
        %v1379 = vsel %vm1347, %v1269, 0.0
        %v1380 = vsel %vm1348, %v1268, 0.0
        %v1381 = vsel %vm1347, %v1267, 0.0
        %v1382 = vsel %vm1348, %v1266, 0.0
        %v1383 = vsel %vm1347, %v1265, 0.0
        %v1384 = vsel %vm1348, %v1300, 0.0
        %v1385 = vld [vmem:[%s5] sm:$0x7]
        %v1386 = vld [vmem:[%s5 + $0x4] sm:$0x7]
        %v1387 = vld [vmem:[%s5 + $0x8] sm:$0x7]
        %v1388 = vld [vmem:[%s6] sm:$0x1]
        %v1389 = vlaneseq
        %v1390 = vshrl.u32 %v1389, 7
        %v1391 = vsub.s32 0, %v1390
        %v1392 = vrot.slane %v1385, %v1391
        %v1393 = vmul.f32 %v1307, %v1392
        %v1394 = vmul.f32 %v1308, %v1392
        %v1395 = vmul.f32 %v1309, %v1392
        %v1396 = vmul.f32 %v1310, %v1392
        %v1397 = vmul.f32 %v1311, %v1392
        %v1398 = vmul.f32 %v1312, %v1392
        %v1399 = vmul.f32 %v1313, %v1392
        %v1400 = vmul.f32 %v1314, %v1392
        %v1401 = vmul.f32 %v1315, %v1392
        %v1402 = vmul.f32 %v1316, %v1392
        %v1403 = vmul.f32 %v1317, %v1392
        %v1404 = vmul.f32 %v1318, %v1392
        %v1405 = vmul.f32 %v1319, %v1392
        %v1406 = vmul.f32 %v1320, %v1392
        %v1407 = vmul.f32 %v1321, %v1392
        %v1408 = vmul.f32 %v1322, %v1392
        %v1409 = vmul.f32 %v1323, %v1392
        %v1410 = vmul.f32 %v1324, %v1392
        %v1411 = vmul.f32 %v1325, %v1392
        %v1412 = vmul.f32 %v1326, %v1392
        %v1413 = vmul.f32 %v1327, %v1392
        %v1414 = vmul.f32 %v1328, %v1392
        %v1415 = vmul.f32 %v1329, %v1392
        %v1416 = vmul.f32 %v1330, %v1392
        %v1417 = vmul.f32 %v1331, %v1392
        %v1418 = vmul.f32 %v1332, %v1392
        %v1419 = vmul.f32 %v1333, %v1392
        %v1420 = vmul.f32 %v1334, %v1392
        %v1421 = vmul.f32 %v1335, %v1392
        %v1422 = vmul.f32 %v1336, %v1392
        %v1423 = vmul.f32 %v1337, %v1392
        %v1424 = vmul.f32 %v1338, %v1392
        %v1425 = vlaneseq
        %v1426 = vshrl.u32 %v1425, 7
        %v1427 = vsub.s32 1, %v1426
        %v1428 = vrot.slane %v1385, %v1427
        %v1429 = vmul.f32 %v1119, %v1428
        %v1430 = vmul.f32 %v1120, %v1428
        %v1431 = vmul.f32 %v1121, %v1428
        %v1432 = vmul.f32 %v1122, %v1428
        %v1433 = vmul.f32 %v1123, %v1428
        %v1434 = vmul.f32 %v1124, %v1428
        %v1435 = vmul.f32 %v1125, %v1428
        %v1436 = vmul.f32 %v1126, %v1428
        %v1437 = vmul.f32 %v1127, %v1428
        %v1438 = vmul.f32 %v1128, %v1428
        %v1439 = vmul.f32 %v1129, %v1428
        %v1440 = vmul.f32 %v1130, %v1428
        %v1441 = vmul.f32 %v1131, %v1428
        %v1442 = vmul.f32 %v1132, %v1428
        %v1443 = vmul.f32 %v1133, %v1428
        %v1444 = vmul.f32 %v1134, %v1428
        %v1445 = vmul.f32 %v1135, %v1428
        %v1446 = vmul.f32 %v1136, %v1428
        %v1447 = vmul.f32 %v1137, %v1428
        %v1448 = vmul.f32 %v1138, %v1428
        %v1449 = vmul.f32 %v1139, %v1428
        %v1450 = vmul.f32 %v1140, %v1428
        %v1451 = vmul.f32 %v1141, %v1428
        %v1452 = vmul.f32 %v1142, %v1428
        %v1453 = vmul.f32 %v1143, %v1428
        %v1454 = vmul.f32 %v1144, %v1428
        %v1455 = vmul.f32 %v1145, %v1428
        %v1456 = vmul.f32 %v1146, %v1428
        %v1457 = vmul.f32 %v1147, %v1428
        %v1458 = vmul.f32 %v1148, %v1428
        %v1459 = vmul.f32 %v1149, %v1428
        %v1460 = vmul.f32 %v1150, %v1428
        %v1461 = vadd.f32 %v1393, %v1429
        %v1462 = vadd.f32 %v1394, %v1430
        %v1463 = vadd.f32 %v1395, %v1431
        %v1464 = vadd.f32 %v1396, %v1432
        %v1465 = vadd.f32 %v1397, %v1433
        %v1466 = vadd.f32 %v1398, %v1434
        %v1467 = vadd.f32 %v1399, %v1435
        %v1468 = vadd.f32 %v1400, %v1436
        %v1469 = vadd.f32 %v1401, %v1437
        %v1470 = vadd.f32 %v1402, %v1438
        %v1471 = vadd.f32 %v1403, %v1439
        %v1472 = vadd.f32 %v1404, %v1440
        %v1473 = vadd.f32 %v1405, %v1441
        %v1474 = vadd.f32 %v1406, %v1442
        %v1475 = vadd.f32 %v1407, %v1443
        %v1476 = vadd.f32 %v1408, %v1444
        %v1477 = vadd.f32 %v1409, %v1445
        %v1478 = vadd.f32 %v1410, %v1446
        %v1479 = vadd.f32 %v1411, %v1447
        %v1480 = vadd.f32 %v1412, %v1448
        %v1481 = vadd.f32 %v1413, %v1449
        %v1482 = vadd.f32 %v1414, %v1450
        %v1483 = vadd.f32 %v1415, %v1451
        %v1484 = vadd.f32 %v1416, %v1452
        %v1485 = vadd.f32 %v1417, %v1453
        %v1486 = vadd.f32 %v1418, %v1454
        %v1487 = vadd.f32 %v1419, %v1455
        %v1488 = vadd.f32 %v1420, %v1456
        %v1489 = vadd.f32 %v1421, %v1457
        %v1490 = vadd.f32 %v1422, %v1458
        %v1491 = vadd.f32 %v1423, %v1459
        %v1492 = vadd.f32 %v1424, %v1460
        %v1493 = vlaneseq
        %v1494 = vshrl.u32 %v1493, 7
        %v1495 = vsub.s32 2, %v1494
        %v1496 = vrot.slane %v1385, %v1495
        %v1497 = vmul.f32 %v1349, %v1496
        %v1498 = vmul.f32 %v1350, %v1496
        %v1499 = vmul.f32 %v1351, %v1496
        %v1500 = vmul.f32 %v1352, %v1496
        %v1501 = vmul.f32 %v1353, %v1496
        %v1502 = vmul.f32 %v1354, %v1496
        %v1503 = vmul.f32 %v1355, %v1496
        %v1504 = vmul.f32 %v1356, %v1496
        %v1505 = vmul.f32 %v1357, %v1496
        %v1506 = vmul.f32 %v1358, %v1496
        %v1507 = vmul.f32 %v1359, %v1496
        %v1508 = vmul.f32 %v1360, %v1496
        %v1509 = vmul.f32 %v1361, %v1496
        %v1510 = vmul.f32 %v1362, %v1496
        %v1511 = vmul.f32 %v1363, %v1496
        %v1512 = vmul.f32 %v1364, %v1496
        %v1513 = vmul.f32 %v1365, %v1496
        %v1514 = vmul.f32 %v1366, %v1496
        %v1515 = vmul.f32 %v1367, %v1496
        %v1516 = vmul.f32 %v1368, %v1496
        %v1517 = vmul.f32 %v1369, %v1496
        %v1518 = vmul.f32 %v1370, %v1496
        %v1519 = vmul.f32 %v1371, %v1496
        %v1520 = vmul.f32 %v1372, %v1496
        %v1521 = vmul.f32 %v1373, %v1496
        %v1522 = vmul.f32 %v1374, %v1496
        %v1523 = vmul.f32 %v1375, %v1496
        %v1524 = vmul.f32 %v1376, %v1496
        %v1525 = vmul.f32 %v1377, %v1496
        %v1526 = vmul.f32 %v1378, %v1496
        %v1527 = vmul.f32 %v1379, %v1496
        %v1528 = vmul.f32 %v1380, %v1496
        %v1529 = vadd.f32 %v1461, %v1497
        %v1530 = vadd.f32 %v1462, %v1498
        %v1531 = vadd.f32 %v1463, %v1499
        %v1532 = vadd.f32 %v1464, %v1500
        %v1533 = vadd.f32 %v1465, %v1501
        %v1534 = vadd.f32 %v1466, %v1502
        %v1535 = vadd.f32 %v1467, %v1503
        %v1536 = vadd.f32 %v1468, %v1504
        %v1537 = vadd.f32 %v1469, %v1505
        %v1538 = vadd.f32 %v1470, %v1506
        %v1539 = vadd.f32 %v1471, %v1507
        %v1540 = vadd.f32 %v1472, %v1508
        %v1541 = vadd.f32 %v1473, %v1509
        %v1542 = vadd.f32 %v1474, %v1510
        %v1543 = vadd.f32 %v1475, %v1511
        %v1544 = vadd.f32 %v1476, %v1512
        %v1545 = vadd.f32 %v1477, %v1513
        %v1546 = vadd.f32 %v1478, %v1514
        %v1547 = vadd.f32 %v1479, %v1515
        %v1548 = vadd.f32 %v1480, %v1516
        %v1549 = vadd.f32 %v1481, %v1517
        %v1550 = vadd.f32 %v1482, %v1518
        %v1551 = vadd.f32 %v1483, %v1519
        %v1552 = vadd.f32 %v1484, %v1520
        %v1553 = vadd.f32 %v1485, %v1521
        %v1554 = vadd.f32 %v1486, %v1522
        %v1555 = vadd.f32 %v1487, %v1523
        %v1556 = vadd.f32 %v1488, %v1524
        %v1557 = vadd.f32 %v1489, %v1525
        %v1558 = vadd.f32 %v1490, %v1526
        %v1559 = vadd.f32 %v1491, %v1527
        %v1560 = vadd.f32 %v1492, %v1528
        %v1561 = vlaneseq
        %v1562 = vshrl.u32 %v1561, 7
        %v1563 = vsub.s32 0, %v1562
        %v1564 = vrot.slane %v1386, %v1563
        %v1565 = vmul.f32 %v1309, %v1564
        %v1566 = vmul.f32 %v1310, %v1564
        %v1567 = vmul.f32 %v1311, %v1564
        %v1568 = vmul.f32 %v1312, %v1564
        %v1569 = vmul.f32 %v1313, %v1564
        %v1570 = vmul.f32 %v1314, %v1564
        %v1571 = vmul.f32 %v1315, %v1564
        %v1572 = vmul.f32 %v1316, %v1564
        %v1573 = vmul.f32 %v1317, %v1564
        %v1574 = vmul.f32 %v1318, %v1564
        %v1575 = vmul.f32 %v1319, %v1564
        %v1576 = vmul.f32 %v1320, %v1564
        %v1577 = vmul.f32 %v1321, %v1564
        %v1578 = vmul.f32 %v1322, %v1564
        %v1579 = vmul.f32 %v1323, %v1564
        %v1580 = vmul.f32 %v1324, %v1564
        %v1581 = vmul.f32 %v1325, %v1564
        %v1582 = vmul.f32 %v1326, %v1564
        %v1583 = vmul.f32 %v1327, %v1564
        %v1584 = vmul.f32 %v1328, %v1564
        %v1585 = vmul.f32 %v1329, %v1564
        %v1586 = vmul.f32 %v1330, %v1564
        %v1587 = vmul.f32 %v1331, %v1564
        %v1588 = vmul.f32 %v1332, %v1564
        %v1589 = vmul.f32 %v1333, %v1564
        %v1590 = vmul.f32 %v1334, %v1564
        %v1591 = vmul.f32 %v1335, %v1564
        %v1592 = vmul.f32 %v1336, %v1564
        %v1593 = vmul.f32 %v1337, %v1564
        %v1594 = vmul.f32 %v1338, %v1564
        %v1595 = vmul.f32 %v1339, %v1564
        %v1596 = vmul.f32 %v1340, %v1564
        %v1597 = vlaneseq
        %v1598 = vshrl.u32 %v1597, 7
        %v1599 = vsub.s32 1, %v1598
        %v1600 = vrot.slane %v1386, %v1599
        %v1601 = vmul.f32 %v1121, %v1600
        %v1602 = vmul.f32 %v1122, %v1600
        %v1603 = vmul.f32 %v1123, %v1600
        %v1604 = vmul.f32 %v1124, %v1600
        %v1605 = vmul.f32 %v1125, %v1600
        %v1606 = vmul.f32 %v1126, %v1600
        %v1607 = vmul.f32 %v1127, %v1600
        %v1608 = vmul.f32 %v1128, %v1600
        %v1609 = vmul.f32 %v1129, %v1600
        %v1610 = vmul.f32 %v1130, %v1600
        %v1611 = vmul.f32 %v1131, %v1600
        %v1612 = vmul.f32 %v1132, %v1600
        %v1613 = vmul.f32 %v1133, %v1600
        %v1614 = vmul.f32 %v1134, %v1600
        %v1615 = vmul.f32 %v1135, %v1600
        %v1616 = vmul.f32 %v1136, %v1600
        %v1617 = vmul.f32 %v1137, %v1600
        %v1618 = vmul.f32 %v1138, %v1600
        %v1619 = vmul.f32 %v1139, %v1600
        %v1620 = vmul.f32 %v1140, %v1600
        %v1621 = vmul.f32 %v1141, %v1600
        %v1622 = vmul.f32 %v1142, %v1600
        %v1623 = vmul.f32 %v1143, %v1600
        %v1624 = vmul.f32 %v1144, %v1600
        %v1625 = vmul.f32 %v1145, %v1600
        %v1626 = vmul.f32 %v1146, %v1600
        %v1627 = vmul.f32 %v1147, %v1600
        %v1628 = vmul.f32 %v1148, %v1600
        %v1629 = vmul.f32 %v1149, %v1600
        %v1630 = vmul.f32 %v1150, %v1600
        %v1631 = vmul.f32 %v1151, %v1600
        %v1632 = vmul.f32 %v1152, %v1600
        %v1633 = vadd.f32 %v1565, %v1601
        %v1634 = vadd.f32 %v1566, %v1602
        %v1635 = vadd.f32 %v1567, %v1603
        %v1636 = vadd.f32 %v1568, %v1604
        %v1637 = vadd.f32 %v1569, %v1605
        %v1638 = vadd.f32 %v1570, %v1606
        %v1639 = vadd.f32 %v1571, %v1607
        %v1640 = vadd.f32 %v1572, %v1608
        %v1641 = vadd.f32 %v1573, %v1609
        %v1642 = vadd.f32 %v1574, %v1610
        %v1643 = vadd.f32 %v1575, %v1611
        %v1644 = vadd.f32 %v1576, %v1612
        %v1645 = vadd.f32 %v1577, %v1613
        %v1646 = vadd.f32 %v1578, %v1614
        %v1647 = vadd.f32 %v1579, %v1615
        %v1648 = vadd.f32 %v1580, %v1616
        %v1649 = vadd.f32 %v1581, %v1617
        %v1650 = vadd.f32 %v1582, %v1618
        %v1651 = vadd.f32 %v1583, %v1619
        %v1652 = vadd.f32 %v1584, %v1620
        %v1653 = vadd.f32 %v1585, %v1621
        %v1654 = vadd.f32 %v1586, %v1622
        %v1655 = vadd.f32 %v1587, %v1623
        %v1656 = vadd.f32 %v1588, %v1624
        %v1657 = vadd.f32 %v1589, %v1625
        %v1658 = vadd.f32 %v1590, %v1626
        %v1659 = vadd.f32 %v1591, %v1627
        %v1660 = vadd.f32 %v1592, %v1628
        %v1661 = vadd.f32 %v1593, %v1629
        %v1662 = vadd.f32 %v1594, %v1630
        %v1663 = vadd.f32 %v1595, %v1631
        %v1664 = vadd.f32 %v1596, %v1632
        %v1665 = vlaneseq
        %v1666 = vshrl.u32 %v1665, 7
        %v1667 = vsub.s32 2, %v1666
        %v1668 = vrot.slane %v1386, %v1667
        %v1669 = vmul.f32 %v1351, %v1668
        %v1670 = vmul.f32 %v1352, %v1668
        %v1671 = vmul.f32 %v1353, %v1668
        %v1672 = vmul.f32 %v1354, %v1668
        %v1673 = vmul.f32 %v1355, %v1668
        %v1674 = vmul.f32 %v1356, %v1668
        %v1675 = vmul.f32 %v1357, %v1668
        %v1676 = vmul.f32 %v1358, %v1668
        %v1677 = vmul.f32 %v1359, %v1668
        %v1678 = vmul.f32 %v1360, %v1668
        %v1679 = vmul.f32 %v1361, %v1668
        %v1680 = vmul.f32 %v1362, %v1668
        %v1681 = vmul.f32 %v1363, %v1668
        %v1682 = vmul.f32 %v1364, %v1668
        %v1683 = vmul.f32 %v1365, %v1668
        %v1684 = vmul.f32 %v1366, %v1668
        %v1685 = vmul.f32 %v1367, %v1668
        %v1686 = vmul.f32 %v1368, %v1668
        %v1687 = vmul.f32 %v1369, %v1668
        %v1688 = vmul.f32 %v1370, %v1668
        %v1689 = vmul.f32 %v1371, %v1668
        %v1690 = vmul.f32 %v1372, %v1668
        %v1691 = vmul.f32 %v1373, %v1668
        %v1692 = vmul.f32 %v1374, %v1668
        %v1693 = vmul.f32 %v1375, %v1668
        %v1694 = vmul.f32 %v1376, %v1668
        %v1695 = vmul.f32 %v1377, %v1668
        %v1696 = vmul.f32 %v1378, %v1668
        %v1697 = vmul.f32 %v1379, %v1668
        %v1698 = vmul.f32 %v1380, %v1668
        %v1699 = vmul.f32 %v1381, %v1668
        %v1700 = vmul.f32 %v1382, %v1668
        %v1701 = vadd.f32 %v1633, %v1669
        %v1702 = vadd.f32 %v1634, %v1670
        %v1703 = vadd.f32 %v1635, %v1671
        %v1704 = vadd.f32 %v1636, %v1672
        %v1705 = vadd.f32 %v1637, %v1673
        %v1706 = vadd.f32 %v1638, %v1674
        %v1707 = vadd.f32 %v1639, %v1675
        %v1708 = vadd.f32 %v1640, %v1676
        %v1709 = vadd.f32 %v1641, %v1677
        %v1710 = vadd.f32 %v1642, %v1678
        %v1711 = vadd.f32 %v1643, %v1679
        %v1712 = vadd.f32 %v1644, %v1680
        %v1713 = vadd.f32 %v1645, %v1681
        %v1714 = vadd.f32 %v1646, %v1682
        %v1715 = vadd.f32 %v1647, %v1683
        %v1716 = vadd.f32 %v1648, %v1684
        %v1717 = vadd.f32 %v1649, %v1685
        %v1718 = vadd.f32 %v1650, %v1686
        %v1719 = vadd.f32 %v1651, %v1687
        %v1720 = vadd.f32 %v1652, %v1688
        %v1721 = vadd.f32 %v1653, %v1689
        %v1722 = vadd.f32 %v1654, %v1690
        %v1723 = vadd.f32 %v1655, %v1691
        %v1724 = vadd.f32 %v1656, %v1692
        %v1725 = vadd.f32 %v1657, %v1693
        %v1726 = vadd.f32 %v1658, %v1694
        %v1727 = vadd.f32 %v1659, %v1695
        %v1728 = vadd.f32 %v1660, %v1696
        %v1729 = vadd.f32 %v1661, %v1697
        %v1730 = vadd.f32 %v1662, %v1698
        %v1731 = vadd.f32 %v1663, %v1699
        %v1732 = vadd.f32 %v1664, %v1700
        %v1733 = vlaneseq
        %v1734 = vshrl.u32 %v1733, 7
        %v1735 = vsub.s32 0, %v1734
        %v1736 = vrot.slane %v1387, %v1735
        %v1737 = vmul.f32 %v1311, %v1736
        %v1738 = vmul.f32 %v1312, %v1736
        %v1739 = vmul.f32 %v1313, %v1736
        %v1740 = vmul.f32 %v1314, %v1736
        %v1741 = vmul.f32 %v1315, %v1736
        %v1742 = vmul.f32 %v1316, %v1736
        %v1743 = vmul.f32 %v1317, %v1736
        %v1744 = vmul.f32 %v1318, %v1736
        %v1745 = vmul.f32 %v1319, %v1736
        %v1746 = vmul.f32 %v1320, %v1736
        %v1747 = vmul.f32 %v1321, %v1736
        %v1748 = vmul.f32 %v1322, %v1736
        %v1749 = vmul.f32 %v1323, %v1736
        %v1750 = vmul.f32 %v1324, %v1736
        %v1751 = vmul.f32 %v1325, %v1736
        %v1752 = vmul.f32 %v1326, %v1736
        %v1753 = vmul.f32 %v1327, %v1736
        %v1754 = vmul.f32 %v1328, %v1736
        %v1755 = vmul.f32 %v1329, %v1736
        %v1756 = vmul.f32 %v1330, %v1736
        %v1757 = vmul.f32 %v1331, %v1736
        %v1758 = vmul.f32 %v1332, %v1736
        %v1759 = vmul.f32 %v1333, %v1736
        %v1760 = vmul.f32 %v1334, %v1736
        %v1761 = vmul.f32 %v1335, %v1736
        %v1762 = vmul.f32 %v1336, %v1736
        %v1763 = vmul.f32 %v1337, %v1736
        %v1764 = vmul.f32 %v1338, %v1736
        %v1765 = vmul.f32 %v1339, %v1736
        %v1766 = vmul.f32 %v1340, %v1736
        %v1767 = vmul.f32 %v1341, %v1736
        %v1768 = vmul.f32 %v1342, %v1736
        %v1769 = vlaneseq
        %v1770 = vshrl.u32 %v1769, 7
        %v1771 = vsub.s32 1, %v1770
        %v1772 = vrot.slane %v1387, %v1771
        %v1773 = vmul.f32 %v1123, %v1772
        %v1774 = vmul.f32 %v1124, %v1772
        %v1775 = vmul.f32 %v1125, %v1772
        %v1776 = vmul.f32 %v1126, %v1772
        %v1777 = vmul.f32 %v1127, %v1772
        %v1778 = vmul.f32 %v1128, %v1772
        %v1779 = vmul.f32 %v1129, %v1772
        %v1780 = vmul.f32 %v1130, %v1772
        %v1781 = vmul.f32 %v1131, %v1772
        %v1782 = vmul.f32 %v1132, %v1772
        %v1783 = vmul.f32 %v1133, %v1772
        %v1784 = vmul.f32 %v1134, %v1772
        %v1785 = vmul.f32 %v1135, %v1772
        %v1786 = vmul.f32 %v1136, %v1772
        %v1787 = vmul.f32 %v1137, %v1772
        %v1788 = vmul.f32 %v1138, %v1772
        %v1789 = vmul.f32 %v1139, %v1772
        %v1790 = vmul.f32 %v1140, %v1772
        %v1791 = vmul.f32 %v1141, %v1772
        %v1792 = vmul.f32 %v1142, %v1772
        %v1793 = vmul.f32 %v1143, %v1772
        %v1794 = vmul.f32 %v1144, %v1772
        %v1795 = vmul.f32 %v1145, %v1772
        %v1796 = vmul.f32 %v1146, %v1772
        %v1797 = vmul.f32 %v1147, %v1772
        %v1798 = vmul.f32 %v1148, %v1772
        %v1799 = vmul.f32 %v1149, %v1772
        %v1800 = vmul.f32 %v1150, %v1772
        %v1801 = vmul.f32 %v1151, %v1772
        %v1802 = vmul.f32 %v1152, %v1772
        %v1803 = vmul.f32 %v1153, %v1772
        %v1804 = vmul.f32 %v1154, %v1772
        %v1805 = vadd.f32 %v1737, %v1773
        %v1806 = vadd.f32 %v1738, %v1774
        %v1807 = vadd.f32 %v1739, %v1775
        %v1808 = vadd.f32 %v1740, %v1776
        %v1809 = vadd.f32 %v1741, %v1777
        %v1810 = vadd.f32 %v1742, %v1778
        %v1811 = vadd.f32 %v1743, %v1779
        %v1812 = vadd.f32 %v1744, %v1780
        %v1813 = vadd.f32 %v1745, %v1781
        %v1814 = vadd.f32 %v1746, %v1782
        %v1815 = vadd.f32 %v1747, %v1783
        %v1816 = vadd.f32 %v1748, %v1784
        %v1817 = vadd.f32 %v1749, %v1785
        %v1818 = vadd.f32 %v1750, %v1786
        %v1819 = vadd.f32 %v1751, %v1787
        %v1820 = vadd.f32 %v1752, %v1788
        %v1821 = vadd.f32 %v1753, %v1789
        %v1822 = vadd.f32 %v1754, %v1790
        %v1823 = vadd.f32 %v1755, %v1791
        %v1824 = vadd.f32 %v1756, %v1792
        %v1825 = vadd.f32 %v1757, %v1793
        %v1826 = vadd.f32 %v1758, %v1794
        %v1827 = vadd.f32 %v1759, %v1795
        %v1828 = vadd.f32 %v1760, %v1796
        %v1829 = vadd.f32 %v1761, %v1797
        %v1830 = vadd.f32 %v1762, %v1798
        %v1831 = vadd.f32 %v1763, %v1799
        %v1832 = vadd.f32 %v1764, %v1800
        %v1833 = vadd.f32 %v1765, %v1801
        %v1834 = vadd.f32 %v1766, %v1802
        %v1835 = vadd.f32 %v1767, %v1803
        %v1836 = vadd.f32 %v1768, %v1804
        %v1837 = vlaneseq
        %v1838 = vshrl.u32 %v1837, 7
        %v1839 = vsub.s32 2, %v1838
        %v1840 = vrot.slane %v1387, %v1839
        %v1841 = vmul.f32 %v1353, %v1840
        %v1842 = vmul.f32 %v1354, %v1840
        %v1843 = vmul.f32 %v1355, %v1840
        %v1844 = vmul.f32 %v1356, %v1840
        %v1845 = vmul.f32 %v1357, %v1840
        %v1846 = vmul.f32 %v1358, %v1840
        %v1847 = vmul.f32 %v1359, %v1840
        %v1848 = vmul.f32 %v1360, %v1840
        %v1849 = vmul.f32 %v1361, %v1840
        %v1850 = vmul.f32 %v1362, %v1840
        %v1851 = vmul.f32 %v1363, %v1840
        %v1852 = vmul.f32 %v1364, %v1840
        %v1853 = vmul.f32 %v1365, %v1840
        %v1854 = vmul.f32 %v1366, %v1840
        %v1855 = vmul.f32 %v1367, %v1840
        %v1856 = vmul.f32 %v1368, %v1840
        %v1857 = vmul.f32 %v1369, %v1840
        %v1858 = vmul.f32 %v1370, %v1840
        %v1859 = vmul.f32 %v1371, %v1840
        %v1860 = vmul.f32 %v1372, %v1840
        %v1861 = vmul.f32 %v1373, %v1840
        %v1862 = vmul.f32 %v1374, %v1840
        %v1863 = vmul.f32 %v1375, %v1840
        %v1864 = vmul.f32 %v1376, %v1840
        %v1865 = vmul.f32 %v1377, %v1840
        %v1866 = vmul.f32 %v1378, %v1840
        %v1867 = vmul.f32 %v1379, %v1840
        %v1868 = vmul.f32 %v1380, %v1840
        %v1869 = vmul.f32 %v1381, %v1840
        %v1870 = vmul.f32 %v1382, %v1840
        %v1871 = vmul.f32 %v1383, %v1840
        %v1872 = vmul.f32 %v1384, %v1840
        %v1873 = vadd.f32 %v1805, %v1841
        %v1874 = vadd.f32 %v1806, %v1842
        %v1875 = vadd.f32 %v1807, %v1843
        %v1876 = vadd.f32 %v1808, %v1844
        %v1877 = vadd.f32 %v1809, %v1845
        %v1878 = vadd.f32 %v1810, %v1846
        %v1879 = vadd.f32 %v1811, %v1847
        %v1880 = vadd.f32 %v1812, %v1848
        %v1881 = vadd.f32 %v1813, %v1849
        %v1882 = vadd.f32 %v1814, %v1850
        %v1883 = vadd.f32 %v1815, %v1851
        %v1884 = vadd.f32 %v1816, %v1852
        %v1885 = vadd.f32 %v1817, %v1853
        %v1886 = vadd.f32 %v1818, %v1854
        %v1887 = vadd.f32 %v1819, %v1855
        %v1888 = vadd.f32 %v1820, %v1856
        %v1889 = vadd.f32 %v1821, %v1857
        %v1890 = vadd.f32 %v1822, %v1858
        %v1891 = vadd.f32 %v1823, %v1859
        %v1892 = vadd.f32 %v1824, %v1860
        %v1893 = vadd.f32 %v1825, %v1861
        %v1894 = vadd.f32 %v1826, %v1862
        %v1895 = vadd.f32 %v1827, %v1863
        %v1896 = vadd.f32 %v1828, %v1864
        %v1897 = vadd.f32 %v1829, %v1865
        %v1898 = vadd.f32 %v1830, %v1866
        %v1899 = vadd.f32 %v1831, %v1867
        %v1900 = vadd.f32 %v1832, %v1868
        %v1901 = vadd.f32 %v1833, %v1869
        %v1902 = vadd.f32 %v1834, %v1870
        %v1903 = vadd.f32 %v1835, %v1871
        %v1904 = vadd.f32 %v1836, %v1872
        %v1905 = vadd.f32 %v1529, %v1701
        %v1906 = vadd.f32 %v1530, %v1702
        %v1907 = vadd.f32 %v1531, %v1703
        %v1908 = vadd.f32 %v1532, %v1704
        %v1909 = vadd.f32 %v1533, %v1705
        %v1910 = vadd.f32 %v1534, %v1706
        %v1911 = vadd.f32 %v1535, %v1707
        %v1912 = vadd.f32 %v1536, %v1708
        %v1913 = vadd.f32 %v1537, %v1709
        %v1914 = vadd.f32 %v1538, %v1710
        %v1915 = vadd.f32 %v1539, %v1711
        %v1916 = vadd.f32 %v1540, %v1712
        %v1917 = vadd.f32 %v1541, %v1713
        %v1918 = vadd.f32 %v1542, %v1714
        %v1919 = vadd.f32 %v1543, %v1715
        %v1920 = vadd.f32 %v1544, %v1716
        %v1921 = vadd.f32 %v1545, %v1717
        %v1922 = vadd.f32 %v1546, %v1718
        %v1923 = vadd.f32 %v1547, %v1719
        %v1924 = vadd.f32 %v1548, %v1720
        %v1925 = vadd.f32 %v1549, %v1721
        %v1926 = vadd.f32 %v1550, %v1722
        %v1927 = vadd.f32 %v1551, %v1723
        %v1928 = vadd.f32 %v1552, %v1724
        %v1929 = vadd.f32 %v1553, %v1725
        %v1930 = vadd.f32 %v1554, %v1726
        %v1931 = vadd.f32 %v1555, %v1727
        %v1932 = vadd.f32 %v1556, %v1728
        %v1933 = vadd.f32 %v1557, %v1729
        %v1934 = vadd.f32 %v1558, %v1730
        %v1935 = vadd.f32 %v1559, %v1731
        %v1936 = vadd.f32 %v1560, %v1732
        %v1938 = vlaneseq
        %v1939 = vshrl.u32 %v1938, 7
        %v1940 = vsub.s32 0, %v1939
        %v1941 = vrot.slane %v1388, %v1940
        %v1943 = vadd.f32 %v1873, %v1941
        %v1944 = vadd.f32 %v1874, %v1941
        %v1945 = vadd.f32 %v1875, %v1941
        %v1946 = vadd.f32 %v1876, %v1941
        %v1947 = vadd.f32 %v1877, %v1941
        %v1948 = vadd.f32 %v1878, %v1941
        %v1949 = vadd.f32 %v1879, %v1941
        %v1950 = vadd.f32 %v1880, %v1941
        %v1951 = vadd.f32 %v1881, %v1941
        %v1952 = vadd.f32 %v1882, %v1941
        %v1953 = vadd.f32 %v1883, %v1941
        %v1954 = vadd.f32 %v1884, %v1941
        %v1955 = vadd.f32 %v1885, %v1941
        %v1956 = vadd.f32 %v1886, %v1941
        %v1957 = vadd.f32 %v1887, %v1941
        %v1958 = vadd.f32 %v1888, %v1941
        %v1959 = vadd.f32 %v1889, %v1941
        %v1960 = vadd.f32 %v1890, %v1941
        %v1961 = vadd.f32 %v1891, %v1941
        %v1962 = vadd.f32 %v1892, %v1941
        %v1963 = vadd.f32 %v1893, %v1941
        %v1964 = vadd.f32 %v1894, %v1941
        %v1965 = vadd.f32 %v1895, %v1941
        %v1966 = vadd.f32 %v1896, %v1941
        %v1967 = vadd.f32 %v1897, %v1941
        %v1968 = vadd.f32 %v1898, %v1941
        %v1969 = vadd.f32 %v1899, %v1941
        %v1970 = vadd.f32 %v1900, %v1941
        %v1971 = vadd.f32 %v1901, %v1941
        %v1972 = vadd.f32 %v1902, %v1941
        %v1973 = vadd.f32 %v1903, %v1941
        %v1974 = vadd.f32 %v1904, %v1941
        %v1975 = vadd.f32 %v1905, %v1943
        %v1976 = vadd.f32 %v1906, %v1944
        %v1977 = vadd.f32 %v1907, %v1945
        %v1978 = vadd.f32 %v1908, %v1946
        %v1979 = vadd.f32 %v1909, %v1947
        %v1980 = vadd.f32 %v1910, %v1948
        %v1981 = vadd.f32 %v1911, %v1949
        %v1982 = vadd.f32 %v1912, %v1950
        %v1983 = vadd.f32 %v1913, %v1951
        %v1984 = vadd.f32 %v1914, %v1952
        %v1985 = vadd.f32 %v1915, %v1953
        %v1986 = vadd.f32 %v1916, %v1954
        %v1987 = vadd.f32 %v1917, %v1955
        %v1988 = vadd.f32 %v1918, %v1956
        %v1989 = vadd.f32 %v1919, %v1957
        %v1990 = vadd.f32 %v1920, %v1958
        %v1991 = vadd.f32 %v1921, %v1959
        %v1992 = vadd.f32 %v1922, %v1960
        %v1993 = vadd.f32 %v1923, %v1961
        %v1994 = vadd.f32 %v1924, %v1962
        %v1995 = vadd.f32 %v1925, %v1963
        %v1996 = vadd.f32 %v1926, %v1964
        %v1997 = vadd.f32 %v1927, %v1965
        %v1998 = vadd.f32 %v1928, %v1966
        %v1999 = vadd.f32 %v1929, %v1967
        %v2000 = vadd.f32 %v1930, %v1968
        %v2001 = vadd.f32 %v1931, %v1969
        %v2002 = vadd.f32 %v1932, %v1970
        %v2003 = vadd.f32 %v1933, %v1971
        %v2004 = vadd.f32 %v1934, %v1972
        %v2005 = vadd.f32 %v1935, %v1973
        %v2006 = vadd.f32 %v1936, %v1974
        %v2007 = vmul.f32 %v1975, 0.5
        %v2008 = vmul.f32 %v1976, 0.5
        %v2009 = vmul.f32 %v1977, 0.5
        %v2010 = vmul.f32 %v1978, 0.5
        %v2011 = vmul.f32 %v1979, 0.5
        %v2012 = vmul.f32 %v1980, 0.5
        %v2013 = vmul.f32 %v1981, 0.5
        %v2014 = vmul.f32 %v1982, 0.5
        %v2015 = vmul.f32 %v1983, 0.5
        %v2016 = vmul.f32 %v1984, 0.5
        %v2017 = vmul.f32 %v1985, 0.5
        %v2018 = vmul.f32 %v1986, 0.5
        %v2019 = vmul.f32 %v1987, 0.5
        %v2020 = vmul.f32 %v1988, 0.5
        %v2021 = vmul.f32 %v1989, 0.5
        %v2022 = vmul.f32 %v1990, 0.5
        %v2023 = vmul.f32 %v1991, 0.5
        %v2024 = vmul.f32 %v1992, 0.5
        %v2025 = vmul.f32 %v1993, 0.5
        %v2026 = vmul.f32 %v1994, 0.5
        %v2027 = vmul.f32 %v1995, 0.5
        %v2028 = vmul.f32 %v1996, 0.5
        %v2029 = vmul.f32 %v1997, 0.5
        %v2030 = vmul.f32 %v1998, 0.5
        %v2031 = vmul.f32 %v1999, 0.5
        %v2032 = vmul.f32 %v2000, 0.5
        %v2033 = vmul.f32 %v2001, 0.5
        %v2034 = vmul.f32 %v2002, 0.5
        %v2035 = vmul.f32 %v2003, 0.5
        %v2036 = vmul.f32 %v2004, 0.5
        %v2037 = vmul.f32 %v2005, 0.5
        %v2038 = vmul.f32 %v2006, 0.5
        %v2039 = vmul.f32 %v1975, 0.70710677
        %v2040 = vmul.f32 %v1976, 0.70710677
        %v2041 = vmul.f32 %v1977, 0.70710677
        %v2042 = vmul.f32 %v1978, 0.70710677
        %v2043 = vmul.f32 %v1979, 0.70710677
        %v2044 = vmul.f32 %v1980, 0.70710677
        %v2045 = vmul.f32 %v1981, 0.70710677
        %v2046 = vmul.f32 %v1982, 0.70710677
        %v2047 = vmul.f32 %v1983, 0.70710677
        %v2048 = vmul.f32 %v1984, 0.70710677
        %v2049 = vmul.f32 %v1985, 0.70710677
        %v2050 = vmul.f32 %v1986, 0.70710677
        %v2051 = vmul.f32 %v1987, 0.70710677
        %v2052 = vmul.f32 %v1988, 0.70710677
        %v2053 = vmul.f32 %v1989, 0.70710677
        %v2054 = vmul.f32 %v1990, 0.70710677
        %v2055 = vmul.f32 %v1991, 0.70710677
        %v2056 = vmul.f32 %v1992, 0.70710677
        %v2057 = vmul.f32 %v1993, 0.70710677
        %v2058 = vmul.f32 %v1994, 0.70710677
        %v2059 = vmul.f32 %v1995, 0.70710677
        %v2060 = vmul.f32 %v1996, 0.70710677
        %v2061 = vmul.f32 %v1997, 0.70710677
        %v2062 = vmul.f32 %v1998, 0.70710677
        %v2063 = vmul.f32 %v1999, 0.70710677
        %v2064 = vmul.f32 %v2000, 0.70710677
        %v2065 = vmul.f32 %v2001, 0.70710677
        %v2066 = vmul.f32 %v2002, 0.70710677
        %v2067 = vmul.f32 %v2003, 0.70710677
        %v2068 = vmul.f32 %v2004, 0.70710677
        %v2069 = vmul.f32 %v2005, 0.70710677
        %v2070 = vmul.f32 %v2006, 0.70710677
        %v2071 = verf.f32.pop %v2039
        %v2072 = verf.f32.pop %v2040
        %v2073 = verf.f32.pop %v2041
        %v2074 = verf.f32.pop %v2042
        %v2075 = verf.f32.pop %v2043
        %v2076 = verf.f32.pop %v2044
        %v2077 = verf.f32.pop %v2045
        %v2078 = verf.f32.pop %v2046
        %v2079 = verf.f32.pop %v2047
        %v2080 = verf.f32.pop %v2048
        %v2081 = verf.f32.pop %v2049
        %v2082 = verf.f32.pop %v2050
        %v2083 = verf.f32.pop %v2051
        %v2084 = verf.f32.pop %v2052
        %v2085 = verf.f32.pop %v2053
        %v2086 = verf.f32.pop %v2054
        %v2087 = verf.f32.pop %v2055
        %v2088 = verf.f32.pop %v2056
        %v2089 = verf.f32.pop %v2057
        %v2090 = verf.f32.pop %v2058
        %v2091 = verf.f32.pop %v2059
        %v2092 = verf.f32.pop %v2060
        %v2093 = verf.f32.pop %v2061
        %v2094 = verf.f32.pop %v2062
        %v2095 = verf.f32.pop %v2063
        %v2096 = verf.f32.pop %v2064
        %v2097 = verf.f32.pop %v2065
        %v2098 = verf.f32.pop %v2066
        %v2099 = verf.f32.pop %v2067
        %v2100 = verf.f32.pop %v2068
        %v2101 = verf.f32.pop %v2069
        %v2102 = verf.f32.pop %v2070
        %v2103 = vadd.f32 %v2071, 1.0
        %v2104 = vadd.f32 %v2072, 1.0
        %v2105 = vadd.f32 %v2073, 1.0
        %v2106 = vadd.f32 %v2074, 1.0
        %v2107 = vadd.f32 %v2075, 1.0
        %v2108 = vadd.f32 %v2076, 1.0
        %v2109 = vadd.f32 %v2077, 1.0
        %v2110 = vadd.f32 %v2078, 1.0
        %v2111 = vadd.f32 %v2079, 1.0
        %v2112 = vadd.f32 %v2080, 1.0
        %v2113 = vadd.f32 %v2081, 1.0
        %v2114 = vadd.f32 %v2082, 1.0
        %v2115 = vadd.f32 %v2083, 1.0
        %v2116 = vadd.f32 %v2084, 1.0
        %v2117 = vadd.f32 %v2085, 1.0
        %v2118 = vadd.f32 %v2086, 1.0
        %v2119 = vadd.f32 %v2087, 1.0
        %v2120 = vadd.f32 %v2088, 1.0
        %v2121 = vadd.f32 %v2089, 1.0
        %v2122 = vadd.f32 %v2090, 1.0
        %v2123 = vadd.f32 %v2091, 1.0
        %v2124 = vadd.f32 %v2092, 1.0
        %v2125 = vadd.f32 %v2093, 1.0
        %v2126 = vadd.f32 %v2094, 1.0
        %v2127 = vadd.f32 %v2095, 1.0
        %v2128 = vadd.f32 %v2096, 1.0
        %v2129 = vadd.f32 %v2097, 1.0
        %v2130 = vadd.f32 %v2098, 1.0
        %v2131 = vadd.f32 %v2099, 1.0
        %v2132 = vadd.f32 %v2100, 1.0
        %v2133 = vadd.f32 %v2101, 1.0
        %v2134 = vadd.f32 %v2102, 1.0
        %v2135 = vmul.f32 %v2007, %v2103
        %v2136 = vmul.f32 %v2008, %v2104
        %v2137 = vmul.f32 %v2009, %v2105
        %v2138 = vmul.f32 %v2010, %v2106
        %v2139 = vmul.f32 %v2011, %v2107
        %v2140 = vmul.f32 %v2012, %v2108
        %v2141 = vmul.f32 %v2013, %v2109
        %v2142 = vmul.f32 %v2014, %v2110
        %v2143 = vmul.f32 %v2015, %v2111
        %v2144 = vmul.f32 %v2016, %v2112
        %v2145 = vmul.f32 %v2017, %v2113
        %v2146 = vmul.f32 %v2018, %v2114
        %v2147 = vmul.f32 %v2019, %v2115
        %v2148 = vmul.f32 %v2020, %v2116
        %v2149 = vmul.f32 %v2021, %v2117
        %v2150 = vmul.f32 %v2022, %v2118
        %v2151 = vmul.f32 %v2023, %v2119
        %v2152 = vmul.f32 %v2024, %v2120
        %v2153 = vmul.f32 %v2025, %v2121
        %v2154 = vmul.f32 %v2026, %v2122
        %v2155 = vmul.f32 %v2027, %v2123
        %v2156 = vmul.f32 %v2028, %v2124
        %v2157 = vmul.f32 %v2029, %v2125
        %v2158 = vmul.f32 %v2030, %v2126
        %v2159 = vmul.f32 %v2031, %v2127
        %v2160 = vmul.f32 %v2032, %v2128
        %v2161 = vmul.f32 %v2033, %v2129
        %v2162 = vmul.f32 %v2034, %v2130
        %v2163 = vmul.f32 %v2035, %v2131
        %v2164 = vmul.f32 %v2036, %v2132
        %v2165 = vmul.f32 %v2037, %v2133
        %v2166 = vmul.f32 %v2038, %v2134
        %v2167 = vld [vmem:[#allocation10] sm:$0xff]
        %v2168 = vld [vmem:[#allocation10 + $0x8] sm:$0xff]
        %v2169 = vld [vmem:[#allocation10 + $0x10] sm:$0xff]
        %v2170 = vld [vmem:[#allocation10 + $0x18] sm:$0xff]
        %v2171 = vld [vmem:[#allocation10 + $0x20] sm:$0xff]
        %v2172 = vld [vmem:[#allocation10 + $0x28] sm:$0xff]
        %v2173 = vld [vmem:[#allocation10 + $0x30] sm:$0xff]
        %v2174 = vld [vmem:[#allocation10 + $0x38] sm:$0xff]
        %v2175 = vld [vmem:[#allocation10 + $0x40] sm:$0xff]
        %v2176 = vld [vmem:[#allocation10 + $0x48] sm:$0xff]
        %v2177 = vld [vmem:[#allocation10 + $0x50] sm:$0xff]
        %v2178 = vld [vmem:[#allocation10 + $0x58] sm:$0xff]
        %v2179 = vld [vmem:[#allocation10 + $0x60] sm:$0xff]
        %v2180 = vld [vmem:[#allocation10 + $0x68] sm:$0xff]
        %v2181 = vld [vmem:[#allocation10 + $0x70] sm:$0xff]
        %v2182 = vld [vmem:[#allocation10 + $0x78] sm:$0xff]
        %v2183 = vld [vmem:[%s8] sm:$0x1]
        %v2185 = vlaneseq
        %v2186 = vshrl.u32 %v2185, 7
        %v2187 = vsub.s32 0, %v2186
        %v2188 = vrot.slane %v2183, %v2187
        %2190 = vmatprep.subr.mxu0 0.0
        %2191 = vmatpush1.msra.mxu0 %v2167
        %2192 = vmatprep.subr.mxu0 0.0
        %2193 = vmatpush1.msra.mxu0 %v2168
        %2194 = vmatprep.subr.mxu0 0.0
        %2195 = vmatpush1.msra.mxu0 %v2169
        %2196 = vmatprep.subr.mxu0 0.0
        %2197 = vmatpush1.msra.mxu0 %v2170
        %2198 = vmatprep.subr.mxu0 0.0
        %2199 = vmatpush1.msra.mxu0 %v2171
        %2200 = vmatprep.subr.mxu0 0.0
        %2201 = vmatpush1.msra.mxu0 %v2172
        %2202 = vmatprep.subr.mxu0 0.0
        %2203 = vmatpush1.msra.mxu0 %v2173
        %2204 = vmatprep.subr.mxu0 0.0
        %2205 = vmatpush1.msra.mxu0 %v2174
        %2206 = vmatprep.subr.mxu0 0.0
        %2207 = vmatpush1.msra.mxu0 %v2175
        %2208 = vmatprep.subr.mxu0 0.0
        %2209 = vmatpush1.msra.mxu0 %v2176
        %2210 = vmatprep.subr.mxu0 0.0
        %2211 = vmatpush1.msra.mxu0 %v2177
        %2212 = vmatprep.subr.mxu0 0.0
        %2213 = vmatpush1.msra.mxu0 %v2178
        %2214 = vmatprep.subr.mxu0 0.0
        %2215 = vmatpush1.msra.mxu0 %v2179
        %2216 = vmatprep.subr.mxu0 0.0
        %2217 = vmatpush1.msra.mxu0 %v2180
        %2218 = vmatprep.subr.mxu0 0.0
        %2219 = vmatpush1.msra.mxu0 %v2181
        %2220 = vmatprep.subr.mxu0 0.0
        %2221 = vmatpush1.msra.mxu0 %v2182
        %2222 = vmatprep.subr.mxu0 0.0
        %2223 = vmatpush1.msra.mxu0 0.0
        %2224 = vmatprep.subr.mxu0 0.0
        %2225 = vmatpush1.msra.mxu0 0.0
        %2226 = vmatprep.subr.mxu0 0.0
        %2227 = vmatpush1.msra.mxu0 0.0
        %2228 = vmatprep.subr.mxu0 0.0
        %2229 = vmatpush1.msra.mxu0 0.0
        %2230 = vmatprep.subr.mxu0 0.0
        %2231 = vmatpush1.msra.mxu0 0.0
        %2232 = vmatprep.subr.mxu0 0.0
        %2233 = vmatpush1.msra.mxu0 0.0
        %2234 = vmatprep.subr.mxu0 0.0
        %2235 = vmatpush1.msra.mxu0 0.0
        %2236 = vmatprep.subr.mxu0 0.0
        %2237 = vmatpush1.msra.mxu0 0.0
        %2238 = vmatprep.subr.mxu0 0.0
        %2239 = vmatpush1.msra.mxu0 0.0
        %2240 = vmatprep.subr.mxu0 0.0
        %2241 = vmatpush1.msra.mxu0 0.0
        %2242 = vmatprep.subr.mxu0 0.0
        %2243 = vmatpush1.msra.mxu0 0.0
        %2244 = vmatprep.subr.mxu0 0.0
        %2245 = vmatpush1.msra.mxu0 0.0
        %2246 = vmatprep.subr.mxu0 0.0
        %2247 = vmatpush1.msra.mxu0 0.0
        %2248 = vmatprep.subr.mxu0 0.0
        %2249 = vmatpush1.msra.mxu0 0.0
        %2250 = vmatprep.subr.mxu0 0.0
        %2251 = vmatpush1.msra.mxu0 0.0
        %2252 = vmatprep.subr.mxu0 0.0
        %2253 = vmatpush1.msra.mxu0 0.0
        %2254 = vmatprep.mubr.f32.mxu0 0.0
        %2255 = vmatmul.mubr.f32.gmra.mrb[0].mxu0 %v2135
        %v2256 = vpop.f32.mrb[0].mxu0
        %v2257 = vadd.f32 %v2188, %v2256
        %v2258 = vpop.f32.mrb[0].mxu0
        %2259 = vmatprep.mubr.f32.mxu0 0.0
        %2260 = vmatmul.mubr.f32.gmra.mrb[0].mxu0 %v2136
        %v2261 = vpop.f32.mrb[0].mxu0
        %v2262 = vadd.f32 %v2188, %v2261
        %v2263 = vpop.f32.mrb[0].mxu0
        %2264 = vmatprep.mubr.f32.mxu0 0.0
        %2265 = vmatmul.mubr.f32.gmra.mrb[0].mxu0 %v2137
        %v2266 = vpop.f32.mrb[0].mxu0
        %v2267 = vadd.f32 %v2188, %v2266
        %v2268 = vpop.f32.mrb[0].mxu0
        %2269 = vmatprep.mubr.f32.mxu0 0.0
        %2270 = vmatmul.mubr.f32.gmra.mrb[0].mxu0 %v2138
        %v2271 = vpop.f32.mrb[0].mxu0
        %v2272 = vadd.f32 %v2188, %v2271
        %v2273 = vpop.f32.mrb[0].mxu0
        %2274 = vmatprep.mubr.f32.mxu0 0.0
        %2275 = vmatmul.mubr.f32.gmra.mrb[0].mxu0 %v2139
        %v2276 = vpop.f32.mrb[0].mxu0
        %v2277 = vadd.f32 %v2188, %v2276
        %v2278 = vpop.f32.mrb[0].mxu0
        %2279 = vmatprep.mubr.f32.mxu0 0.0
        %2280 = vmatmul.mubr.f32.gmra.mrb[0].mxu0 %v2140
        %v2281 = vpop.f32.mrb[0].mxu0
        %v2282 = vadd.f32 %v2188, %v2281
        %v2283 = vpop.f32.mrb[0].mxu0
        %2284 = vmatprep.mubr.f32.mxu0 0.0
        %2285 = vmatmul.mubr.f32.gmra.mrb[0].mxu0 %v2141
        %v2286 = vpop.f32.mrb[0].mxu0
        %v2287 = vadd.f32 %v2188, %v2286
        %v2288 = vpop.f32.mrb[0].mxu0
        %2289 = vmatprep.mubr.f32.mxu0 0.0
        %2290 = vmatmul.mubr.f32.gmra.mrb[0].mxu0 %v2142
        %v2291 = vpop.f32.mrb[0].mxu0
        %v2292 = vadd.f32 %v2188, %v2291
        %v2293 = vpop.f32.mrb[0].mxu0
        %2294 = vmatprep.mubr.f32.mxu0 0.0
        %2295 = vmatmul.mubr.f32.gmra.mrb[0].mxu0 %v2143
        %v2296 = vpop.f32.mrb[0].mxu0
        %v2297 = vadd.f32 %v2188, %v2296
        %v2298 = vpop.f32.mrb[0].mxu0
        %2299 = vmatprep.mubr.f32.mxu0 0.0
        %2300 = vmatmul.mubr.f32.gmra.mrb[0].mxu0 %v2144
        %v2301 = vpop.f32.mrb[0].mxu0
        %v2302 = vadd.f32 %v2188, %v2301
        %v2303 = vpop.f32.mrb[0].mxu0
        %2304 = vmatprep.mubr.f32.mxu0 0.0
        %2305 = vmatmul.mubr.f32.gmra.mrb[0].mxu0 %v2145
        %v2306 = vpop.f32.mrb[0].mxu0
        %v2307 = vadd.f32 %v2188, %v2306
        %v2308 = vpop.f32.mrb[0].mxu0
        %2309 = vmatprep.mubr.f32.mxu0 0.0
        %2310 = vmatmul.mubr.f32.gmra.mrb[0].mxu0 %v2146
        %v2311 = vpop.f32.mrb[0].mxu0
        %v2312 = vadd.f32 %v2188, %v2311
        %v2313 = vpop.f32.mrb[0].mxu0
        %2314 = vmatprep.mubr.f32.mxu0 0.0
        %2315 = vmatmul.mubr.f32.gmra.mrb[0].mxu0 %v2147
        %v2316 = vpop.f32.mrb[0].mxu0
        %v2317 = vadd.f32 %v2188, %v2316
        %v2318 = vpop.f32.mrb[0].mxu0
        %2319 = vmatprep.mubr.f32.mxu0 0.0
        %2320 = vmatmul.mubr.f32.gmra.mrb[0].mxu0 %v2148
        %v2321 = vpop.f32.mrb[0].mxu0
        %v2322 = vadd.f32 %v2188, %v2321
        %v2323 = vpop.f32.mrb[0].mxu0
        %2324 = vmatprep.mubr.f32.mxu0 0.0
        %2325 = vmatmul.mubr.f32.gmra.mrb[0].mxu0 %v2149
        %v2326 = vpop.f32.mrb[0].mxu0
        %v2327 = vadd.f32 %v2188, %v2326
        %v2328 = vpop.f32.mrb[0].mxu0
        %2329 = vmatprep.mubr.f32.mxu0 0.0
        %2330 = vmatmul.mubr.f32.gmra.mrb[0].mxu0 %v2150
        %v2331 = vpop.f32.mrb[0].mxu0
        %v2332 = vadd.f32 %v2188, %v2331
        %v2333 = vpop.f32.mrb[0].mxu0
        %2334 = vmatprep.mubr.f32.mxu0 0.0
        %2335 = vmatmul.mubr.f32.gmra.mrb[0].mxu0 %v2151
        %v2336 = vpop.f32.mrb[0].mxu0
        %v2337 = vadd.f32 %v2188, %v2336
        %v2338 = vpop.f32.mrb[0].mxu0
        %2339 = vmatprep.mubr.f32.mxu0 0.0
        %2340 = vmatmul.mubr.f32.gmra.mrb[0].mxu0 %v2152
        %v2341 = vpop.f32.mrb[0].mxu0
        %v2342 = vadd.f32 %v2188, %v2341
        %v2343 = vpop.f32.mrb[0].mxu0
        %2344 = vmatprep.mubr.f32.mxu0 0.0
        %2345 = vmatmul.mubr.f32.gmra.mrb[0].mxu0 %v2153
        %v2346 = vpop.f32.mrb[0].mxu0
        %v2347 = vadd.f32 %v2188, %v2346
        %v2348 = vpop.f32.mrb[0].mxu0
        %2349 = vmatprep.mubr.f32.mxu0 0.0
        %2350 = vmatmul.mubr.f32.gmra.mrb[0].mxu0 %v2154
        %v2351 = vpop.f32.mrb[0].mxu0
        %v2352 = vadd.f32 %v2188, %v2351
        %v2353 = vpop.f32.mrb[0].mxu0
        %2354 = vmatprep.mubr.f32.mxu0 0.0
        %2355 = vmatmul.mubr.f32.gmra.mrb[0].mxu0 %v2155
        %v2356 = vpop.f32.mrb[0].mxu0
        %v2357 = vadd.f32 %v2188, %v2356
        %v2358 = vpop.f32.mrb[0].mxu0
        %2359 = vmatprep.mubr.f32.mxu0 0.0
        %2360 = vmatmul.mubr.f32.gmra.mrb[0].mxu0 %v2156
        %v2361 = vpop.f32.mrb[0].mxu0
        %v2362 = vadd.f32 %v2188, %v2361
        %v2363 = vpop.f32.mrb[0].mxu0
        %2364 = vmatprep.mubr.f32.mxu0 0.0
        %2365 = vmatmul.mubr.f32.gmra.mrb[0].mxu0 %v2157
        %v2366 = vpop.f32.mrb[0].mxu0
        %v2367 = vadd.f32 %v2188, %v2366
        %v2368 = vpop.f32.mrb[0].mxu0
        %2369 = vmatprep.mubr.f32.mxu0 0.0
        %2370 = vmatmul.mubr.f32.gmra.mrb[0].mxu0 %v2158
        %v2371 = vpop.f32.mrb[0].mxu0
        %v2372 = vadd.f32 %v2188, %v2371
        %v2373 = vpop.f32.mrb[0].mxu0
        %2374 = vmatprep.mubr.f32.mxu0 0.0
        %2375 = vmatmul.mubr.f32.gmra.mrb[0].mxu0 %v2159
        %v2376 = vpop.f32.mrb[0].mxu0
        %v2377 = vadd.f32 %v2188, %v2376
        %v2378 = vpop.f32.mrb[0].mxu0
        %2379 = vmatprep.mubr.f32.mxu0 0.0
        %2380 = vmatmul.mubr.f32.gmra.mrb[0].mxu0 %v2160
        %v2381 = vpop.f32.mrb[0].mxu0
        %v2382 = vadd.f32 %v2188, %v2381
        %v2383 = vpop.f32.mrb[0].mxu0
        %2384 = vmatprep.mubr.f32.mxu0 0.0
        %2385 = vmatmul.mubr.f32.gmra.mrb[0].mxu0 %v2161
        %v2386 = vpop.f32.mrb[0].mxu0
        %v2387 = vadd.f32 %v2188, %v2386
        %v2388 = vpop.f32.mrb[0].mxu0
        %2389 = vmatprep.mubr.f32.mxu0 0.0
        %2390 = vmatmul.mubr.f32.gmra.mrb[0].mxu0 %v2162
        %v2391 = vpop.f32.mrb[0].mxu0
        %v2392 = vadd.f32 %v2188, %v2391
        %v2393 = vpop.f32.mrb[0].mxu0
        %2394 = vmatprep.mubr.f32.mxu0 0.0
        %2395 = vmatmul.mubr.f32.gmra.mrb[0].mxu0 %v2163
        %v2396 = vpop.f32.mrb[0].mxu0
        %v2397 = vadd.f32 %v2188, %v2396
        %v2398 = vpop.f32.mrb[0].mxu0
        %2399 = vmatprep.mubr.f32.mxu0 0.0
        %2400 = vmatmul.mubr.f32.gmra.mrb[0].mxu0 %v2164
        %v2401 = vpop.f32.mrb[0].mxu0
        %v2402 = vadd.f32 %v2188, %v2401
        %v2403 = vpop.f32.mrb[0].mxu0
        %2404 = vmatprep.mubr.f32.mxu0 0.0
        %2405 = vmatmul.mubr.f32.gmra.mrb[0].mxu0 %v2165
        %v2406 = vpop.f32.mrb[0].mxu0
        %v2407 = vadd.f32 %v2188, %v2406
        %v2408 = vpop.f32.mrb[0].mxu0
        %2409 = vmatprep.mubr.f32.mxu0 0.0
        %2410 = vmatmul.mubr.f32.gmra.mrb[0].mxu0 %v2166
        %v2411 = vpop.f32.mrb[0].mxu0
        %v2412 = vadd.f32 %v2188, %v2411
        %v2413 = vpop.f32.mrb[0].mxu0
        %2414 = vdwg.mxu0
        %2415 = vst [vmem:[%s507] sm:$0xff] %v2257
        %2416 = vst [vmem:[%s507 + $0x8] sm:$0xff] %v2262
        %2417 = vst [vmem:[%s507 + $0x10] sm:$0xff] %v2267
        %2418 = vst [vmem:[%s507 + $0x18] sm:$0xff] %v2272
        %2419 = vst [vmem:[%s507 + $0x20] sm:$0xff] %v2277
        %2420 = vst [vmem:[%s507 + $0x28] sm:$0xff] %v2282
        %2421 = vst [vmem:[%s507 + $0x30] sm:$0xff] %v2287
        %2422 = vst [vmem:[%s507 + $0x38] sm:$0xff] %v2292
        %2423 = vst [vmem:[%s507 + $0x40] sm:$0xff] %v2297
        %2424 = vst [vmem:[%s507 + $0x48] sm:$0xff] %v2302
        %2425 = vst [vmem:[%s507 + $0x50] sm:$0xff] %v2307
        %2426 = vst [vmem:[%s507 + $0x58] sm:$0xff] %v2312
        %2427 = vst [vmem:[%s507 + $0x60] sm:$0xff] %v2317
        %2428 = vst [vmem:[%s507 + $0x68] sm:$0xff] %v2322
        %2429 = vst [vmem:[%s507 + $0x70] sm:$0xff] %v2327
        %2430 = vst [vmem:[%s507 + $0x78] sm:$0xff] %v2332
        %2431 = vst [vmem:[%s507 + $0x80] sm:$0xff] %v2337
        %2432 = vst [vmem:[%s507 + $0x88] sm:$0xff] %v2342
        %2433 = vst [vmem:[%s507 + $0x90] sm:$0xff] %v2347
        %2434 = vst [vmem:[%s507 + $0x98] sm:$0xff] %v2352
        %2435 = vst [vmem:[%s507 + $0xa0] sm:$0xff] %v2357
        %2436 = vst [vmem:[%s507 + $0xa8] sm:$0xff] %v2362
        %2437 = vst [vmem:[%s507 + $0xb0] sm:$0xff] %v2367
        %2438 = vst [vmem:[%s507 + $0xb8] sm:$0xff] %v2372
        %2439 = vst [vmem:[%s507 + $0xc0] sm:$0xff] %v2377
        %2440 = vst [vmem:[%s507 + $0xc8] sm:$0xff] %v2382
        %2441 = vst [vmem:[%s507 + $0xd0] sm:$0xff] %v2387
        %2442 = vst [vmem:[%s507 + $0xd8] sm:$0xff] %v2392
        %2443 = vst [vmem:[%s507 + $0xe0] sm:$0xff] %v2397
        %2444 = vst [vmem:[%s507 + $0xe8] sm:$0xff] %v2402
        %2445 = vst [vmem:[%s507 + $0xf0] sm:$0xff] %v2407
        %2446 = vst [vmem:[%s507 + $0xf8] sm:$0xff] %v2412
        %s2447 = sand.u32 %s278, 1
        %s2448 = scalar_lea.sflag [#allocation4], %s2447
        %s2449 = sand.u32 %s278, 1
        %s2450 = smul.addr %s2449, 256
        %s2451 = scalar_lea.vmem [#allocation11], %s2450
        // Predicated region
        $region77: #{tpu_custom_call.1} parent=55 // pred_check
          %p2452 = pneg %p288
        $region78: #{tpu_custom_call.1} parent=55 // pred_check_branch
          %2454 = sbr.rel (%p2452) target = $region80
        $region79: #{tpu_custom_call.1} parent=55 // pred_region
          %s2455 = smul.u32 16, %s35
          %s2457 = ssub.s32 4096, 4096
          %2458 = vsyncadd %s2448, %s2457
          %s2459 = smul.addr %s2455, 2
          %s2460 = smul.addr %s34, 32
          %s2461 = sadd.s32 %s2459, %s2460
          %s2462 = smul.addr %s2461, 128
          %s2463 = scalar_lea.hbm %s9, %s2462
          %s2464 = sshll.u32 %s2451, 4
          %s2465 = int_to_ptr.vmem [resolvable:$true] %s2464
          %2470 = dma.vmem_to_hbm [thread:$0]  %s2465, 4096, %s2463, %s2448, 128, 128, 8
        $region80: #{tpu_custom_call.1} parent=55 // pred_fallthru
          _
      $region56: #{tpu_custom_call.1} parent=5 // pred_fallthru
        _
      %p2471 = scmp.le.s32.totalorder 2, %s25
      // Predicated region
      $region81: #{tpu_custom_call.1} parent=5 // pred_check
        %p2472 = pneg %p2471
      $region82: #{tpu_custom_call.1} parent=5 // pred_check_branch
        %2474 = sbr.rel (%p2472) target = $region84
      $region83: #{tpu_custom_call.1} parent=5 // pred_region
        %s2475 = ssub.s32 %s25, 2
        // Predicated region
        $region85: #{tpu_custom_call.1} parent=83 // pred_check
          %p2476 = pneg %p294
        $region86: #{tpu_custom_call.1} parent=83 // pred_check_branch
          %2478 = sbr.rel (%p2476) target = $region88
        $region87: #{tpu_custom_call.1} parent=83 // pred_region
          %s2479 = sand.u32 %s279, 1
          %s2480 = scalar_lea.sflag [#allocation4], %s2479
          %s2481 = sand.u32 %s279, 1
          %s2482 = smul.addr %s2481, 256
          %s2483 = scalar_lea.vmem [#allocation11], %s2482
          %2484 = dma.done %s2480, 4096
        $region88: #{tpu_custom_call.1} parent=83 // pred_fallthru
          _
      $region84: #{tpu_custom_call.1} parent=5 // pred_fallthru
        _
    $region6: #{tpu_custom_call.1} parent=1 // loop_footer
      %s29 = sadd.s32 1, %s25
    $region7: #{tpu_custom_call.1} parent=1 // loop_footer_branch
      %24 = sbr.rel target = $region3
    $region8: #{tpu_custom_call.1} parent=1 // loop_exit
      _
    %2485 = vsyncpa [#allocation3], 1
    %s2486 = scalar_lea.sflag [#allocation3], 1
    %2487 = vsyncpa %s2486, 1
    %2488 = vsyncpa [#allocation6], 1
    %s2489 = scalar_lea.sflag [#allocation6], 1
    %2490 = vsyncpa %s2489, 1
    %2491 = vsyncpa [#allocation9], 1
    %2492 = vsyncpa [#allocation4], 1
    %s2493 = scalar_lea.sflag [#allocation4], 1
    %2494 = vsyncpa %s2493, 1

</llo_original>
